<compile_context>
chip_gen: v7x
topology: tpu7x:2x2x1
jax: 0.10.0
libtpu: 0.0.40
codegen_flags: <defaults>
</compile_context>

<pallas_src>
import jax
import jax.numpy as jnp
from jax import lax
from jax.experimental import pallas as pl
from jax.experimental.pallas import tpu as pltpu


EMBEDDING_DIM = 32
HIDDEN_DIM = 32      # stacked-LSTM weight packing below assumes E == H
VOCAB_SIZE = 128     # slab packing assumes V == 4*H == 128 (one lane width)
NUM_LAYERS = 2       # packed-gate recurrence is written for exactly 2 layers
DROPOUT_RATE = 0.5   # identity at inference


# ----------------------------- fused kernel ----------------------------------

def _gate_update(gates, c_prev, H):
    # PyTorch gate order i, f, g, o.  The g-gate pre-activation columns were
    # pre-scaled by 2 at init, so ONE sigmoid over the whole [Bp, 4H] vreg
    # suffices: tanh(x) = 2*sigmoid(2x) - 1 recovers g with a VPU fma.
    sig = jax.nn.sigmoid(gates)
    i_g = sig[:, 0 * H:1 * H]
    f_g = sig[:, 1 * H:2 * H]
    g_g = 2.0 * sig[:, 2 * H:3 * H] - 1.0
    o_g = sig[:, 3 * H:4 * H]
    c_new = f_g * c_prev + i_g * g_g
    h_new = o_g * jnp.tanh(c_new)
    return h_new, c_new


def _captioning_kernel(x_ref, cap_ref, slab32_ref, gatew_ref, slab128_ref,
                       o_ref, xproj_scr, hid_scr):
    # x:       [Bp, C, H*W]   images (NCHW flattened over spatial, batch padded)
    # cap:     [T*Bp, 1]      caption ids, time-major (row = t*Bp + b), int32
    # slab32:  [V+C+1, E]     rows 0:V   embedding table
    #                         rows V:V+C pre-composed (backbone ∘ enc.fc) weight
    #                         row  V+C   pre-composed bias
    # gatew:   [H, 8H]        [Whh0_t | Wih1_t] (g-columns pre-scaled by 2)
    # slab128: [3H+3, 128]    rows 0:H  Wih0_t   rows H:2H Whh1_t
    #                         rows 2H:3H dec.fc W_t
    #                         row 3H b0, row 3H+1 b1, row 3H+2 dec.fc bias
    # o:       [(T+1)*Bp, V]  time-major logits
    Bp, C, HW = x_ref.shape
    TB = cap_ref.shape[0]
    T = TB // Bp
    E = slab32_ref.shape[1]
    V = slab32_ref.shape[0] - C - 1
    H = gatew_ref.shape[0]
    G = 4 * H
    f32 = jnp.float32

    # ---- parameter slabs (few lane-aligned loads, static offsets) -----------
    wih0 = slab128_ref[0 * H:1 * H, :]            # [E, 4H]
    whh1 = slab128_ref[1 * H:2 * H, :]            # [H, 4H]
    decw = slab128_ref[2 * H:3 * H, :]            # [H, V]
    b0 = slab128_ref[3 * H + 0:3 * H + 1, :]      # [1, 4H]
    b1 = slab128_ref[3 * H + 1:3 * H + 2, :]      # [1, 4H]
    decb = slab128_ref[3 * H + 2:3 * H + 3, :]    # [1, V]
    gatew = gatew_ref[...]                        # [H, 8H]

    # ---- Encoder: stand-in backbone ∘ enc.fc, pre-composed to C -> E --------
    # Global average pool (mean folded into the sum), then C=4 broadcast MACs
    # on the VPU (K = 4 is far too small for the MXU).
    pooled = jnp.sum(x_ref[...], axis=-1) * (1.0 / HW)            # [Bp, C]
    encw = slab32_ref[V:V + C, :]                                 # [C, E]
    encb = slab32_ref[V + C:V + C + 1, :]                         # [1, E]
    features = jnp.broadcast_to(encb, (Bp, E))
    for ch in range(C):
        features = features + pooled[:, ch:ch + 1] * encw[ch:ch + 1, :]

    # ---- Embedding lookup (exact, as one-hot matmul; V = 128) ---------------
    ids = cap_ref[...]                                            # [T*Bp, 1]
    onehot = (ids == lax.broadcasted_iota(jnp.int32, (TB, V), 1)).astype(f32)
    emb_rows = jnp.dot(onehot, slab32_ref[0:V, :],
                       preferred_element_type=f32)                # [T*Bp, E]

    # ---- LSTM inputs, time-major flattened: row index = t*Bp + b ------------
    # t = 0 rows are the image features (torch.cat((features.unsqueeze(1), emb))).
    inputs_flat = jnp.concatenate([features, emb_rows], axis=0)   # [(T+1)*Bp, E]

    # ---- Hoisted layer-0 input projection (+bias) parked in VMEM scratch ----
    xproj_scr[...] = (jnp.dot(inputs_flat, wih0, preferred_element_type=f32)
                      + b0)                                       # [(T+1)*Bp, 4H]

    # ---- LSTM recurrence (2 layers, fully unrolled) --------------------------
    # Per-step critical path is ONE packed matmul: h0 @ [Whh0 | Wih1] yields
    # layer-0's next-step recurrent gates AND layer-1's current-step input
    # gates; h1 @ Whh1 runs a step early on the (parallel) layer-1 chain.
    h0 = jnp.zeros((Bp, H), f32)
    c0 = jnp.zeros((Bp, H), f32)
    c1 = jnp.zeros((Bp, H), f32)
    rec0 = None   # h0(t-1) @ Whh0
    rec1 = None   # h1(t-1) @ Whh1
    for t in range(T + 1):
        xg = xproj_scr[t * Bp:(t + 1) * Bp, :]                    # [Bp, 4H]
        gates0 = xg if t == 0 else xg + rec0
        h0, c0 = _gate_update(gates0, c0, H)

        packed = jnp.dot(h0, gatew, preferred_element_type=f32)   # [Bp, 8H]
        rec0 = packed[:, 0:G]
        in1 = packed[:, G:2 * G]

        gates1 = (in1 + b1) if t == 0 else (in1 + rec1 + b1)
        h1, c1 = _gate_update(gates1, c1, H)
        if t < T:
            rec1 = jnp.dot(h1, whh1, preferred_element_type=f32)
        hid_scr[t * Bp:(t + 1) * Bp, :] = h1

    # ---- dropout: identity (eval semantics); decoder.fc: H -> V --------------
    logits = jnp.dot(hid_scr[...], decw, preferred_element_type=f32) + decb
    o_ref[...] = logits.astype(o_ref.dtype)


# ----------------------------- params -----------------------------------------

def init_params(key, img_channels):
    assert EMBEDDING_DIM == HIDDEN_DIM
    assert VOCAB_SIZE == 4 * HIDDEN_DIM
    assert NUM_LAYERS == 2
    C = img_channels
    E, H, V, L = EMBEDDING_DIM, HIDDEN_DIM, VOCAB_SIZE, NUM_LAYERS
    ks = jax.random.split(key, 8)
    s = 0.1

    # Stand-in backbone projection C -> 2048 (linear) and encoder.fc 2048 -> E.
    bb_w = s * jax.random.normal(ks[0], (C, 2048), jnp.float32)
    bb_b = jnp.zeros((1, 2048), jnp.float32)
    enc_w = s * jax.random.normal(ks[1], (E, 2048), jnp.float32)  # [out, in]
    enc_b = jnp.zeros((1, E), jnp.float32)
    # Pre-compose the two linear maps (exact ONLY because the stand-in backbone
    # is linear; must be reverted if a real ResNet50 replaces it).
    encw_comb = bb_w @ enc_w.T                       # [C, E]
    encb_comb = bb_b @ enc_w.T + enc_b               # [1, E]

    # decoder.embedding
    emb_table = s * jax.random.normal(ks[2], (V, E), jnp.float32)

    # decoder.lstm (PyTorch layout [4H, in] / [4H, H]); layer-0 input dim = E.
    wih = s * jax.random.normal(ks[3], (L, 4 * H, E), jnp.float32)
    whh = s * jax.random.normal(ks[4], (L, 4 * H, H), jnp.float32)
    b_ih = s * jax.random.normal(ks[5], (L, 4 * H), jnp.float32)
    b_hh = s * jax.random.normal(ks[6], (L, 4 * H), jnp.float32)

    wih_t = jnp.transpose(wih, (0, 2, 1))            # [L, E, 4H]
    whh_t = jnp.transpose(whh, (0, 2, 1))            # [L, H, 4H]
    lstm_b = (b_ih + b_hh).reshape(L, 1, 4 * H)      # [L, 1, 4H]

    # Pre-scale g-gate (cols 2H:3H) pre-activations by 2 so the kernel runs a
    # single sigmoid per gate vector (tanh(x) = 2*sigmoid(2x) - 1).
    gcols = jnp.concatenate([jnp.ones((2 * H,), jnp.float32),
                             2.0 * jnp.ones((H,), jnp.float32),
                             jnp.ones((H,), jnp.float32)])
    wih_t = wih_t * gcols
    whh_t = whh_t * gcols
    lstm_b = lstm_b * gcols

    # decoder.fc (H -> V)
    dec_w = s * jax.random.normal(ks[7], (V, H), jnp.float32)
    dec_b = jnp.zeros((1, V), jnp.float32)

    p = {}
    # Packed recurrent/input gate matrix: one [H, 8H] matmul per step.
    p["gatew"] = jnp.concatenate([whh_t[0], wih_t[1]], axis=1)    # [H, 8H]
    # One lane-aligned [*, 128] slab for every 128-wide parameter (single DMA).
    p["slab128"] = jnp.concatenate(
        [wih_t[0],             # rows 0:H     layer-0 input weights
         whh_t[1],             # rows H:2H    layer-1 recurrent weights
         dec_w.T,              # rows 2H:3H   decoder fc weights
         lstm_b[0],            # row 3H       layer-0 bias
         lstm_b[1],            # row 3H+1     layer-1 bias
         dec_b],               # row 3H+2     decoder fc bias
        axis=0)                                                   # [3H+3, 128]
    # One [*, E] slab: embedding table + pre-composed encoder weight/bias.
    p["slab32"] = jnp.concatenate([emb_table, encw_comb, encb_comb], axis=0)
    return p


# ----------------------------- wrapper -----------------------------------------

def image_captioning_forward(params, images, captions):
    B, C, Hs, Ws = images.shape
    T = captions.shape[1]
    # Pad batch to a full f32 sublane group so every per-step [Bp, 4H] tile is
    # sublane-aligned; padded rows are zero work sliced off afterwards (exact).
    Bp = max(8, ((B + 7) // 8) * 8)

    x3 = images.reshape(B, C, Hs * Ws)
    cap = captions.astype(jnp.int32)
    if Bp != B:
        x3 = jnp.pad(x3, ((0, Bp - B), (0, 0), (0, 0)))
        cap = jnp.pad(cap, ((0, Bp - B), (0, 0)))
    # time-major flattened caption ids: row = t*Bp + b
    cap_tm = jnp.transpose(cap, (1, 0)).reshape(T * Bp, 1)

    vmem = pl.BlockSpec(memory_space=pltpu.MemorySpace.VMEM)
    # TODO(synk): on v7x with a larger batch, add a leading batch-tile grid axis
    # with dimension_semantics=("parallel",) to use both TensorCores; at Bp=8 a
    # grid only adds overhead.
    logits_flat = pl.pallas_call(
        _captioning_kernel,
        out_shape=jax.ShapeDtypeStruct(((T + 1) * Bp, VOCAB_SIZE), jnp.float32),
        in_specs=[vmem] * 5,
        out_specs=vmem,
        scratch_shapes=[
            pltpu.VMEM(((T + 1) * Bp, 4 * HIDDEN_DIM), jnp.float32),  # xproj0
            pltpu.VMEM(((T + 1) * Bp, HIDDEN_DIM), jnp.float32),      # hiddens
        ],
    )(x3, cap_tm, params["slab32"], params["gatew"], params["slab128"])

    # time-major [(T+1)*Bp, V] -> batch-first [B, T+1, V] (PyTorch batch_first)
    out = jnp.transpose(logits_flat.reshape(T + 1, Bp, VOCAB_SIZE), (1, 0, 2))
    return out[:B]


# ----------------------------- main --------------------------------------------

if __name__ == "__main__":
    B, C, Himg, Wimg = 2, 4, 16, 16
    T = 8

    key = jax.random.PRNGKey(0)
    k_img, k_cap = jax.random.split(key)
    images = jax.random.normal(k_img, (B, C, Himg, Wimg), jnp.float32)
    captions = jax.random.randint(k_cap, (B, T), 0, VOCAB_SIZE, dtype=jnp.int32)

    params = init_params(jax.random.PRNGKey(42), C)

    forward = jax.jit(image_captioning_forward)
    out = forward(params, images, captions)
    out = jax.block_until_ready(out)

    assert out.shape == (B, T + 1, VOCAB_SIZE), out.shape
    assert out.dtype == jnp.float32
    assert bool(jnp.all(jnp.isfinite(out)))
    print("KERNEL_OK")
</pallas_src>

<mosaic_0001>
module attributes {stable_mosaic.version = 11 : i64} {
  func.func @_captioning_kernel(%arg0: memref<8x4x256xf32, #tpu.memory_space<vmem>>, %arg1: memref<64x1xi32, #tpu.memory_space<vmem>>, %arg2: memref<133x32xf32, #tpu.memory_space<vmem>>, %arg3: memref<32x256xf32, #tpu.memory_space<vmem>>, %arg4: memref<99x128xf32, #tpu.memory_space<vmem>>, %arg5: memref<72x128xf32, #tpu.memory_space<vmem>>, %arg6: memref<72x128xf32, #tpu.memory_space<vmem>>, %arg7: memref<72x32xf32, #tpu.memory_space<vmem>>) attributes {dimension_semantics = [], scalar_prefetch = 0 : i64, scratch_operands = 2 : i64, tpu.core_type = #tpu.core_type<tc>} {
    %c0 = arith.constant 0 : index
    %c0_0 = arith.constant 0 : index
    %0 = vector.load %arg4[%c0, %c0_0] : memref<99x128xf32, #tpu.memory_space<vmem>>, vector<32x128xf32>
    %c32 = arith.constant 32 : index
    %c0_1 = arith.constant 0 : index
    %1 = vector.load %arg4[%c32, %c0_1] : memref<99x128xf32, #tpu.memory_space<vmem>>, vector<32x128xf32>
    %c64 = arith.constant 64 : index
    %c0_2 = arith.constant 0 : index
    %2 = vector.load %arg4[%c64, %c0_2] : memref<99x128xf32, #tpu.memory_space<vmem>>, vector<32x128xf32>
    %c96 = arith.constant 96 : index
    %c0_3 = arith.constant 0 : index
    %3 = vector.load %arg4[%c96, %c0_3] : memref<99x128xf32, #tpu.memory_space<vmem>>, vector<1x128xf32>
    %c97 = arith.constant 97 : index
    %c0_4 = arith.constant 0 : index
    %4 = vector.load %arg4[%c97, %c0_4] : memref<99x128xf32, #tpu.memory_space<vmem>>, vector<1x128xf32>
    %c98 = arith.constant 98 : index
    %c0_5 = arith.constant 0 : index
    %5 = vector.load %arg4[%c98, %c0_5] : memref<99x128xf32, #tpu.memory_space<vmem>>, vector<1x128xf32>
    %c0_6 = arith.constant 0 : index
    %c0_7 = arith.constant 0 : index
    %6 = vector.load %arg3[%c0_6, %c0_7] : memref<32x256xf32, #tpu.memory_space<vmem>>, vector<32x256xf32>
    %c0_8 = arith.constant 0 : index
    %c0_9 = arith.constant 0 : index
    %c0_10 = arith.constant 0 : index
    %7 = vector.load %arg0[%c0_8, %c0_9, %c0_10] : memref<8x4x256xf32, #tpu.memory_space<vmem>>, vector<8x4x256xf32>
    %cst = arith.constant dense<0.000000e+00> : vector<8x4xf32>
    %8 = vector.multi_reduction <add>, %7, %cst [2] : vector<8x4x256xf32> to vector<8x4xf32>
    %cst_11 = arith.constant 3.906250e-03 : f32
    %9 = vector.broadcast %cst_11 : f32 to vector<8x4xf32>
    %10 = arith.mulf %8, %9 : vector<8x4xf32>
    %c128 = arith.constant 128 : index
    %c0_12 = arith.constant 0 : index
    %11 = vector.load %arg2[%c128, %c0_12] : memref<133x32xf32, #tpu.memory_space<vmem>>, vector<4x32xf32>
    %c132 = arith.constant 132 : index
    %c0_13 = arith.constant 0 : index
    %12 = vector.load %arg2[%c132, %c0_13] : memref<133x32xf32, #tpu.memory_space<vmem>>, vector<1x32xf32>
    %13 = vector.shape_cast %12 : vector<1x32xf32> to vector<1x32xf32>
    %14 = vector.broadcast %13 : vector<1x32xf32> to vector<8x32xf32>
    %15 = vector.extract_strided_slice %10 {offsets = [0, 0], sizes = [8, 1], strides = [1, 1]} : vector<8x4xf32> to vector<8x1xf32>
    %16 = vector.extract_strided_slice %11 {offsets = [0, 0], sizes = [1, 32], strides = [1, 1]} : vector<4x32xf32> to vector<1x32xf32>
    %17 = vector.broadcast %15 : vector<8x1xf32> to vector<8x32xf32>
    %18 = vector.broadcast %16 : vector<1x32xf32> to vector<8x32xf32>
    %19 = arith.mulf %17, %18 : vector<8x32xf32>
    %20 = arith.addf %14, %19 : vector<8x32xf32>
    %21 = vector.extract_strided_slice %10 {offsets = [0, 1], sizes = [8, 1], strides = [1, 1]} : vector<8x4xf32> to vector<8x1xf32>
    %22 = vector.extract_strided_slice %11 {offsets = [1, 0], sizes = [1, 32], strides = [1, 1]} : vector<4x32xf32> to vector<1x32xf32>
    %23 = vector.broadcast %21 : vector<8x1xf32> to vector<8x32xf32>
    %24 = vector.broadcast %22 : vector<1x32xf32> to vector<8x32xf32>
    %25 = arith.mulf %23, %24 : vector<8x32xf32>
    %26 = arith.addf %20, %25 : vector<8x32xf32>
    %27 = vector.extract_strided_slice %10 {offsets = [0, 2], sizes = [8, 1], strides = [1, 1]} : vector<8x4xf32> to vector<8x1xf32>
    %28 = vector.extract_strided_slice %11 {offsets = [2, 0], sizes = [1, 32], strides = [1, 1]} : vector<4x32xf32> to vector<1x32xf32>
    %29 = vector.broadcast %27 : vector<8x1xf32> to vector<8x32xf32>
    %30 = vector.broadcast %28 : vector<1x32xf32> to vector<8x32xf32>
    %31 = arith.mulf %29, %30 : vector<8x32xf32>
    %32 = arith.addf %26, %31 : vector<8x32xf32>
    %33 = vector.extract_strided_slice %10 {offsets = [0, 3], sizes = [8, 1], strides = [1, 1]} : vector<8x4xf32> to vector<8x1xf32>
    %34 = vector.extract_strided_slice %11 {offsets = [3, 0], sizes = [1, 32], strides = [1, 1]} : vector<4x32xf32> to vector<1x32xf32>
    %35 = vector.broadcast %33 : vector<8x1xf32> to vector<8x32xf32>
    %36 = vector.broadcast %34 : vector<1x32xf32> to vector<8x32xf32>
    %37 = arith.mulf %35, %36 : vector<8x32xf32>
    %38 = arith.addf %32, %37 : vector<8x32xf32>
    %c0_14 = arith.constant 0 : index
    %c0_15 = arith.constant 0 : index
    %39 = vector.load %arg1[%c0_14, %c0_15] : memref<64x1xi32, #tpu.memory_space<vmem>>, vector<64x1xi32>
    %40 = tpu.iota {dimensions = array<i32: 1>} : vector<64x128xi32>
    %41 = vector.broadcast %39 : vector<64x1xi32> to vector<64x128xi32>
    %42 = arith.cmpi eq, %41, %40 : vector<64x128xi32>
    %43 = arith.extui %42 : vector<64x128xi1> to vector<64x128xi32>
    %44 = arith.sitofp %43 : vector<64x128xi32> to vector<64x128xf32>
    %c0_16 = arith.constant 0 : index
    %c0_17 = arith.constant 0 : index
    %45 = vector.load %arg2[%c0_16, %c0_17] : memref<133x32xf32, #tpu.memory_space<vmem>>, vector<128x32xf32>
    %cst_18 = arith.constant dense<0.000000e+00> : vector<64x32xf32>
    %46 = tpu.matmul %44, %45, %cst_18 {dimension_numbers = #tpu.dot_dimension_numbers<[1], [0], [0], [1], [0, 0, 1, 1], [], []>} : vector<64x128xf32>, vector<128x32xf32>, vector<64x32xf32> -> vector<64x32xf32>
    %47 = tpu.concatenate %38, %46 in 0 : vector<8x32xf32>, vector<64x32xf32> -> vector<72x32xf32>
    %cst_19 = arith.constant dense<0.000000e+00> : vector<72x128xf32>
    %48 = tpu.matmul %47, %0, %cst_19 {dimension_numbers = #tpu.dot_dimension_numbers<[1], [0], [0], [1], [0, 0, 1, 1], [], []>} : vector<72x32xf32>, vector<32x128xf32>, vector<72x128xf32> -> vector<72x128xf32>
    %49 = vector.broadcast %3 : vector<1x128xf32> to vector<72x128xf32>
    %50 = arith.addf %48, %49 : vector<72x128xf32>
    %c0_20 = arith.constant 0 : index
    %c0_21 = arith.constant 0 : index
    %51 = vector.load %arg6[%c0_20, %c0_21] : memref<72x128xf32, #tpu.memory_space<vmem>>, vector<72x128xf32>
    tpu.vector_store %arg6[%c0_20, %c0_21], %50 {strides = array<i32>} : memref<72x128xf32, #tpu.memory_space<vmem>>, vector<72x128xf32>,
    %cst_22 = arith.constant 0.000000e+00 : f32
    %52 = vector.broadcast %cst_22 : f32 to vector<8x32xf32>
    %cst_23 = arith.constant 0.000000e+00 : f32
    %53 = vector.broadcast %cst_23 : f32 to vector<8x32xf32>
    %c0_24 = arith.constant 0 : index
    %c0_25 = arith.constant 0 : index
    %54 = vector.load %arg6[%c0_24, %c0_25] : memref<72x128xf32, #tpu.memory_space<vmem>>, vector<8x128xf32>
    %55 = arith.negf %54 : vector<8x128xf32>
    %56 = math.exp %55 : vector<8x128xf32>
    %cst_26 = arith.constant 1.000000e+00 : f32
    %57 = vector.broadcast %cst_26 : f32 to vector<8x128xf32>
    %58 = arith.addf %57, %56 : vector<8x128xf32>
    %59 = arith.divf %57, %58 : vector<8x128xf32>
    %60 = vector.extract_strided_slice %59 {offsets = [0, 0], sizes = [8, 32], strides = [1, 1]} : vector<8x128xf32> to vector<8x32xf32>
    %61 = vector.extract_strided_slice %59 {offsets = [0, 32], sizes = [8, 32], strides = [1, 1]} : vector<8x128xf32> to vector<8x32xf32>
    %62 = vector.extract_strided_slice %59 {offsets = [0, 64], sizes = [8, 32], strides = [1, 1]} : vector<8x128xf32> to vector<8x32xf32>
    %cst_27 = arith.constant 2.000000e+00 : f32
    %63 = vector.broadcast %cst_27 : f32 to vector<8x32xf32>
    %64 = arith.mulf %63, %62 : vector<8x32xf32>
    %cst_28 = arith.constant 1.000000e+00 : f32
    %65 = vector.broadcast %cst_28 : f32 to vector<8x32xf32>
    %66 = arith.subf %64, %65 : vector<8x32xf32>
    %67 = vector.extract_strided_slice %59 {offsets = [0, 96], sizes = [8, 32], strides = [1, 1]} : vector<8x128xf32> to vector<8x32xf32>
    %68 = arith.mulf %61, %52 : vector<8x32xf32>
    %69 = arith.mulf %60, %66 : vector<8x32xf32>
    %70 = arith.addf %68, %69 : vector<8x32xf32>
    %71 = math.tanh %70 : vector<8x32xf32>
    %72 = arith.mulf %67, %71 : vector<8x32xf32>
    %cst_29 = arith.constant dense<0.000000e+00> : vector<8x256xf32>
    %73 = tpu.matmul %72, %6, %cst_29 {dimension_numbers = #tpu.dot_dimension_numbers<[1], [0], [0], [1], [0, 0, 1, 1], [], []>} : vector<8x32xf32>, vector<32x256xf32>, vector<8x256xf32> -> vector<8x256xf32>
    %74 = vector.extract_strided_slice %73 {offsets = [0, 0], sizes = [8, 128], strides = [1, 1]} : vector<8x256xf32> to vector<8x128xf32>
    %75 = vector.extract_strided_slice %73 {offsets = [0, 128], sizes = [8, 128], strides = [1, 1]} : vector<8x256xf32> to vector<8x128xf32>
    %76 = vector.broadcast %4 : vector<1x128xf32> to vector<8x128xf32>
    %77 = arith.addf %75, %76 : vector<8x128xf32>
    %78 = arith.negf %77 : vector<8x128xf32>
    %79 = math.exp %78 : vector<8x128xf32>
    %cst_30 = arith.constant 1.000000e+00 : f32
    %80 = vector.broadcast %cst_30 : f32 to vector<8x128xf32>
    %81 = arith.addf %80, %79 : vector<8x128xf32>
    %82 = arith.divf %80, %81 : vector<8x128xf32>
    %83 = vector.extract_strided_slice %82 {offsets = [0, 0], sizes = [8, 32], strides = [1, 1]} : vector<8x128xf32> to vector<8x32xf32>
    %84 = vector.extract_strided_slice %82 {offsets = [0, 32], sizes = [8, 32], strides = [1, 1]} : vector<8x128xf32> to vector<8x32xf32>
    %85 = vector.extract_strided_slice %82 {offsets = [0, 64], sizes = [8, 32], strides = [1, 1]} : vector<8x128xf32> to vector<8x32xf32>
    %cst_31 = arith.constant 2.000000e+00 : f32
    %86 = vector.broadcast %cst_31 : f32 to vector<8x32xf32>
    %87 = arith.mulf %86, %85 : vector<8x32xf32>
    %cst_32 = arith.constant 1.000000e+00 : f32
    %88 = vector.broadcast %cst_32 : f32 to vector<8x32xf32>
    %89 = arith.subf %87, %88 : vector<8x32xf32>
    %90 = vector.extract_strided_slice %82 {offsets = [0, 96], sizes = [8, 32], strides = [1, 1]} : vector<8x128xf32> to vector<8x32xf32>
    %91 = arith.mulf %84, %53 : vector<8x32xf32>
    %92 = arith.mulf %83, %89 : vector<8x32xf32>
    %93 = arith.addf %91, %92 : vector<8x32xf32>
    %94 = math.tanh %93 : vector<8x32xf32>
    %95 = arith.mulf %90, %94 : vector<8x32xf32>
    %cst_33 = arith.constant dense<0.000000e+00> : vector<8x128xf32>
    %96 = tpu.matmul %95, %1, %cst_33 {dimension_numbers = #tpu.dot_dimension_numbers<[1], [0], [0], [1], [0, 0, 1, 1], [], []>} : vector<8x32xf32>, vector<32x128xf32>, vector<8x128xf32> -> vector<8x128xf32>
    %c0_34 = arith.constant 0 : index
    %c0_35 = arith.constant 0 : index
    %97 = vector.load %arg7[%c0_34, %c0_35] : memref<72x32xf32, #tpu.memory_space<vmem>>, vector<8x32xf32>
    tpu.vector_store %arg7[%c0_34, %c0_35], %95 {strides = array<i32>} : memref<72x32xf32, #tpu.memory_space<vmem>>, vector<8x32xf32>,
    %c8 = arith.constant 8 : index
    %c0_36 = arith.constant 0 : index
    %98 = vector.load %arg6[%c8, %c0_36] : memref<72x128xf32, #tpu.memory_space<vmem>>, vector<8x128xf32>
    %99 = arith.addf %98, %74 : vector<8x128xf32>
    %100 = arith.negf %99 : vector<8x128xf32>
    %101 = math.exp %100 : vector<8x128xf32>
    %cst_37 = arith.constant 1.000000e+00 : f32
    %102 = vector.broadcast %cst_37 : f32 to vector<8x128xf32>
    %103 = arith.addf %102, %101 : vector<8x128xf32>
    %104 = arith.divf %102, %103 : vector<8x128xf32>
    %105 = vector.extract_strided_slice %104 {offsets = [0, 0], sizes = [8, 32], strides = [1, 1]} : vector<8x128xf32> to vector<8x32xf32>
    %106 = vector.extract_strided_slice %104 {offsets = [0, 32], sizes = [8, 32], strides = [1, 1]} : vector<8x128xf32> to vector<8x32xf32>
    %107 = vector.extract_strided_slice %104 {offsets = [0, 64], sizes = [8, 32], strides = [1, 1]} : vector<8x128xf32> to vector<8x32xf32>
    %cst_38 = arith.constant 2.000000e+00 : f32
    %108 = vector.broadcast %cst_38 : f32 to vector<8x32xf32>
    %109 = arith.mulf %108, %107 : vector<8x32xf32>
    %cst_39 = arith.constant 1.000000e+00 : f32
    %110 = vector.broadcast %cst_39 : f32 to vector<8x32xf32>
    %111 = arith.subf %109, %110 : vector<8x32xf32>
    %112 = vector.extract_strided_slice %104 {offsets = [0, 96], sizes = [8, 32], strides = [1, 1]} : vector<8x128xf32> to vector<8x32xf32>
    %113 = arith.mulf %106, %70 : vector<8x32xf32>
    %114 = arith.mulf %105, %111 : vector<8x32xf32>
    %115 = arith.addf %113, %114 : vector<8x32xf32>
    %116 = math.tanh %115 : vector<8x32xf32>
    %117 = arith.mulf %112, %116 : vector<8x32xf32>
    %cst_40 = arith.constant dense<0.000000e+00> : vector<8x256xf32>
    %118 = tpu.matmul %117, %6, %cst_40 {dimension_numbers = #tpu.dot_dimension_numbers<[1], [0], [0], [1], [0, 0, 1, 1], [], []>} : vector<8x32xf32>, vector<32x256xf32>, vector<8x256xf32> -> vector<8x256xf32>
    %119 = vector.extract_strided_slice %118 {offsets = [0, 0], sizes = [8, 128], strides = [1, 1]} : vector<8x256xf32> to vector<8x128xf32>
    %120 = vector.extract_strided_slice %118 {offsets = [0, 128], sizes = [8, 128], strides = [1, 1]} : vector<8x256xf32> to vector<8x128xf32>
    %121 = arith.addf %120, %96 : vector<8x128xf32>
    %122 = vector.broadcast %4 : vector<1x128xf32> to vector<8x128xf32>
    %123 = arith.addf %121, %122 : vector<8x128xf32>
    %124 = arith.negf %123 : vector<8x128xf32>
    %125 = math.exp %124 : vector<8x128xf32>
    %cst_41 = arith.constant 1.000000e+00 : f32
    %126 = vector.broadcast %cst_41 : f32 to vector<8x128xf32>
    %127 = arith.addf %126, %125 : vector<8x128xf32>
    %128 = arith.divf %126, %127 : vector<8x128xf32>
    %129 = vector.extract_strided_slice %128 {offsets = [0, 0], sizes = [8, 32], strides = [1, 1]} : vector<8x128xf32> to vector<8x32xf32>
    %130 = vector.extract_strided_slice %128 {offsets = [0, 32], sizes = [8, 32], strides = [1, 1]} : vector<8x128xf32> to vector<8x32xf32>
    %131 = vector.extract_strided_slice %128 {offsets = [0, 64], sizes = [8, 32], strides = [1, 1]} : vector<8x128xf32> to vector<8x32xf32>
    %cst_42 = arith.constant 2.000000e+00 : f32
    %132 = vector.broadcast %cst_42 : f32 to vector<8x32xf32>
    %133 = arith.mulf %132, %131 : vector<8x32xf32>
    %cst_43 = arith.constant 1.000000e+00 : f32
    %134 = vector.broadcast %cst_43 : f32 to vector<8x32xf32>
    %135 = arith.subf %133, %134 : vector<8x32xf32>
    %136 = vector.extract_strided_slice %128 {offsets = [0, 96], sizes = [8, 32], strides = [1, 1]} : vector<8x128xf32> to vector<8x32xf32>
    %137 = arith.mulf %130, %93 : vector<8x32xf32>
    %138 = arith.mulf %129, %135 : vector<8x32xf32>
    %139 = arith.addf %137, %138 : vector<8x32xf32>
    %140 = math.tanh %139 : vector<8x32xf32>
    %141 = arith.mulf %136, %140 : vector<8x32xf32>
    %cst_44 = arith.constant dense<0.000000e+00> : vector<8x128xf32>
    %142 = tpu.matmul %141, %1, %cst_44 {dimension_numbers = #tpu.dot_dimension_numbers<[1], [0], [0], [1], [0, 0, 1, 1], [], []>} : vector<8x32xf32>, vector<32x128xf32>, vector<8x128xf32> -> vector<8x128xf32>
    %c8_45 = arith.constant 8 : index
    %c0_46 = arith.constant 0 : index
    %143 = vector.load %arg7[%c8_45, %c0_46] : memref<72x32xf32, #tpu.memory_space<vmem>>, vector<8x32xf32>
    tpu.vector_store %arg7[%c8_45, %c0_46], %141 {strides = array<i32>} : memref<72x32xf32, #tpu.memory_space<vmem>>, vector<8x32xf32>,
    %c16 = arith.constant 16 : index
    %c0_47 = arith.constant 0 : index
    %144 = vector.load %arg6[%c16, %c0_47] : memref<72x128xf32, #tpu.memory_space<vmem>>, vector<8x128xf32>
    %145 = arith.addf %144, %119 : vector<8x128xf32>
    %146 = arith.negf %145 : vector<8x128xf32>
    %147 = math.exp %146 : vector<8x128xf32>
    %cst_48 = arith.constant 1.000000e+00 : f32
    %148 = vector.broadcast %cst_48 : f32 to vector<8x128xf32>
    %149 = arith.addf %148, %147 : vector<8x128xf32>
    %150 = arith.divf %148, %149 : vector<8x128xf32>
    %151 = vector.extract_strided_slice %150 {offsets = [0, 0], sizes = [8, 32], strides = [1, 1]} : vector<8x128xf32> to vector<8x32xf32>
    %152 = vector.extract_strided_slice %150 {offsets = [0, 32], sizes = [8, 32], strides = [1, 1]} : vector<8x128xf32> to vector<8x32xf32>
    %153 = vector.extract_strided_slice %150 {offsets = [0, 64], sizes = [8, 32], strides = [1, 1]} : vector<8x128xf32> to vector<8x32xf32>
    %cst_49 = arith.constant 2.000000e+00 : f32
    %154 = vector.broadcast %cst_49 : f32 to vector<8x32xf32>
    %155 = arith.mulf %154, %153 : vector<8x32xf32>
    %cst_50 = arith.constant 1.000000e+00 : f32
    %156 = vector.broadcast %cst_50 : f32 to vector<8x32xf32>
    %157 = arith.subf %155, %156 : vector<8x32xf32>
    %158 = vector.extract_strided_slice %150 {offsets = [0, 96], sizes = [8, 32], strides = [1, 1]} : vector<8x128xf32> to vector<8x32xf32>
    %159 = arith.mulf %152, %115 : vector<8x32xf32>
    %160 = arith.mulf %151, %157 : vector<8x32xf32>
    %161 = arith.addf %159, %160 : vector<8x32xf32>
    %162 = math.tanh %161 : vector<8x32xf32>
    %163 = arith.mulf %158, %162 : vector<8x32xf32>
    %cst_51 = arith.constant dense<0.000000e+00> : vector<8x256xf32>
    %164 = tpu.matmul %163, %6, %cst_51 {dimension_numbers = #tpu.dot_dimension_numbers<[1], [0], [0], [1], [0, 0, 1, 1], [], []>} : vector<8x32xf32>, vector<32x256xf32>, vector<8x256xf32> -> vector<8x256xf32>
    %165 = vector.extract_strided_slice %164 {offsets = [0, 0], sizes = [8, 128], strides = [1, 1]} : vector<8x256xf32> to vector<8x128xf32>
    %166 = vector.extract_strided_slice %164 {offsets = [0, 128], sizes = [8, 128], strides = [1, 1]} : vector<8x256xf32> to vector<8x128xf32>
    %167 = arith.addf %166, %142 : vector<8x128xf32>
    %168 = vector.broadcast %4 : vector<1x128xf32> to vector<8x128xf32>
    %169 = arith.addf %167, %168 : vector<8x128xf32>
    %170 = arith.negf %169 : vector<8x128xf32>
    %171 = math.exp %170 : vector<8x128xf32>
    %cst_52 = arith.constant 1.000000e+00 : f32
    %172 = vector.broadcast %cst_52 : f32 to vector<8x128xf32>
    %173 = arith.addf %172, %171 : vector<8x128xf32>
    %174 = arith.divf %172, %173 : vector<8x128xf32>
    %175 = vector.extract_strided_slice %174 {offsets = [0, 0], sizes = [8, 32], strides = [1, 1]} : vector<8x128xf32> to vector<8x32xf32>
    %176 = vector.extract_strided_slice %174 {offsets = [0, 32], sizes = [8, 32], strides = [1, 1]} : vector<8x128xf32> to vector<8x32xf32>
    %177 = vector.extract_strided_slice %174 {offsets = [0, 64], sizes = [8, 32], strides = [1, 1]} : vector<8x128xf32> to vector<8x32xf32>
    %cst_53 = arith.constant 2.000000e+00 : f32
    %178 = vector.broadcast %cst_53 : f32 to vector<8x32xf32>
    %179 = arith.mulf %178, %177 : vector<8x32xf32>
    %cst_54 = arith.constant 1.000000e+00 : f32
    %180 = vector.broadcast %cst_54 : f32 to vector<8x32xf32>
    %181 = arith.subf %179, %180 : vector<8x32xf32>
    %182 = vector.extract_strided_slice %174 {offsets = [0, 96], sizes = [8, 32], strides = [1, 1]} : vector<8x128xf32> to vector<8x32xf32>
    %183 = arith.mulf %176, %139 : vector<8x32xf32>
    %184 = arith.mulf %175, %181 : vector<8x32xf32>
    %185 = arith.addf %183, %184 : vector<8x32xf32>
    %186 = math.tanh %185 : vector<8x32xf32>
    %187 = arith.mulf %182, %186 : vector<8x32xf32>
    %cst_55 = arith.constant dense<0.000000e+00> : vector<8x128xf32>
    %188 = tpu.matmul %187, %1, %cst_55 {dimension_numbers = #tpu.dot_dimension_numbers<[1], [0], [0], [1], [0, 0, 1, 1], [], []>} : vector<8x32xf32>, vector<32x128xf32>, vector<8x128xf32> -> vector<8x128xf32>
    %c16_56 = arith.constant 16 : index
    %c0_57 = arith.constant 0 : index
    %189 = vector.load %arg7[%c16_56, %c0_57] : memref<72x32xf32, #tpu.memory_space<vmem>>, vector<8x32xf32>
    tpu.vector_store %arg7[%c16_56, %c0_57], %187 {strides = array<i32>} : memref<72x32xf32, #tpu.memory_space<vmem>>, vector<8x32xf32>,
    %c24 = arith.constant 24 : index
    %c0_58 = arith.constant 0 : index
    %190 = vector.load %arg6[%c24, %c0_58] : memref<72x128xf32, #tpu.memory_space<vmem>>, vector<8x128xf32>
    %191 = arith.addf %190, %165 : vector<8x128xf32>
    %192 = arith.negf %191 : vector<8x128xf32>
    %193 = math.exp %192 : vector<8x128xf32>
    %cst_59 = arith.constant 1.000000e+00 : f32
    %194 = vector.broadcast %cst_59 : f32 to vector<8x128xf32>
    %195 = arith.addf %194, %193 : vector<8x128xf32>
    %196 = arith.divf %194, %195 : vector<8x128xf32>
    %197 = vector.extract_strided_slice %196 {offsets = [0, 0], sizes = [8, 32], strides = [1, 1]} : vector<8x128xf32> to vector<8x32xf32>
    %198 = vector.extract_strided_slice %196 {offsets = [0, 32], sizes = [8, 32], strides = [1, 1]} : vector<8x128xf32> to vector<8x32xf32>
    %199 = vector.extract_strided_slice %196 {offsets = [0, 64], sizes = [8, 32], strides = [1, 1]} : vector<8x128xf32> to vector<8x32xf32>
    %cst_60 = arith.constant 2.000000e+00 : f32
    %200 = vector.broadcast %cst_60 : f32 to vector<8x32xf32>
    %201 = arith.mulf %200, %199 : vector<8x32xf32>
    %cst_61 = arith.constant 1.000000e+00 : f32
    %202 = vector.broadcast %cst_61 : f32 to vector<8x32xf32>
    %203 = arith.subf %201, %202 : vector<8x32xf32>
    %204 = vector.extract_strided_slice %196 {offsets = [0, 96], sizes = [8, 32], strides = [1, 1]} : vector<8x128xf32> to vector<8x32xf32>
    %205 = arith.mulf %198, %161 : vector<8x32xf32>
    %206 = arith.mulf %197, %203 : vector<8x32xf32>
    %207 = arith.addf %205, %206 : vector<8x32xf32>
    %208 = math.tanh %207 : vector<8x32xf32>
    %209 = arith.mulf %204, %208 : vector<8x32xf32>
    %cst_62 = arith.constant dense<0.000000e+00> : vector<8x256xf32>
    %210 = tpu.matmul %209, %6, %cst_62 {dimension_numbers = #tpu.dot_dimension_numbers<[1], [0], [0], [1], [0, 0, 1, 1], [], []>} : vector<8x32xf32>, vector<32x256xf32>, vector<8x256xf32> -> vector<8x256xf32>
    %211 = vector.extract_strided_slice %210 {offsets = [0, 0], sizes = [8, 128], strides = [1, 1]} : vector<8x256xf32> to vector<8x128xf32>
    %212 = vector.extract_strided_slice %210 {offsets = [0, 128], sizes = [8, 128], strides = [1, 1]} : vector<8x256xf32> to vector<8x128xf32>
    %213 = arith.addf %212, %188 : vector<8x128xf32>
    %214 = vector.broadcast %4 : vector<1x128xf32> to vector<8x128xf32>
    %215 = arith.addf %213, %214 : vector<8x128xf32>
    %216 = arith.negf %215 : vector<8x128xf32>
    %217 = math.exp %216 : vector<8x128xf32>
    %cst_63 = arith.constant 1.000000e+00 : f32
    %218 = vector.broadcast %cst_63 : f32 to vector<8x128xf32>
    %219 = arith.addf %218, %217 : vector<8x128xf32>
    %220 = arith.divf %218, %219 : vector<8x128xf32>
    %221 = vector.extract_strided_slice %220 {offsets = [0, 0], sizes = [8, 32], strides = [1, 1]} : vector<8x128xf32> to vector<8x32xf32>
    %222 = vector.extract_strided_slice %220 {offsets = [0, 32], sizes = [8, 32], strides = [1, 1]} : vector<8x128xf32> to vector<8x32xf32>
    %223 = vector.extract_strided_slice %220 {offsets = [0, 64], sizes = [8, 32], strides = [1, 1]} : vector<8x128xf32> to vector<8x32xf32>
    %cst_64 = arith.constant 2.000000e+00 : f32
    %224 = vector.broadcast %cst_64 : f32 to vector<8x32xf32>
    %225 = arith.mulf %224, %223 : vector<8x32xf32>
    %cst_65 = arith.constant 1.000000e+00 : f32
    %226 = vector.broadcast %cst_65 : f32 to vector<8x32xf32>
    %227 = arith.subf %225, %226 : vector<8x32xf32>
    %228 = vector.extract_strided_slice %220 {offsets = [0, 96], sizes = [8, 32], strides = [1, 1]} : vector<8x128xf32> to vector<8x32xf32>
    %229 = arith.mulf %222, %185 : vector<8x32xf32>
    %230 = arith.mulf %221, %227 : vector<8x32xf32>
    %231 = arith.addf %229, %230 : vector<8x32xf32>
    %232 = math.tanh %231 : vector<8x32xf32>
    %233 = arith.mulf %228, %232 : vector<8x32xf32>
    %cst_66 = arith.constant dense<0.000000e+00> : vector<8x128xf32>
    %234 = tpu.matmul %233, %1, %cst_66 {dimension_numbers = #tpu.dot_dimension_numbers<[1], [0], [0], [1], [0, 0, 1, 1], [], []>} : vector<8x32xf32>, vector<32x128xf32>, vector<8x128xf32> -> vector<8x128xf32>
    %c24_67 = arith.constant 24 : index
    %c0_68 = arith.constant 0 : index
    %235 = vector.load %arg7[%c24_67, %c0_68] : memref<72x32xf32, #tpu.memory_space<vmem>>, vector<8x32xf32>
    tpu.vector_store %arg7[%c24_67, %c0_68], %233 {strides = array<i32>} : memref<72x32xf32, #tpu.memory_space<vmem>>, vector<8x32xf32>,
    %c32_69 = arith.constant 32 : index
    %c0_70 = arith.constant 0 : index
    %236 = vector.load %arg6[%c32_69, %c0_70] : memref<72x128xf32, #tpu.memory_space<vmem>>, vector<8x128xf32>
    %237 = arith.addf %236, %211 : vector<8x128xf32>
    %238 = arith.negf %237 : vector<8x128xf32>
    %239 = math.exp %238 : vector<8x128xf32>
    %cst_71 = arith.constant 1.000000e+00 : f32
    %240 = vector.broadcast %cst_71 : f32 to vector<8x128xf32>
    %241 = arith.addf %240, %239 : vector<8x128xf32>
    %242 = arith.divf %240, %241 : vector<8x128xf32>
    %243 = vector.extract_strided_slice %242 {offsets = [0, 0], sizes = [8, 32], strides = [1, 1]} : vector<8x128xf32> to vector<8x32xf32>
    %244 = vector.extract_strided_slice %242 {offsets = [0, 32], sizes = [8, 32], strides = [1, 1]} : vector<8x128xf32> to vector<8x32xf32>
    %245 = vector.extract_strided_slice %242 {offsets = [0, 64], sizes = [8, 32], strides = [1, 1]} : vector<8x128xf32> to vector<8x32xf32>
    %cst_72 = arith.constant 2.000000e+00 : f32
    %246 = vector.broadcast %cst_72 : f32 to vector<8x32xf32>
    %247 = arith.mulf %246, %245 : vector<8x32xf32>
    %cst_73 = arith.constant 1.000000e+00 : f32
    %248 = vector.broadcast %cst_73 : f32 to vector<8x32xf32>
    %249 = arith.subf %247, %248 : vector<8x32xf32>
    %250 = vector.extract_strided_slice %242 {offsets = [0, 96], sizes = [8, 32], strides = [1, 1]} : vector<8x128xf32> to vector<8x32xf32>
    %251 = arith.mulf %244, %207 : vector<8x32xf32>
    %252 = arith.mulf %243, %249 : vector<8x32xf32>
    %253 = arith.addf %251, %252 : vector<8x32xf32>
    %254 = math.tanh %253 : vector<8x32xf32>
    %255 = arith.mulf %250, %254 : vector<8x32xf32>
    %cst_74 = arith.constant dense<0.000000e+00> : vector<8x256xf32>
    %256 = tpu.matmul %255, %6, %cst_74 {dimension_numbers = #tpu.dot_dimension_numbers<[1], [0], [0], [1], [0, 0, 1, 1], [], []>} : vector<8x32xf32>, vector<32x256xf32>, vector<8x256xf32> -> vector<8x256xf32>
    %257 = vector.extract_strided_slice %256 {offsets = [0, 0], sizes = [8, 128], strides = [1, 1]} : vector<8x256xf32> to vector<8x128xf32>
    %258 = vector.extract_strided_slice %256 {offsets = [0, 128], sizes = [8, 128], strides = [1, 1]} : vector<8x256xf32> to vector<8x128xf32>
    %259 = arith.addf %258, %234 : vector<8x128xf32>
    %260 = vector.broadcast %4 : vector<1x128xf32> to vector<8x128xf32>
    %261 = arith.addf %259, %260 : vector<8x128xf32>
    %262 = arith.negf %261 : vector<8x128xf32>
    %263 = math.exp %262 : vector<8x128xf32>
    %cst_75 = arith.constant 1.000000e+00 : f32
    %264 = vector.broadcast %cst_75 : f32 to vector<8x128xf32>
    %265 = arith.addf %264, %263 : vector<8x128xf32>
    %266 = arith.divf %264, %265 : vector<8x128xf32>
    %267 = vector.extract_strided_slice %266 {offsets = [0, 0], sizes = [8, 32], strides = [1, 1]} : vector<8x128xf32> to vector<8x32xf32>
    %268 = vector.extract_strided_slice %266 {offsets = [0, 32], sizes = [8, 32], strides = [1, 1]} : vector<8x128xf32> to vector<8x32xf32>
    %269 = vector.extract_strided_slice %266 {offsets = [0, 64], sizes = [8, 32], strides = [1, 1]} : vector<8x128xf32> to vector<8x32xf32>
    %cst_76 = arith.constant 2.000000e+00 : f32
    %270 = vector.broadcast %cst_76 : f32 to vector<8x32xf32>
    %271 = arith.mulf %270, %269 : vector<8x32xf32>
    %cst_77 = arith.constant 1.000000e+00 : f32
    %272 = vector.broadcast %cst_77 : f32 to vector<8x32xf32>
    %273 = arith.subf %271, %272 : vector<8x32xf32>
    %274 = vector.extract_strided_slice %266 {offsets = [0, 96], sizes = [8, 32], strides = [1, 1]} : vector<8x128xf32> to vector<8x32xf32>
    %275 = arith.mulf %268, %231 : vector<8x32xf32>
    %276 = arith.mulf %267, %273 : vector<8x32xf32>
    %277 = arith.addf %275, %276 : vector<8x32xf32>
    %278 = math.tanh %277 : vector<8x32xf32>
    %279 = arith.mulf %274, %278 : vector<8x32xf32>
    %cst_78 = arith.constant dense<0.000000e+00> : vector<8x128xf32>
    %280 = tpu.matmul %279, %1, %cst_78 {dimension_numbers = #tpu.dot_dimension_numbers<[1], [0], [0], [1], [0, 0, 1, 1], [], []>} : vector<8x32xf32>, vector<32x128xf32>, vector<8x128xf32> -> vector<8x128xf32>
    %c32_79 = arith.constant 32 : index
    %c0_80 = arith.constant 0 : index
    %281 = vector.load %arg7[%c32_79, %c0_80] : memref<72x32xf32, #tpu.memory_space<vmem>>, vector<8x32xf32>
    tpu.vector_store %arg7[%c32_79, %c0_80], %279 {strides = array<i32>} : memref<72x32xf32, #tpu.memory_space<vmem>>, vector<8x32xf32>,
    %c40 = arith.constant 40 : index
    %c0_81 = arith.constant 0 : index
    %282 = vector.load %arg6[%c40, %c0_81] : memref<72x128xf32, #tpu.memory_space<vmem>>, vector<8x128xf32>
    %283 = arith.addf %282, %257 : vector<8x128xf32>
    %284 = arith.negf %283 : vector<8x128xf32>
    %285 = math.exp %284 : vector<8x128xf32>
    %cst_82 = arith.constant 1.000000e+00 : f32
    %286 = vector.broadcast %cst_82 : f32 to vector<8x128xf32>
    %287 = arith.addf %286, %285 : vector<8x128xf32>
    %288 = arith.divf %286, %287 : vector<8x128xf32>
    %289 = vector.extract_strided_slice %288 {offsets = [0, 0], sizes = [8, 32], strides = [1, 1]} : vector<8x128xf32> to vector<8x32xf32>
    %290 = vector.extract_strided_slice %288 {offsets = [0, 32], sizes = [8, 32], strides = [1, 1]} : vector<8x128xf32> to vector<8x32xf32>
    %291 = vector.extract_strided_slice %288 {offsets = [0, 64], sizes = [8, 32], strides = [1, 1]} : vector<8x128xf32> to vector<8x32xf32>
    %cst_83 = arith.constant 2.000000e+00 : f32
    %292 = vector.broadcast %cst_83 : f32 to vector<8x32xf32>
    %293 = arith.mulf %292, %291 : vector<8x32xf32>
    %cst_84 = arith.constant 1.000000e+00 : f32
    %294 = vector.broadcast %cst_84 : f32 to vector<8x32xf32>
    %295 = arith.subf %293, %294 : vector<8x32xf32>
    %296 = vector.extract_strided_slice %288 {offsets = [0, 96], sizes = [8, 32], strides = [1, 1]} : vector<8x128xf32> to vector<8x32xf32>
    %297 = arith.mulf %290, %253 : vector<8x32xf32>
    %298 = arith.mulf %289, %295 : vector<8x32xf32>
    %299 = arith.addf %297, %298 : vector<8x32xf32>
    %300 = math.tanh %299 : vector<8x32xf32>
    %301 = arith.mulf %296, %300 : vector<8x32xf32>
    %cst_85 = arith.constant dense<0.000000e+00> : vector<8x256xf32>
    %302 = tpu.matmul %301, %6, %cst_85 {dimension_numbers = #tpu.dot_dimension_numbers<[1], [0], [0], [1], [0, 0, 1, 1], [], []>} : vector<8x32xf32>, vector<32x256xf32>, vector<8x256xf32> -> vector<8x256xf32>
    %303 = vector.extract_strided_slice %302 {offsets = [0, 0], sizes = [8, 128], strides = [1, 1]} : vector<8x256xf32> to vector<8x128xf32>
    %304 = vector.extract_strided_slice %302 {offsets = [0, 128], sizes = [8, 128], strides = [1, 1]} : vector<8x256xf32> to vector<8x128xf32>
    %305 = arith.addf %304, %280 : vector<8x128xf32>
    %306 = vector.broadcast %4 : vector<1x128xf32> to vector<8x128xf32>
    %307 = arith.addf %305, %306 : vector<8x128xf32>
    %308 = arith.negf %307 : vector<8x128xf32>
    %309 = math.exp %308 : vector<8x128xf32>
    %cst_86 = arith.constant 1.000000e+00 : f32
    %310 = vector.broadcast %cst_86 : f32 to vector<8x128xf32>
    %311 = arith.addf %310, %309 : vector<8x128xf32>
    %312 = arith.divf %310, %311 : vector<8x128xf32>
    %313 = vector.extract_strided_slice %312 {offsets = [0, 0], sizes = [8, 32], strides = [1, 1]} : vector<8x128xf32> to vector<8x32xf32>
    %314 = vector.extract_strided_slice %312 {offsets = [0, 32], sizes = [8, 32], strides = [1, 1]} : vector<8x128xf32> to vector<8x32xf32>
    %315 = vector.extract_strided_slice %312 {offsets = [0, 64], sizes = [8, 32], strides = [1, 1]} : vector<8x128xf32> to vector<8x32xf32>
    %cst_87 = arith.constant 2.000000e+00 : f32
    %316 = vector.broadcast %cst_87 : f32 to vector<8x32xf32>
    %317 = arith.mulf %316, %315 : vector<8x32xf32>
    %cst_88 = arith.constant 1.000000e+00 : f32
    %318 = vector.broadcast %cst_88 : f32 to vector<8x32xf32>
    %319 = arith.subf %317, %318 : vector<8x32xf32>
    %320 = vector.extract_strided_slice %312 {offsets = [0, 96], sizes = [8, 32], strides = [1, 1]} : vector<8x128xf32> to vector<8x32xf32>
    %321 = arith.mulf %314, %277 : vector<8x32xf32>
    %322 = arith.mulf %313, %319 : vector<8x32xf32>
    %323 = arith.addf %321, %322 : vector<8x32xf32>
    %324 = math.tanh %323 : vector<8x32xf32>
    %325 = arith.mulf %320, %324 : vector<8x32xf32>
    %cst_89 = arith.constant dense<0.000000e+00> : vector<8x128xf32>
    %326 = tpu.matmul %325, %1, %cst_89 {dimension_numbers = #tpu.dot_dimension_numbers<[1], [0], [0], [1], [0, 0, 1, 1], [], []>} : vector<8x32xf32>, vector<32x128xf32>, vector<8x128xf32> -> vector<8x128xf32>
    %c40_90 = arith.constant 40 : index
    %c0_91 = arith.constant 0 : index
    %327 = vector.load %arg7[%c40_90, %c0_91] : memref<72x32xf32, #tpu.memory_space<vmem>>, vector<8x32xf32>
    tpu.vector_store %arg7[%c40_90, %c0_91], %325 {strides = array<i32>} : memref<72x32xf32, #tpu.memory_space<vmem>>, vector<8x32xf32>,
    %c48 = arith.constant 48 : index
    %c0_92 = arith.constant 0 : index
    %328 = vector.load %arg6[%c48, %c0_92] : memref<72x128xf32, #tpu.memory_space<vmem>>, vector<8x128xf32>
    %329 = arith.addf %328, %303 : vector<8x128xf32>
    %330 = arith.negf %329 : vector<8x128xf32>
    %331 = math.exp %330 : vector<8x128xf32>
    %cst_93 = arith.constant 1.000000e+00 : f32
    %332 = vector.broadcast %cst_93 : f32 to vector<8x128xf32>
    %333 = arith.addf %332, %331 : vector<8x128xf32>
    %334 = arith.divf %332, %333 : vector<8x128xf32>
    %335 = vector.extract_strided_slice %334 {offsets = [0, 0], sizes = [8, 32], strides = [1, 1]} : vector<8x128xf32> to vector<8x32xf32>
    %336 = vector.extract_strided_slice %334 {offsets = [0, 32], sizes = [8, 32], strides = [1, 1]} : vector<8x128xf32> to vector<8x32xf32>
    %337 = vector.extract_strided_slice %334 {offsets = [0, 64], sizes = [8, 32], strides = [1, 1]} : vector<8x128xf32> to vector<8x32xf32>
    %cst_94 = arith.constant 2.000000e+00 : f32
    %338 = vector.broadcast %cst_94 : f32 to vector<8x32xf32>
    %339 = arith.mulf %338, %337 : vector<8x32xf32>
    %cst_95 = arith.constant 1.000000e+00 : f32
    %340 = vector.broadcast %cst_95 : f32 to vector<8x32xf32>
    %341 = arith.subf %339, %340 : vector<8x32xf32>
    %342 = vector.extract_strided_slice %334 {offsets = [0, 96], sizes = [8, 32], strides = [1, 1]} : vector<8x128xf32> to vector<8x32xf32>
    %343 = arith.mulf %336, %299 : vector<8x32xf32>
    %344 = arith.mulf %335, %341 : vector<8x32xf32>
    %345 = arith.addf %343, %344 : vector<8x32xf32>
    %346 = math.tanh %345 : vector<8x32xf32>
    %347 = arith.mulf %342, %346 : vector<8x32xf32>
    %cst_96 = arith.constant dense<0.000000e+00> : vector<8x256xf32>
    %348 = tpu.matmul %347, %6, %cst_96 {dimension_numbers = #tpu.dot_dimension_numbers<[1], [0], [0], [1], [0, 0, 1, 1], [], []>} : vector<8x32xf32>, vector<32x256xf32>, vector<8x256xf32> -> vector<8x256xf32>
    %349 = vector.extract_strided_slice %348 {offsets = [0, 0], sizes = [8, 128], strides = [1, 1]} : vector<8x256xf32> to vector<8x128xf32>
    %350 = vector.extract_strided_slice %348 {offsets = [0, 128], sizes = [8, 128], strides = [1, 1]} : vector<8x256xf32> to vector<8x128xf32>
    %351 = arith.addf %350, %326 : vector<8x128xf32>
    %352 = vector.broadcast %4 : vector<1x128xf32> to vector<8x128xf32>
    %353 = arith.addf %351, %352 : vector<8x128xf32>
    %354 = arith.negf %353 : vector<8x128xf32>
    %355 = math.exp %354 : vector<8x128xf32>
    %cst_97 = arith.constant 1.000000e+00 : f32
    %356 = vector.broadcast %cst_97 : f32 to vector<8x128xf32>
    %357 = arith.addf %356, %355 : vector<8x128xf32>
    %358 = arith.divf %356, %357 : vector<8x128xf32>
    %359 = vector.extract_strided_slice %358 {offsets = [0, 0], sizes = [8, 32], strides = [1, 1]} : vector<8x128xf32> to vector<8x32xf32>
    %360 = vector.extract_strided_slice %358 {offsets = [0, 32], sizes = [8, 32], strides = [1, 1]} : vector<8x128xf32> to vector<8x32xf32>
    %361 = vector.extract_strided_slice %358 {offsets = [0, 64], sizes = [8, 32], strides = [1, 1]} : vector<8x128xf32> to vector<8x32xf32>
    %cst_98 = arith.constant 2.000000e+00 : f32
    %362 = vector.broadcast %cst_98 : f32 to vector<8x32xf32>
    %363 = arith.mulf %362, %361 : vector<8x32xf32>
    %cst_99 = arith.constant 1.000000e+00 : f32
    %364 = vector.broadcast %cst_99 : f32 to vector<8x32xf32>
    %365 = arith.subf %363, %364 : vector<8x32xf32>
    %366 = vector.extract_strided_slice %358 {offsets = [0, 96], sizes = [8, 32], strides = [1, 1]} : vector<8x128xf32> to vector<8x32xf32>
    %367 = arith.mulf %360, %323 : vector<8x32xf32>
    %368 = arith.mulf %359, %365 : vector<8x32xf32>
    %369 = arith.addf %367, %368 : vector<8x32xf32>
    %370 = math.tanh %369 : vector<8x32xf32>
    %371 = arith.mulf %366, %370 : vector<8x32xf32>
    %cst_100 = arith.constant dense<0.000000e+00> : vector<8x128xf32>
    %372 = tpu.matmul %371, %1, %cst_100 {dimension_numbers = #tpu.dot_dimension_numbers<[1], [0], [0], [1], [0, 0, 1, 1], [], []>} : vector<8x32xf32>, vector<32x128xf32>, vector<8x128xf32> -> vector<8x128xf32>
    %c48_101 = arith.constant 48 : index
    %c0_102 = arith.constant 0 : index
    %373 = vector.load %arg7[%c48_101, %c0_102] : memref<72x32xf32, #tpu.memory_space<vmem>>, vector<8x32xf32>
    tpu.vector_store %arg7[%c48_101, %c0_102], %371 {strides = array<i32>} : memref<72x32xf32, #tpu.memory_space<vmem>>, vector<8x32xf32>,
    %c56 = arith.constant 56 : index
    %c0_103 = arith.constant 0 : index
    %374 = vector.load %arg6[%c56, %c0_103] : memref<72x128xf32, #tpu.memory_space<vmem>>, vector<8x128xf32>
    %375 = arith.addf %374, %349 : vector<8x128xf32>
    %376 = arith.negf %375 : vector<8x128xf32>
    %377 = math.exp %376 : vector<8x128xf32>
    %cst_104 = arith.constant 1.000000e+00 : f32
    %378 = vector.broadcast %cst_104 : f32 to vector<8x128xf32>
    %379 = arith.addf %378, %377 : vector<8x128xf32>
    %380 = arith.divf %378, %379 : vector<8x128xf32>
    %381 = vector.extract_strided_slice %380 {offsets = [0, 0], sizes = [8, 32], strides = [1, 1]} : vector<8x128xf32> to vector<8x32xf32>
    %382 = vector.extract_strided_slice %380 {offsets = [0, 32], sizes = [8, 32], strides = [1, 1]} : vector<8x128xf32> to vector<8x32xf32>
    %383 = vector.extract_strided_slice %380 {offsets = [0, 64], sizes = [8, 32], strides = [1, 1]} : vector<8x128xf32> to vector<8x32xf32>
    %cst_105 = arith.constant 2.000000e+00 : f32
    %384 = vector.broadcast %cst_105 : f32 to vector<8x32xf32>
    %385 = arith.mulf %384, %383 : vector<8x32xf32>
    %cst_106 = arith.constant 1.000000e+00 : f32
    %386 = vector.broadcast %cst_106 : f32 to vector<8x32xf32>
    %387 = arith.subf %385, %386 : vector<8x32xf32>
    %388 = vector.extract_strided_slice %380 {offsets = [0, 96], sizes = [8, 32], strides = [1, 1]} : vector<8x128xf32> to vector<8x32xf32>
    %389 = arith.mulf %382, %345 : vector<8x32xf32>
    %390 = arith.mulf %381, %387 : vector<8x32xf32>
    %391 = arith.addf %389, %390 : vector<8x32xf32>
    %392 = math.tanh %391 : vector<8x32xf32>
    %393 = arith.mulf %388, %392 : vector<8x32xf32>
    %cst_107 = arith.constant dense<0.000000e+00> : vector<8x256xf32>
    %394 = tpu.matmul %393, %6, %cst_107 {dimension_numbers = #tpu.dot_dimension_numbers<[1], [0], [0], [1], [0, 0, 1, 1], [], []>} : vector<8x32xf32>, vector<32x256xf32>, vector<8x256xf32> -> vector<8x256xf32>
    %395 = vector.extract_strided_slice %394 {offsets = [0, 0], sizes = [8, 128], strides = [1, 1]} : vector<8x256xf32> to vector<8x128xf32>
    %396 = vector.extract_strided_slice %394 {offsets = [0, 128], sizes = [8, 128], strides = [1, 1]} : vector<8x256xf32> to vector<8x128xf32>
    %397 = arith.addf %396, %372 : vector<8x128xf32>
    %398 = vector.broadcast %4 : vector<1x128xf32> to vector<8x128xf32>
    %399 = arith.addf %397, %398 : vector<8x128xf32>
    %400 = arith.negf %399 : vector<8x128xf32>
    %401 = math.exp %400 : vector<8x128xf32>
    %cst_108 = arith.constant 1.000000e+00 : f32
    %402 = vector.broadcast %cst_108 : f32 to vector<8x128xf32>
    %403 = arith.addf %402, %401 : vector<8x128xf32>
    %404 = arith.divf %402, %403 : vector<8x128xf32>
    %405 = vector.extract_strided_slice %404 {offsets = [0, 0], sizes = [8, 32], strides = [1, 1]} : vector<8x128xf32> to vector<8x32xf32>
    %406 = vector.extract_strided_slice %404 {offsets = [0, 32], sizes = [8, 32], strides = [1, 1]} : vector<8x128xf32> to vector<8x32xf32>
    %407 = vector.extract_strided_slice %404 {offsets = [0, 64], sizes = [8, 32], strides = [1, 1]} : vector<8x128xf32> to vector<8x32xf32>
    %cst_109 = arith.constant 2.000000e+00 : f32
    %408 = vector.broadcast %cst_109 : f32 to vector<8x32xf32>
    %409 = arith.mulf %408, %407 : vector<8x32xf32>
    %cst_110 = arith.constant 1.000000e+00 : f32
    %410 = vector.broadcast %cst_110 : f32 to vector<8x32xf32>
    %411 = arith.subf %409, %410 : vector<8x32xf32>
    %412 = vector.extract_strided_slice %404 {offsets = [0, 96], sizes = [8, 32], strides = [1, 1]} : vector<8x128xf32> to vector<8x32xf32>
    %413 = arith.mulf %406, %369 : vector<8x32xf32>
    %414 = arith.mulf %405, %411 : vector<8x32xf32>
    %415 = arith.addf %413, %414 : vector<8x32xf32>
    %416 = math.tanh %415 : vector<8x32xf32>
    %417 = arith.mulf %412, %416 : vector<8x32xf32>
    %cst_111 = arith.constant dense<0.000000e+00> : vector<8x128xf32>
    %418 = tpu.matmul %417, %1, %cst_111 {dimension_numbers = #tpu.dot_dimension_numbers<[1], [0], [0], [1], [0, 0, 1, 1], [], []>} : vector<8x32xf32>, vector<32x128xf32>, vector<8x128xf32> -> vector<8x128xf32>
    %c56_112 = arith.constant 56 : index
    %c0_113 = arith.constant 0 : index
    %419 = vector.load %arg7[%c56_112, %c0_113] : memref<72x32xf32, #tpu.memory_space<vmem>>, vector<8x32xf32>
    tpu.vector_store %arg7[%c56_112, %c0_113], %417 {strides = array<i32>} : memref<72x32xf32, #tpu.memory_space<vmem>>, vector<8x32xf32>,
    %c64_114 = arith.constant 64 : index
    %c0_115 = arith.constant 0 : index
    %420 = vector.load %arg6[%c64_114, %c0_115] : memref<72x128xf32, #tpu.memory_space<vmem>>, vector<8x128xf32>
    %421 = arith.addf %420, %395 : vector<8x128xf32>
    %422 = arith.negf %421 : vector<8x128xf32>
    %423 = math.exp %422 : vector<8x128xf32>
    %cst_116 = arith.constant 1.000000e+00 : f32
    %424 = vector.broadcast %cst_116 : f32 to vector<8x128xf32>
    %425 = arith.addf %424, %423 : vector<8x128xf32>
    %426 = arith.divf %424, %425 : vector<8x128xf32>
    %427 = vector.extract_strided_slice %426 {offsets = [0, 0], sizes = [8, 32], strides = [1, 1]} : vector<8x128xf32> to vector<8x32xf32>
    %428 = vector.extract_strided_slice %426 {offsets = [0, 32], sizes = [8, 32], strides = [1, 1]} : vector<8x128xf32> to vector<8x32xf32>
    %429 = vector.extract_strided_slice %426 {offsets = [0, 64], sizes = [8, 32], strides = [1, 1]} : vector<8x128xf32> to vector<8x32xf32>
    %cst_117 = arith.constant 2.000000e+00 : f32
    %430 = vector.broadcast %cst_117 : f32 to vector<8x32xf32>
    %431 = arith.mulf %430, %429 : vector<8x32xf32>
    %cst_118 = arith.constant 1.000000e+00 : f32
    %432 = vector.broadcast %cst_118 : f32 to vector<8x32xf32>
    %433 = arith.subf %431, %432 : vector<8x32xf32>
    %434 = vector.extract_strided_slice %426 {offsets = [0, 96], sizes = [8, 32], strides = [1, 1]} : vector<8x128xf32> to vector<8x32xf32>
    %435 = arith.mulf %428, %391 : vector<8x32xf32>
    %436 = arith.mulf %427, %433 : vector<8x32xf32>
    %437 = arith.addf %435, %436 : vector<8x32xf32>
    %438 = math.tanh %437 : vector<8x32xf32>
    %439 = arith.mulf %434, %438 : vector<8x32xf32>
    %cst_119 = arith.constant dense<0.000000e+00> : vector<8x256xf32>
    %440 = tpu.matmul %439, %6, %cst_119 {dimension_numbers = #tpu.dot_dimension_numbers<[1], [0], [0], [1], [0, 0, 1, 1], [], []>} : vector<8x32xf32>, vector<32x256xf32>, vector<8x256xf32> -> vector<8x256xf32>
    %441 = vector.extract_strided_slice %440 {offsets = [0, 128], sizes = [8, 128], strides = [1, 1]} : vector<8x256xf32> to vector<8x128xf32>
    %442 = arith.addf %441, %418 : vector<8x128xf32>
    %443 = vector.broadcast %4 : vector<1x128xf32> to vector<8x128xf32>
    %444 = arith.addf %442, %443 : vector<8x128xf32>
    %445 = arith.negf %444 : vector<8x128xf32>
    %446 = math.exp %445 : vector<8x128xf32>
    %cst_120 = arith.constant 1.000000e+00 : f32
    %447 = vector.broadcast %cst_120 : f32 to vector<8x128xf32>
    %448 = arith.addf %447, %446 : vector<8x128xf32>
    %449 = arith.divf %447, %448 : vector<8x128xf32>
    %450 = vector.extract_strided_slice %449 {offsets = [0, 0], sizes = [8, 32], strides = [1, 1]} : vector<8x128xf32> to vector<8x32xf32>
    %451 = vector.extract_strided_slice %449 {offsets = [0, 32], sizes = [8, 32], strides = [1, 1]} : vector<8x128xf32> to vector<8x32xf32>
    %452 = vector.extract_strided_slice %449 {offsets = [0, 64], sizes = [8, 32], strides = [1, 1]} : vector<8x128xf32> to vector<8x32xf32>
    %cst_121 = arith.constant 2.000000e+00 : f32
    %453 = vector.broadcast %cst_121 : f32 to vector<8x32xf32>
    %454 = arith.mulf %453, %452 : vector<8x32xf32>
    %cst_122 = arith.constant 1.000000e+00 : f32
    %455 = vector.broadcast %cst_122 : f32 to vector<8x32xf32>
    %456 = arith.subf %454, %455 : vector<8x32xf32>
    %457 = vector.extract_strided_slice %449 {offsets = [0, 96], sizes = [8, 32], strides = [1, 1]} : vector<8x128xf32> to vector<8x32xf32>
    %458 = arith.mulf %451, %415 : vector<8x32xf32>
    %459 = arith.mulf %450, %456 : vector<8x32xf32>
    %460 = arith.addf %458, %459 : vector<8x32xf32>
    %461 = math.tanh %460 : vector<8x32xf32>
    %462 = arith.mulf %457, %461 : vector<8x32xf32>
    %c64_123 = arith.constant 64 : index
    %c0_124 = arith.constant 0 : index
    %463 = vector.load %arg7[%c64_123, %c0_124] : memref<72x32xf32, #tpu.memory_space<vmem>>, vector<8x32xf32>
    tpu.vector_store %arg7[%c64_123, %c0_124], %462 {strides = array<i32>} : memref<72x32xf32, #tpu.memory_space<vmem>>, vector<8x32xf32>,
    %c0_125 = arith.constant 0 : index
    %c0_126 = arith.constant 0 : index
    %464 = vector.load %arg7[%c0_125, %c0_126] : memref<72x32xf32, #tpu.memory_space<vmem>>, vector<72x32xf32>
    %cst_127 = arith.constant dense<0.000000e+00> : vector<72x128xf32>
    %465 = tpu.matmul %464, %2, %cst_127 {dimension_numbers = #tpu.dot_dimension_numbers<[1], [0], [0], [1], [0, 0, 1, 1], [], []>} : vector<72x32xf32>, vector<32x128xf32>, vector<72x128xf32> -> vector<72x128xf32>
    %466 = vector.broadcast %5 : vector<1x128xf32> to vector<72x128xf32>
    %467 = arith.addf %465, %466 : vector<72x128xf32>
    %c0_128 = arith.constant 0 : index
    %c0_129 = arith.constant 0 : index
    %468 = vector.load %arg5[%c0_128, %c0_129] : memref<72x128xf32, #tpu.memory_space<vmem>>, vector<72x128xf32>
    tpu.vector_store %arg5[%c0_128, %c0_129], %467 {strides = array<i32>} : memref<72x128xf32, #tpu.memory_space<vmem>>, vector<72x128xf32>,
    return
  }
}

</mosaic_0001>

<llo_original>
// kernel: image_captioning_forward.1
$region0: #{image_captioning_forward.1}
  #allocation0 [shape = 'u32[]', space=smem, size = 0x4, offset = 0x4, fixed_abs, tag = 'smem constant byte address 0x4 - core index']
  #allocation1 [shape = 'u32[144,128]{1,0:T(1,128)}', space=vmem, size = 0x12000, scoped, tag = 'internal scratch']
  #allocation2 [shape = 'f32[72,128]{1,0:T(8,128)}', space=vmem, size = 0x9000, scoped, tag = 'scratch operand']
  #allocation3 [shape = 'f32[72,32]{1,0:T(8,128)}', space=vmem, size = 0x9000, scoped, tag = 'scratch operand']
  %s0 = inlined_call_operand.vmem [shape: f32[8,4,256], index: 0, kind: input, shape index: {}]
  %s1 = inlined_call_operand.vmem [shape: s32[64,1], index: 1, kind: input, shape index: {}]
  %s2 = inlined_call_operand.vmem [shape: f32[133,32], index: 2, kind: input, shape index: {}]
  %s3 = inlined_call_operand.vmem [shape: f32[32,256], index: 3, kind: input, shape index: {}]
  %s4 = inlined_call_operand.vmem [shape: f32[99,128], index: 4, kind: input, shape index: {}]
  %s5 = inlined_call_operand.vmem [shape: f32[72,128], index: 5, kind: output, shape index: {}]
  %s6 = sld [smem:[#allocation0]]
  $region30: #{image_captioning_forward.1} parent=0
    _
  %s8 = ssub.s32 1, %s6
  %s9 = scalar_select 0, %s8, %s6
  // Predicated region
  $region2: #{image_captioning_forward.1} parent=0 // pred_check
    _
  $region3: #{image_captioning_forward.1} parent=0 // pred_check_branch
    %11 = sbr.rel (0) target = $region5
  $region4: #{image_captioning_forward.1} parent=0 // pred_region
    _
  $region5: #{image_captioning_forward.1} parent=0 // pred_fallthru
    _
  // Predicated region
  $region6: #{image_captioning_forward.1} parent=0 // pred_check
    _
  $region7: #{image_captioning_forward.1} parent=0 // pred_check_branch
    %13 = sbr.rel (0) target = $region9
  $region8: #{image_captioning_forward.1} parent=0 // pred_region
    _
  $region9: #{image_captioning_forward.1} parent=0 // pred_fallthru
    _
  // Predicated region
  $region10: #{image_captioning_forward.1} parent=0 // pred_check
    _
  $region11: #{image_captioning_forward.1} parent=0 // pred_check_branch
    %15 = sbr.rel (0) target = $region13
  $region12: #{image_captioning_forward.1} parent=0 // pred_region
    _
  $region13: #{image_captioning_forward.1} parent=0 // pred_fallthru
    _
  // Predicated region
  $region14: #{image_captioning_forward.1} parent=0 // pred_check
    _
  $region15: #{image_captioning_forward.1} parent=0 // pred_check_branch
    %17 = sbr.rel (0) target = $region17
  $region16: #{image_captioning_forward.1} parent=0 // pred_region
    _
  $region17: #{image_captioning_forward.1} parent=0 // pred_fallthru
    _
  // Predicated region
  $region18: #{image_captioning_forward.1} parent=0 // pred_check
    _
  $region19: #{image_captioning_forward.1} parent=0 // pred_check_branch
    %19 = sbr.rel (0) target = $region21
  $region20: #{image_captioning_forward.1} parent=0 // pred_region
    _
  $region21: #{image_captioning_forward.1} parent=0 // pred_fallthru
    _
  %v20 = vld [vmem:[%s4] sm:$0xff]
  %v21 = vld [vmem:[%s4 + $0x8] sm:$0xff]
  %v22 = vld [vmem:[%s4 + $0x10] sm:$0xff]
  %v23 = vld [vmem:[%s4 + $0x18] sm:$0xff]
  %v24 = vld [vmem:[%s4 + $0x20] sm:$0xff]
  %v25 = vld [vmem:[%s4 + $0x28] sm:$0xff]
  %v26 = vld [vmem:[%s4 + $0x30] sm:$0xff]
  %v27 = vld [vmem:[%s4 + $0x38] sm:$0xff]
  %v28 = vld [vmem:[%s4 + $0x40] sm:$0xff]
  %v29 = vld [vmem:[%s4 + $0x48] sm:$0xff]
  %v30 = vld [vmem:[%s4 + $0x50] sm:$0xff]
  %v31 = vld [vmem:[%s4 + $0x58] sm:$0xff]
  %v32 = vld [vmem:[%s4 + $0x60] sm:$0x1]
  %v33 = vld [vmem:[%s4 + $0x61] sm:$0x1]
  %v34 = vld [vmem:[%s4 + $0x62] sm:$0x1]
  %v35 = vld [vmem:[%s3] sm:$0xff]
  %v36 = vld [vmem:[%s3 + $0x8] sm:$0xff]
  %v37 = vld [vmem:[%s3 + $0x10] sm:$0xff]
  %v38 = vld [vmem:[%s3 + $0x18] sm:$0xff]
  %v39 = vld [vmem:[%s3 + $0x20] sm:$0xff]
  %v40 = vld [vmem:[%s3 + $0x28] sm:$0xff]
  %v41 = vld [vmem:[%s3 + $0x30] sm:$0xff]
  %v42 = vld [vmem:[%s3 + $0x38] sm:$0xff]
  %v43 = vld [vmem:[%s0] sm:$0xff]
  %v44 = vld [vmem:[%s0 + $0x8] sm:$0xff]
  %v45 = vld [vmem:[%s0 + $0x10] sm:$0xff]
  %v46 = vld [vmem:[%s0 + $0x18] sm:$0xff]
  %v47 = vld [vmem:[%s0 + $0x20] sm:$0xff]
  %v48 = vld [vmem:[%s0 + $0x28] sm:$0xff]
  %v49 = vld [vmem:[%s0 + $0x30] sm:$0xff]
  %v50 = vld [vmem:[%s0 + $0x38] sm:$0xff]
  %v59 = vcombine.high %v43, %v43
  %v60 = vcombine.high %v44, %v44
  %v61 = vcombine.high %v45, %v45
  %v62 = vcombine.high %v46, %v46
  %v63 = vcombine.high %v47, %v47
  %v64 = vcombine.high %v48, %v48
  %v65 = vcombine.high %v49, %v49
  %v66 = vcombine.high %v50, %v50
  %vm75 = vcmask 1043456
  %v76 = vsel %vm75, %v43, 0.0
  %v77 = vsel %vm75, %v59, 0.0
  %v78 = vadd.f32 %v76, %v77
  %79 = vadd.xlane.f32.xlu0 %v78
  %v80 = vpop.xlane.xlu0 %79
  %v81 = vsel %vm75, %v44, 0.0
  %v82 = vsel %vm75, %v60, 0.0
  %v83 = vadd.f32 %v81, %v82
  %84 = vadd.xlane.f32.xlu0 %v83
  %v85 = vpop.xlane.xlu0 %84
  %v86 = vsel %vm75, %v45, 0.0
  %v87 = vsel %vm75, %v61, 0.0
  %v88 = vadd.f32 %v86, %v87
  %89 = vadd.xlane.f32.xlu0 %v88
  %v90 = vpop.xlane.xlu0 %89
  %v91 = vsel %vm75, %v46, 0.0
  %v92 = vsel %vm75, %v62, 0.0
  %v93 = vadd.f32 %v91, %v92
  %94 = vadd.xlane.f32.xlu0 %v93
  %v95 = vpop.xlane.xlu0 %94
  %v96 = vsel %vm75, %v47, 0.0
  %v97 = vsel %vm75, %v63, 0.0
  %v98 = vadd.f32 %v96, %v97
  %99 = vadd.xlane.f32.xlu0 %v98
  %v100 = vpop.xlane.xlu0 %99
  %v101 = vsel %vm75, %v48, 0.0
  %v102 = vsel %vm75, %v64, 0.0
  %v103 = vadd.f32 %v101, %v102
  %104 = vadd.xlane.f32.xlu0 %v103
  %v105 = vpop.xlane.xlu0 %104
  %v106 = vsel %vm75, %v49, 0.0
  %v107 = vsel %vm75, %v65, 0.0
  %v108 = vadd.f32 %v106, %v107
  %109 = vadd.xlane.f32.xlu0 %v108
  %v110 = vpop.xlane.xlu0 %109
  %v111 = vsel %vm75, %v50, 0.0
  %v112 = vsel %vm75, %v66, 0.0
  %v113 = vadd.f32 %v111, %v112
  %114 = vadd.xlane.f32.xlu0 %v113
  %v115 = vpop.xlane.xlu0 %114
  %v116 = vmul.f32 %v80, 0.00390625
  %v117 = vmul.f32 %v85, 0.00390625
  %v118 = vmul.f32 %v90, 0.00390625
  %v119 = vmul.f32 %v95, 0.00390625
  %v120 = vmul.f32 %v100, 0.00390625
  %v121 = vmul.f32 %v105, 0.00390625
  %v122 = vmul.f32 %v110, 0.00390625
  %v123 = vmul.f32 %v115, 0.00390625
  %v124 = vld [vmem:[%s2 + $0x80] sm:$0xf]
  %v125 = vld [vmem:[%s2 + $0x84] sm:$0x1]
  %v126 = vlaneseq
  %v127 = vshrl.u32 %v126, 7
  %v128 = vsub.s32 0, %v127
  %v129 = vrot.slane %v125, %v128
  %v130 = vlaneseq
  %v131 = vshrl.u32 %v130, 7
  %v132 = vsub.s32 0, %v131
  %v133 = vrot.slane %v116, %v132
  %v134 = vlaneseq
  %v135 = vshrl.u32 %v134, 7
  %v136 = vsub.s32 0, %v135
  %v137 = vrot.slane %v117, %v136
  %v138 = vlaneseq
  %v139 = vshrl.u32 %v138, 7
  %v140 = vsub.s32 0, %v139
  %v141 = vrot.slane %v118, %v140
  %v142 = vlaneseq
  %v143 = vshrl.u32 %v142, 7
  %v144 = vsub.s32 0, %v143
  %v145 = vrot.slane %v119, %v144
  %v146 = vlaneseq
  %v147 = vshrl.u32 %v146, 7
  %v148 = vsub.s32 0, %v147
  %v149 = vrot.slane %v120, %v148
  %v150 = vlaneseq
  %v151 = vshrl.u32 %v150, 7
  %v152 = vsub.s32 0, %v151
  %v153 = vrot.slane %v121, %v152
  %v154 = vlaneseq
  %v155 = vshrl.u32 %v154, 7
  %v156 = vsub.s32 0, %v155
  %v157 = vrot.slane %v122, %v156
  %v158 = vlaneseq
  %v159 = vshrl.u32 %v158, 7
  %v160 = vsub.s32 0, %v159
  %v161 = vrot.slane %v123, %v160
  %v162 = vlaneseq
  %v163 = vshrl.u32 %v162, 7
  %v164 = vsub.s32 0, %v163
  %v165 = vrot.slane %v124, %v164
  %168 = vbcast.lane.b32.xlu0 %v165, 256
  %v169 = vpop.permute.xlu0 %168
  %s171 = sor.u32 256, 8
  %172 = vbcast.lane.b32.xlu0 %v165, %s171
  %v173 = vpop.permute.xlu0 %172
  %s175 = sor.u32 256, 16
  %176 = vbcast.lane.b32.xlu0 %v165, %s175
  %v177 = vpop.permute.xlu0 %176
  %s179 = sor.u32 256, 24
  %180 = vbcast.lane.b32.xlu0 %v165, %s179
  %v181 = vpop.permute.xlu0 %180
  %v186 = vmul.f32 %v133, %v169
  %v187 = vmul.f32 %v133, %v173
  %v188 = vmul.f32 %v133, %v177
  %v189 = vmul.f32 %v133, %v181
  %v190 = vmul.f32 %v137, %v169
  %v191 = vmul.f32 %v137, %v173
  %v192 = vmul.f32 %v137, %v177
  %v193 = vmul.f32 %v137, %v181
  %v194 = vmul.f32 %v141, %v169
  %v195 = vmul.f32 %v141, %v173
  %v196 = vmul.f32 %v141, %v177
  %v197 = vmul.f32 %v141, %v181
  %v198 = vmul.f32 %v145, %v169
  %v199 = vmul.f32 %v145, %v173
  %v200 = vmul.f32 %v145, %v177
  %v201 = vmul.f32 %v145, %v181
  %v202 = vmul.f32 %v149, %v169
  %v203 = vmul.f32 %v149, %v173
  %v204 = vmul.f32 %v149, %v177
  %v205 = vmul.f32 %v149, %v181
  %v206 = vmul.f32 %v153, %v169
  %v207 = vmul.f32 %v153, %v173
  %v208 = vmul.f32 %v153, %v177
  %v209 = vmul.f32 %v153, %v181
  %v210 = vmul.f32 %v157, %v169
  %v211 = vmul.f32 %v157, %v173
  %v212 = vmul.f32 %v157, %v177
  %v213 = vmul.f32 %v157, %v181
  %v214 = vmul.f32 %v161, %v169
  %v215 = vmul.f32 %v161, %v173
  %v216 = vmul.f32 %v161, %v177
  %v217 = vmul.f32 %v161, %v181
  %250 = vset.pattern.permute.xlu0 0
  %251 = vperm.xlu0 %250, %v186
  %v252 = vpop.permute.xlu0 %251
  %253 = vset.pattern.permute.xlu0 0
  %254 = vperm.xlu0 %253, %v187
  %v255 = vpop.permute.xlu0 %254
  %256 = vset.pattern.permute.xlu0 0
  %257 = vperm.xlu0 %256, %v188
  %v258 = vpop.permute.xlu0 %257
  %259 = vset.pattern.permute.xlu0 0
  %260 = vperm.xlu0 %259, %v189
  %v261 = vpop.permute.xlu0 %260
  %262 = vset.pattern.permute.xlu0 0
  %263 = vperm.xlu0 %262, %v190
  %v264 = vpop.permute.xlu0 %263
  %265 = vset.pattern.permute.xlu0 0
  %266 = vperm.xlu0 %265, %v191
  %v267 = vpop.permute.xlu0 %266
  %268 = vset.pattern.permute.xlu0 0
  %269 = vperm.xlu0 %268, %v192
  %v270 = vpop.permute.xlu0 %269
  %271 = vset.pattern.permute.xlu0 0
  %272 = vperm.xlu0 %271, %v193
  %v273 = vpop.permute.xlu0 %272
  %274 = vset.pattern.permute.xlu0 0
  %275 = vperm.xlu0 %274, %v194
  %v276 = vpop.permute.xlu0 %275
  %277 = vset.pattern.permute.xlu0 0
  %278 = vperm.xlu0 %277, %v195
  %v279 = vpop.permute.xlu0 %278
  %280 = vset.pattern.permute.xlu0 0
  %281 = vperm.xlu0 %280, %v196
  %v282 = vpop.permute.xlu0 %281
  %283 = vset.pattern.permute.xlu0 0
  %284 = vperm.xlu0 %283, %v197
  %v285 = vpop.permute.xlu0 %284
  %286 = vset.pattern.permute.xlu0 0
  %287 = vperm.xlu0 %286, %v198
  %v288 = vpop.permute.xlu0 %287
  %289 = vset.pattern.permute.xlu0 0
  %290 = vperm.xlu0 %289, %v199
  %v291 = vpop.permute.xlu0 %290
  %292 = vset.pattern.permute.xlu0 0
  %293 = vperm.xlu0 %292, %v200
  %v294 = vpop.permute.xlu0 %293
  %295 = vset.pattern.permute.xlu0 0
  %296 = vperm.xlu0 %295, %v201
  %v297 = vpop.permute.xlu0 %296
  %298 = vset.pattern.permute.xlu0 0
  %299 = vperm.xlu0 %298, %v202
  %v300 = vpop.permute.xlu0 %299
  %301 = vset.pattern.permute.xlu0 0
  %302 = vperm.xlu0 %301, %v203
  %v303 = vpop.permute.xlu0 %302
  %304 = vset.pattern.permute.xlu0 0
  %305 = vperm.xlu0 %304, %v204
  %v306 = vpop.permute.xlu0 %305
  %307 = vset.pattern.permute.xlu0 0
  %308 = vperm.xlu0 %307, %v205
  %v309 = vpop.permute.xlu0 %308
  %310 = vset.pattern.permute.xlu0 0
  %311 = vperm.xlu0 %310, %v206
  %v312 = vpop.permute.xlu0 %311
  %313 = vset.pattern.permute.xlu0 0
  %314 = vperm.xlu0 %313, %v207
  %v315 = vpop.permute.xlu0 %314
  %316 = vset.pattern.permute.xlu0 0
  %317 = vperm.xlu0 %316, %v208
  %v318 = vpop.permute.xlu0 %317
  %319 = vset.pattern.permute.xlu0 0
  %320 = vperm.xlu0 %319, %v209
  %v321 = vpop.permute.xlu0 %320
  %322 = vset.pattern.permute.xlu0 0
  %323 = vperm.xlu0 %322, %v210
  %v324 = vpop.permute.xlu0 %323
  %325 = vset.pattern.permute.xlu0 0
  %326 = vperm.xlu0 %325, %v211
  %v327 = vpop.permute.xlu0 %326
  %328 = vset.pattern.permute.xlu0 0
  %329 = vperm.xlu0 %328, %v212
  %v330 = vpop.permute.xlu0 %329
  %331 = vset.pattern.permute.xlu0 0
  %332 = vperm.xlu0 %331, %v213
  %v333 = vpop.permute.xlu0 %332
  %334 = vset.pattern.permute.xlu0 0
  %335 = vperm.xlu0 %334, %v214
  %v336 = vpop.permute.xlu0 %335
  %337 = vset.pattern.permute.xlu0 0
  %338 = vperm.xlu0 %337, %v215
  %v339 = vpop.permute.xlu0 %338
  %340 = vset.pattern.permute.xlu0 0
  %341 = vperm.xlu0 %340, %v216
  %v342 = vpop.permute.xlu0 %341
  %343 = vset.pattern.permute.xlu0 0
  %344 = vperm.xlu0 %343, %v217
  %v345 = vpop.permute.xlu0 %344
  %v346 = vlaneseq
  %v347 = vand.u32 %v346, 127
  %v348 = vlaneseq
  %v349 = vshrl.u32 %v348, 7
  %v350 = vsub.s32 %v347, %v349
  %v351 = vrot.slane %v252, %v350
  %v352 = vadd.s32 %v347, 4294967288
  %v353 = vlaneseq
  %v354 = vshrl.u32 %v353, 7
  %v355 = vsub.s32 %v352, %v354
  %v356 = vrot.slane %v255, %v355
  %vm357 = vcmask 130112
  %v358 = vsel %vm357, %v356, %v351
  %v359 = vadd.s32 %v347, 4294967280
  %v360 = vlaneseq
  %v361 = vshrl.u32 %v360, 7
  %v362 = vsub.s32 %v359, %v361
  %v363 = vrot.slane %v258, %v362
  %vm364 = vcmask 195712
  %v365 = vsel %vm364, %v363, %v358
  %v366 = vadd.s32 %v347, 4294967272
  %v367 = vlaneseq
  %v368 = vshrl.u32 %v367, 7
  %v369 = vsub.s32 %v366, %v368
  %v370 = vrot.slane %v261, %v369
  %vm371 = vcmask 261312
  %v372 = vsel %vm371, %v370, %v365
  %v373 = vlaneseq
  %v374 = vshrl.u32 %v373, 7
  %v375 = vsub.s32 %v347, %v374
  %v376 = vrot.slane %v264, %v375
  %v377 = vlaneseq
  %v378 = vshrl.u32 %v377, 7
  %v379 = vsub.s32 %v352, %v378
  %v380 = vrot.slane %v267, %v379
  %v381 = vsel %vm357, %v380, %v376
  %v382 = vlaneseq
  %v383 = vshrl.u32 %v382, 7
  %v384 = vsub.s32 %v359, %v383
  %v385 = vrot.slane %v270, %v384
  %v386 = vsel %vm364, %v385, %v381
  %v387 = vlaneseq
  %v388 = vshrl.u32 %v387, 7
  %v389 = vsub.s32 %v366, %v388
  %v390 = vrot.slane %v273, %v389
  %v391 = vsel %vm371, %v390, %v386
  %v392 = vlaneseq
  %v393 = vshrl.u32 %v392, 7
  %v394 = vsub.s32 %v347, %v393
  %v395 = vrot.slane %v276, %v394
  %v396 = vlaneseq
  %v397 = vshrl.u32 %v396, 7
  %v398 = vsub.s32 %v352, %v397
  %v399 = vrot.slane %v279, %v398
  %v400 = vsel %vm357, %v399, %v395
  %v401 = vlaneseq
  %v402 = vshrl.u32 %v401, 7
  %v403 = vsub.s32 %v359, %v402
  %v404 = vrot.slane %v282, %v403
  %v405 = vsel %vm364, %v404, %v400
  %v406 = vlaneseq
  %v407 = vshrl.u32 %v406, 7
  %v408 = vsub.s32 %v366, %v407
  %v409 = vrot.slane %v285, %v408
  %v410 = vsel %vm371, %v409, %v405
  %v411 = vlaneseq
  %v412 = vshrl.u32 %v411, 7
  %v413 = vsub.s32 %v347, %v412
  %v414 = vrot.slane %v288, %v413
  %v415 = vlaneseq
  %v416 = vshrl.u32 %v415, 7
  %v417 = vsub.s32 %v352, %v416
  %v418 = vrot.slane %v291, %v417
  %v419 = vsel %vm357, %v418, %v414
  %v420 = vlaneseq
  %v421 = vshrl.u32 %v420, 7
  %v422 = vsub.s32 %v359, %v421
  %v423 = vrot.slane %v294, %v422
  %v424 = vsel %vm364, %v423, %v419
  %v425 = vlaneseq
  %v426 = vshrl.u32 %v425, 7
  %v427 = vsub.s32 %v366, %v426
  %v428 = vrot.slane %v297, %v427
  %v429 = vsel %vm371, %v428, %v424
  %v430 = vlaneseq
  %v431 = vshrl.u32 %v430, 7
  %v432 = vsub.s32 %v347, %v431
  %v433 = vrot.slane %v300, %v432
  %v434 = vlaneseq
  %v435 = vshrl.u32 %v434, 7
  %v436 = vsub.s32 %v352, %v435
  %v437 = vrot.slane %v303, %v436
  %v438 = vsel %vm357, %v437, %v433
  %v439 = vlaneseq
  %v440 = vshrl.u32 %v439, 7
  %v441 = vsub.s32 %v359, %v440
  %v442 = vrot.slane %v306, %v441
  %v443 = vsel %vm364, %v442, %v438
  %v444 = vlaneseq
  %v445 = vshrl.u32 %v444, 7
  %v446 = vsub.s32 %v366, %v445
  %v447 = vrot.slane %v309, %v446
  %v448 = vsel %vm371, %v447, %v443
  %v449 = vlaneseq
  %v450 = vshrl.u32 %v449, 7
  %v451 = vsub.s32 %v347, %v450
  %v452 = vrot.slane %v312, %v451
  %v453 = vlaneseq
  %v454 = vshrl.u32 %v453, 7
  %v455 = vsub.s32 %v352, %v454
  %v456 = vrot.slane %v315, %v455
  %v457 = vsel %vm357, %v456, %v452
  %v458 = vlaneseq
  %v459 = vshrl.u32 %v458, 7
  %v460 = vsub.s32 %v359, %v459
  %v461 = vrot.slane %v318, %v460
  %v462 = vsel %vm364, %v461, %v457
  %v463 = vlaneseq
  %v464 = vshrl.u32 %v463, 7
  %v465 = vsub.s32 %v366, %v464
  %v466 = vrot.slane %v321, %v465
  %v467 = vsel %vm371, %v466, %v462
  %v468 = vlaneseq
  %v469 = vshrl.u32 %v468, 7
  %v470 = vsub.s32 %v347, %v469
  %v471 = vrot.slane %v324, %v470
  %v472 = vlaneseq
  %v473 = vshrl.u32 %v472, 7
  %v474 = vsub.s32 %v352, %v473
  %v475 = vrot.slane %v327, %v474
  %v476 = vsel %vm357, %v475, %v471
  %v477 = vlaneseq
  %v478 = vshrl.u32 %v477, 7
  %v479 = vsub.s32 %v359, %v478
  %v480 = vrot.slane %v330, %v479
  %v481 = vsel %vm364, %v480, %v476
  %v482 = vlaneseq
  %v483 = vshrl.u32 %v482, 7
  %v484 = vsub.s32 %v366, %v483
  %v485 = vrot.slane %v333, %v484
  %v486 = vsel %vm371, %v485, %v481
  %v487 = vlaneseq
  %v488 = vshrl.u32 %v487, 7
  %v489 = vsub.s32 %v347, %v488
  %v490 = vrot.slane %v336, %v489
  %v491 = vlaneseq
  %v492 = vshrl.u32 %v491, 7
  %v493 = vsub.s32 %v352, %v492
  %v494 = vrot.slane %v339, %v493
  %v495 = vsel %vm357, %v494, %v490
  %v496 = vlaneseq
  %v497 = vshrl.u32 %v496, 7
  %v498 = vsub.s32 %v359, %v497
  %v499 = vrot.slane %v342, %v498
  %v500 = vsel %vm364, %v499, %v495
  %v501 = vlaneseq
  %v502 = vshrl.u32 %v501, 7
  %v503 = vsub.s32 %v366, %v502
  %v504 = vrot.slane %v345, %v503
  %v505 = vsel %vm371, %v504, %v500
  %vm506 = vcmask 1041409
  %v507 = vsel %vm506, %v391, %v372
  %vm508 = vcmask 1042434
  %v509 = vsel %vm508, %v410, %v507
  %vm510 = vcmask 1043459
  %v511 = vsel %vm510, %v429, %v509
  %vm512 = vcmask 1044484
  %v513 = vsel %vm512, %v448, %v511
  %vm514 = vcmask 1045509
  %v515 = vsel %vm514, %v467, %v513
  %vm516 = vcmask 1046534
  %v517 = vsel %vm516, %v486, %v515
  %vm518 = vcmask 1047559
  %v519 = vsel %vm518, %v505, %v517
  %v521 = vadd.f32 %v129, %v519
  %v522 = vlaneseq
  %v523 = vshrl.u32 %v522, 7
  %v524 = vsub.s32 1, %v523
  %v525 = vrot.slane %v116, %v524
  %v526 = vlaneseq
  %v527 = vshrl.u32 %v526, 7
  %v528 = vsub.s32 1, %v527
  %v529 = vrot.slane %v117, %v528
  %v530 = vlaneseq
  %v531 = vshrl.u32 %v530, 7
  %v532 = vsub.s32 1, %v531
  %v533 = vrot.slane %v118, %v532
  %v534 = vlaneseq
  %v535 = vshrl.u32 %v534, 7
  %v536 = vsub.s32 1, %v535
  %v537 = vrot.slane %v119, %v536
  %v538 = vlaneseq
  %v539 = vshrl.u32 %v538, 7
  %v540 = vsub.s32 1, %v539
  %v541 = vrot.slane %v120, %v540
  %v542 = vlaneseq
  %v543 = vshrl.u32 %v542, 7
  %v544 = vsub.s32 1, %v543
  %v545 = vrot.slane %v121, %v544
  %v546 = vlaneseq
  %v547 = vshrl.u32 %v546, 7
  %v548 = vsub.s32 1, %v547
  %v549 = vrot.slane %v122, %v548
  %v550 = vlaneseq
  %v551 = vshrl.u32 %v550, 7
  %v552 = vsub.s32 1, %v551
  %v553 = vrot.slane %v123, %v552
  %v554 = vlaneseq
  %v555 = vshrl.u32 %v554, 7
  %v556 = vsub.s32 1, %v555
  %v557 = vrot.slane %v124, %v556
  %560 = vbcast.lane.b32.xlu0 %v557, 256
  %v561 = vpop.permute.xlu0 %560
  %s563 = sor.u32 256, 8
  %564 = vbcast.lane.b32.xlu0 %v557, %s563
  %v565 = vpop.permute.xlu0 %564
  %s567 = sor.u32 256, 16
  %568 = vbcast.lane.b32.xlu0 %v557, %s567
  %v569 = vpop.permute.xlu0 %568
  %s571 = sor.u32 256, 24
  %572 = vbcast.lane.b32.xlu0 %v557, %s571
  %v573 = vpop.permute.xlu0 %572
  %v578 = vmul.f32 %v525, %v561
  %v579 = vmul.f32 %v525, %v565
  %v580 = vmul.f32 %v525, %v569
  %v581 = vmul.f32 %v525, %v573
  %v582 = vmul.f32 %v529, %v561
  %v583 = vmul.f32 %v529, %v565
  %v584 = vmul.f32 %v529, %v569
  %v585 = vmul.f32 %v529, %v573
  %v586 = vmul.f32 %v533, %v561
  %v587 = vmul.f32 %v533, %v565
  %v588 = vmul.f32 %v533, %v569
  %v589 = vmul.f32 %v533, %v573
  %v590 = vmul.f32 %v537, %v561
  %v591 = vmul.f32 %v537, %v565
  %v592 = vmul.f32 %v537, %v569
  %v593 = vmul.f32 %v537, %v573
  %v594 = vmul.f32 %v541, %v561
  %v595 = vmul.f32 %v541, %v565
  %v596 = vmul.f32 %v541, %v569
  %v597 = vmul.f32 %v541, %v573
  %v598 = vmul.f32 %v545, %v561
  %v599 = vmul.f32 %v545, %v565
  %v600 = vmul.f32 %v545, %v569
  %v601 = vmul.f32 %v545, %v573
  %v602 = vmul.f32 %v549, %v561
  %v603 = vmul.f32 %v549, %v565
  %v604 = vmul.f32 %v549, %v569
  %v605 = vmul.f32 %v549, %v573
  %v606 = vmul.f32 %v553, %v561
  %v607 = vmul.f32 %v553, %v565
  %v608 = vmul.f32 %v553, %v569
  %v609 = vmul.f32 %v553, %v573
  %642 = vset.pattern.permute.xlu0 0
  %643 = vperm.xlu0 %642, %v578
  %v644 = vpop.permute.xlu0 %643
  %645 = vset.pattern.permute.xlu0 0
  %646 = vperm.xlu0 %645, %v579
  %v647 = vpop.permute.xlu0 %646
  %648 = vset.pattern.permute.xlu0 0
  %649 = vperm.xlu0 %648, %v580
  %v650 = vpop.permute.xlu0 %649
  %651 = vset.pattern.permute.xlu0 0
  %652 = vperm.xlu0 %651, %v581
  %v653 = vpop.permute.xlu0 %652
  %654 = vset.pattern.permute.xlu0 0
  %655 = vperm.xlu0 %654, %v582
  %v656 = vpop.permute.xlu0 %655
  %657 = vset.pattern.permute.xlu0 0
  %658 = vperm.xlu0 %657, %v583
  %v659 = vpop.permute.xlu0 %658
  %660 = vset.pattern.permute.xlu0 0
  %661 = vperm.xlu0 %660, %v584
  %v662 = vpop.permute.xlu0 %661
  %663 = vset.pattern.permute.xlu0 0
  %664 = vperm.xlu0 %663, %v585
  %v665 = vpop.permute.xlu0 %664
  %666 = vset.pattern.permute.xlu0 0
  %667 = vperm.xlu0 %666, %v586
  %v668 = vpop.permute.xlu0 %667
  %669 = vset.pattern.permute.xlu0 0
  %670 = vperm.xlu0 %669, %v587
  %v671 = vpop.permute.xlu0 %670
  %672 = vset.pattern.permute.xlu0 0
  %673 = vperm.xlu0 %672, %v588
  %v674 = vpop.permute.xlu0 %673
  %675 = vset.pattern.permute.xlu0 0
  %676 = vperm.xlu0 %675, %v589
  %v677 = vpop.permute.xlu0 %676
  %678 = vset.pattern.permute.xlu0 0
  %679 = vperm.xlu0 %678, %v590
  %v680 = vpop.permute.xlu0 %679
  %681 = vset.pattern.permute.xlu0 0
  %682 = vperm.xlu0 %681, %v591
  %v683 = vpop.permute.xlu0 %682
  %684 = vset.pattern.permute.xlu0 0
  %685 = vperm.xlu0 %684, %v592
  %v686 = vpop.permute.xlu0 %685
  %687 = vset.pattern.permute.xlu0 0
  %688 = vperm.xlu0 %687, %v593
  %v689 = vpop.permute.xlu0 %688
  %690 = vset.pattern.permute.xlu0 0
  %691 = vperm.xlu0 %690, %v594
  %v692 = vpop.permute.xlu0 %691
  %693 = vset.pattern.permute.xlu0 0
  %694 = vperm.xlu0 %693, %v595
  %v695 = vpop.permute.xlu0 %694
  %696 = vset.pattern.permute.xlu0 0
  %697 = vperm.xlu0 %696, %v596
  %v698 = vpop.permute.xlu0 %697
  %699 = vset.pattern.permute.xlu0 0
  %700 = vperm.xlu0 %699, %v597
  %v701 = vpop.permute.xlu0 %700
  %702 = vset.pattern.permute.xlu0 0
  %703 = vperm.xlu0 %702, %v598
  %v704 = vpop.permute.xlu0 %703
  %705 = vset.pattern.permute.xlu0 0
  %706 = vperm.xlu0 %705, %v599
  %v707 = vpop.permute.xlu0 %706
  %708 = vset.pattern.permute.xlu0 0
  %709 = vperm.xlu0 %708, %v600
  %v710 = vpop.permute.xlu0 %709
  %711 = vset.pattern.permute.xlu0 0
  %712 = vperm.xlu0 %711, %v601
  %v713 = vpop.permute.xlu0 %712
  %714 = vset.pattern.permute.xlu0 0
  %715 = vperm.xlu0 %714, %v602
  %v716 = vpop.permute.xlu0 %715
  %717 = vset.pattern.permute.xlu0 0
  %718 = vperm.xlu0 %717, %v603
  %v719 = vpop.permute.xlu0 %718
  %720 = vset.pattern.permute.xlu0 0
  %721 = vperm.xlu0 %720, %v604
  %v722 = vpop.permute.xlu0 %721
  %723 = vset.pattern.permute.xlu0 0
  %724 = vperm.xlu0 %723, %v605
  %v725 = vpop.permute.xlu0 %724
  %726 = vset.pattern.permute.xlu0 0
  %727 = vperm.xlu0 %726, %v606
  %v728 = vpop.permute.xlu0 %727
  %729 = vset.pattern.permute.xlu0 0
  %730 = vperm.xlu0 %729, %v607
  %v731 = vpop.permute.xlu0 %730
  %732 = vset.pattern.permute.xlu0 0
  %733 = vperm.xlu0 %732, %v608
  %v734 = vpop.permute.xlu0 %733
  %735 = vset.pattern.permute.xlu0 0
  %736 = vperm.xlu0 %735, %v609
  %v737 = vpop.permute.xlu0 %736
  %v738 = vlaneseq
  %v739 = vshrl.u32 %v738, 7
  %v740 = vsub.s32 %v347, %v739
  %v741 = vrot.slane %v644, %v740
  %v742 = vlaneseq
  %v743 = vshrl.u32 %v742, 7
  %v744 = vsub.s32 %v352, %v743
  %v745 = vrot.slane %v647, %v744
  %v746 = vsel %vm357, %v745, %v741
  %v747 = vlaneseq
  %v748 = vshrl.u32 %v747, 7
  %v749 = vsub.s32 %v359, %v748
  %v750 = vrot.slane %v650, %v749
  %v751 = vsel %vm364, %v750, %v746
  %v752 = vlaneseq
  %v753 = vshrl.u32 %v752, 7
  %v754 = vsub.s32 %v366, %v753
  %v755 = vrot.slane %v653, %v754
  %v756 = vsel %vm371, %v755, %v751
  %v757 = vlaneseq
  %v758 = vshrl.u32 %v757, 7
  %v759 = vsub.s32 %v347, %v758
  %v760 = vrot.slane %v656, %v759
  %v761 = vlaneseq
  %v762 = vshrl.u32 %v761, 7
  %v763 = vsub.s32 %v352, %v762
  %v764 = vrot.slane %v659, %v763
  %v765 = vsel %vm357, %v764, %v760
  %v766 = vlaneseq
  %v767 = vshrl.u32 %v766, 7
  %v768 = vsub.s32 %v359, %v767
  %v769 = vrot.slane %v662, %v768
  %v770 = vsel %vm364, %v769, %v765
  %v771 = vlaneseq
  %v772 = vshrl.u32 %v771, 7
  %v773 = vsub.s32 %v366, %v772
  %v774 = vrot.slane %v665, %v773
  %v775 = vsel %vm371, %v774, %v770
  %v776 = vlaneseq
  %v777 = vshrl.u32 %v776, 7
  %v778 = vsub.s32 %v347, %v777
  %v779 = vrot.slane %v668, %v778
  %v780 = vlaneseq
  %v781 = vshrl.u32 %v780, 7
  %v782 = vsub.s32 %v352, %v781
  %v783 = vrot.slane %v671, %v782
  %v784 = vsel %vm357, %v783, %v779
  %v785 = vlaneseq
  %v786 = vshrl.u32 %v785, 7
  %v787 = vsub.s32 %v359, %v786
  %v788 = vrot.slane %v674, %v787
  %v789 = vsel %vm364, %v788, %v784
  %v790 = vlaneseq
  %v791 = vshrl.u32 %v790, 7
  %v792 = vsub.s32 %v366, %v791
  %v793 = vrot.slane %v677, %v792
  %v794 = vsel %vm371, %v793, %v789
  %v795 = vlaneseq
  %v796 = vshrl.u32 %v795, 7
  %v797 = vsub.s32 %v347, %v796
  %v798 = vrot.slane %v680, %v797
  %v799 = vlaneseq
  %v800 = vshrl.u32 %v799, 7
  %v801 = vsub.s32 %v352, %v800
  %v802 = vrot.slane %v683, %v801
  %v803 = vsel %vm357, %v802, %v798
  %v804 = vlaneseq
  %v805 = vshrl.u32 %v804, 7
  %v806 = vsub.s32 %v359, %v805
  %v807 = vrot.slane %v686, %v806
  %v808 = vsel %vm364, %v807, %v803
  %v809 = vlaneseq
  %v810 = vshrl.u32 %v809, 7
  %v811 = vsub.s32 %v366, %v810
  %v812 = vrot.slane %v689, %v811
  %v813 = vsel %vm371, %v812, %v808
  %v814 = vlaneseq
  %v815 = vshrl.u32 %v814, 7
  %v816 = vsub.s32 %v347, %v815
  %v817 = vrot.slane %v692, %v816
  %v818 = vlaneseq
  %v819 = vshrl.u32 %v818, 7
  %v820 = vsub.s32 %v352, %v819
  %v821 = vrot.slane %v695, %v820
  %v822 = vsel %vm357, %v821, %v817
  %v823 = vlaneseq
  %v824 = vshrl.u32 %v823, 7
  %v825 = vsub.s32 %v359, %v824
  %v826 = vrot.slane %v698, %v825
  %v827 = vsel %vm364, %v826, %v822
  %v828 = vlaneseq
  %v829 = vshrl.u32 %v828, 7
  %v830 = vsub.s32 %v366, %v829
  %v831 = vrot.slane %v701, %v830
  %v832 = vsel %vm371, %v831, %v827
  %v833 = vlaneseq
  %v834 = vshrl.u32 %v833, 7
  %v835 = vsub.s32 %v347, %v834
  %v836 = vrot.slane %v704, %v835
  %v837 = vlaneseq
  %v838 = vshrl.u32 %v837, 7
  %v839 = vsub.s32 %v352, %v838
  %v840 = vrot.slane %v707, %v839
  %v841 = vsel %vm357, %v840, %v836
  %v842 = vlaneseq
  %v843 = vshrl.u32 %v842, 7
  %v844 = vsub.s32 %v359, %v843
  %v845 = vrot.slane %v710, %v844
  %v846 = vsel %vm364, %v845, %v841
  %v847 = vlaneseq
  %v848 = vshrl.u32 %v847, 7
  %v849 = vsub.s32 %v366, %v848
  %v850 = vrot.slane %v713, %v849
  %v851 = vsel %vm371, %v850, %v846
  %v852 = vlaneseq
  %v853 = vshrl.u32 %v852, 7
  %v854 = vsub.s32 %v347, %v853
  %v855 = vrot.slane %v716, %v854
  %v856 = vlaneseq
  %v857 = vshrl.u32 %v856, 7
  %v858 = vsub.s32 %v352, %v857
  %v859 = vrot.slane %v719, %v858
  %v860 = vsel %vm357, %v859, %v855
  %v861 = vlaneseq
  %v862 = vshrl.u32 %v861, 7
  %v863 = vsub.s32 %v359, %v862
  %v864 = vrot.slane %v722, %v863
  %v865 = vsel %vm364, %v864, %v860
  %v866 = vlaneseq
  %v867 = vshrl.u32 %v866, 7
  %v868 = vsub.s32 %v366, %v867
  %v869 = vrot.slane %v725, %v868
  %v870 = vsel %vm371, %v869, %v865
  %v871 = vlaneseq
  %v872 = vshrl.u32 %v871, 7
  %v873 = vsub.s32 %v347, %v872
  %v874 = vrot.slane %v728, %v873
  %v875 = vlaneseq
  %v876 = vshrl.u32 %v875, 7
  %v877 = vsub.s32 %v352, %v876
  %v878 = vrot.slane %v731, %v877
  %v879 = vsel %vm357, %v878, %v874
  %v880 = vlaneseq
  %v881 = vshrl.u32 %v880, 7
  %v882 = vsub.s32 %v359, %v881
  %v883 = vrot.slane %v734, %v882
  %v884 = vsel %vm364, %v883, %v879
  %v885 = vlaneseq
  %v886 = vshrl.u32 %v885, 7
  %v887 = vsub.s32 %v366, %v886
  %v888 = vrot.slane %v737, %v887
  %v889 = vsel %vm371, %v888, %v884
  %v890 = vsel %vm506, %v775, %v756
  %v891 = vsel %vm508, %v794, %v890
  %v892 = vsel %vm510, %v813, %v891
  %v893 = vsel %vm512, %v832, %v892
  %v894 = vsel %vm514, %v851, %v893
  %v895 = vsel %vm516, %v870, %v894
  %v896 = vsel %vm518, %v889, %v895
  %v898 = vadd.f32 %v521, %v896
  %v899 = vlaneseq
  %v900 = vshrl.u32 %v899, 7
  %v901 = vsub.s32 2, %v900
  %v902 = vrot.slane %v116, %v901
  %v903 = vlaneseq
  %v904 = vshrl.u32 %v903, 7
  %v905 = vsub.s32 2, %v904
  %v906 = vrot.slane %v117, %v905
  %v907 = vlaneseq
  %v908 = vshrl.u32 %v907, 7
  %v909 = vsub.s32 2, %v908
  %v910 = vrot.slane %v118, %v909
  %v911 = vlaneseq
  %v912 = vshrl.u32 %v911, 7
  %v913 = vsub.s32 2, %v912
  %v914 = vrot.slane %v119, %v913
  %v915 = vlaneseq
  %v916 = vshrl.u32 %v915, 7
  %v917 = vsub.s32 2, %v916
  %v918 = vrot.slane %v120, %v917
  %v919 = vlaneseq
  %v920 = vshrl.u32 %v919, 7
  %v921 = vsub.s32 2, %v920
  %v922 = vrot.slane %v121, %v921
  %v923 = vlaneseq
  %v924 = vshrl.u32 %v923, 7
  %v925 = vsub.s32 2, %v924
  %v926 = vrot.slane %v122, %v925
  %v927 = vlaneseq
  %v928 = vshrl.u32 %v927, 7
  %v929 = vsub.s32 2, %v928
  %v930 = vrot.slane %v123, %v929
  %v931 = vlaneseq
  %v932 = vshrl.u32 %v931, 7
  %v933 = vsub.s32 2, %v932
  %v934 = vrot.slane %v124, %v933
  %937 = vbcast.lane.b32.xlu0 %v934, 256
  %v938 = vpop.permute.xlu0 %937
  %s940 = sor.u32 256, 8
  %941 = vbcast.lane.b32.xlu0 %v934, %s940
  %v942 = vpop.permute.xlu0 %941
  %s944 = sor.u32 256, 16
  %945 = vbcast.lane.b32.xlu0 %v934, %s944
  %v946 = vpop.permute.xlu0 %945
  %s948 = sor.u32 256, 24
  %949 = vbcast.lane.b32.xlu0 %v934, %s948
  %v950 = vpop.permute.xlu0 %949
  %v955 = vmul.f32 %v902, %v938
  %v956 = vmul.f32 %v902, %v942
  %v957 = vmul.f32 %v902, %v946
  %v958 = vmul.f32 %v902, %v950
  %v959 = vmul.f32 %v906, %v938
  %v960 = vmul.f32 %v906, %v942
  %v961 = vmul.f32 %v906, %v946
  %v962 = vmul.f32 %v906, %v950
  %v963 = vmul.f32 %v910, %v938
  %v964 = vmul.f32 %v910, %v942
  %v965 = vmul.f32 %v910, %v946
  %v966 = vmul.f32 %v910, %v950
  %v967 = vmul.f32 %v914, %v938
  %v968 = vmul.f32 %v914, %v942
  %v969 = vmul.f32 %v914, %v946
  %v970 = vmul.f32 %v914, %v950
  %v971 = vmul.f32 %v918, %v938
  %v972 = vmul.f32 %v918, %v942
  %v973 = vmul.f32 %v918, %v946
  %v974 = vmul.f32 %v918, %v950
  %v975 = vmul.f32 %v922, %v938
  %v976 = vmul.f32 %v922, %v942
  %v977 = vmul.f32 %v922, %v946
  %v978 = vmul.f32 %v922, %v950
  %v979 = vmul.f32 %v926, %v938
  %v980 = vmul.f32 %v926, %v942
  %v981 = vmul.f32 %v926, %v946
  %v982 = vmul.f32 %v926, %v950
  %v983 = vmul.f32 %v930, %v938
  %v984 = vmul.f32 %v930, %v942
  %v985 = vmul.f32 %v930, %v946
  %v986 = vmul.f32 %v930, %v950
  %1019 = vset.pattern.permute.xlu0 0
  %1020 = vperm.xlu0 %1019, %v955
  %v1021 = vpop.permute.xlu0 %1020
  %1022 = vset.pattern.permute.xlu0 0
  %1023 = vperm.xlu0 %1022, %v956
  %v1024 = vpop.permute.xlu0 %1023
  %1025 = vset.pattern.permute.xlu0 0
  %1026 = vperm.xlu0 %1025, %v957
  %v1027 = vpop.permute.xlu0 %1026
  %1028 = vset.pattern.permute.xlu0 0
  %1029 = vperm.xlu0 %1028, %v958
  %v1030 = vpop.permute.xlu0 %1029
  %1031 = vset.pattern.permute.xlu0 0
  %1032 = vperm.xlu0 %1031, %v959
  %v1033 = vpop.permute.xlu0 %1032
  %1034 = vset.pattern.permute.xlu0 0
  %1035 = vperm.xlu0 %1034, %v960
  %v1036 = vpop.permute.xlu0 %1035
  %1037 = vset.pattern.permute.xlu0 0
  %1038 = vperm.xlu0 %1037, %v961
  %v1039 = vpop.permute.xlu0 %1038
  %1040 = vset.pattern.permute.xlu0 0
  %1041 = vperm.xlu0 %1040, %v962
  %v1042 = vpop.permute.xlu0 %1041
  %1043 = vset.pattern.permute.xlu0 0
  %1044 = vperm.xlu0 %1043, %v963
  %v1045 = vpop.permute.xlu0 %1044
  %1046 = vset.pattern.permute.xlu0 0
  %1047 = vperm.xlu0 %1046, %v964
  %v1048 = vpop.permute.xlu0 %1047
  %1049 = vset.pattern.permute.xlu0 0
  %1050 = vperm.xlu0 %1049, %v965
  %v1051 = vpop.permute.xlu0 %1050
  %1052 = vset.pattern.permute.xlu0 0
  %1053 = vperm.xlu0 %1052, %v966
  %v1054 = vpop.permute.xlu0 %1053
  %1055 = vset.pattern.permute.xlu0 0
  %1056 = vperm.xlu0 %1055, %v967
  %v1057 = vpop.permute.xlu0 %1056
  %1058 = vset.pattern.permute.xlu0 0
  %1059 = vperm.xlu0 %1058, %v968
  %v1060 = vpop.permute.xlu0 %1059
  %1061 = vset.pattern.permute.xlu0 0
  %1062 = vperm.xlu0 %1061, %v969
  %v1063 = vpop.permute.xlu0 %1062
  %1064 = vset.pattern.permute.xlu0 0
  %1065 = vperm.xlu0 %1064, %v970
  %v1066 = vpop.permute.xlu0 %1065
  %1067 = vset.pattern.permute.xlu0 0
  %1068 = vperm.xlu0 %1067, %v971
  %v1069 = vpop.permute.xlu0 %1068
  %1070 = vset.pattern.permute.xlu0 0
  %1071 = vperm.xlu0 %1070, %v972
  %v1072 = vpop.permute.xlu0 %1071
  %1073 = vset.pattern.permute.xlu0 0
  %1074 = vperm.xlu0 %1073, %v973
  %v1075 = vpop.permute.xlu0 %1074
  %1076 = vset.pattern.permute.xlu0 0
  %1077 = vperm.xlu0 %1076, %v974
  %v1078 = vpop.permute.xlu0 %1077
  %1079 = vset.pattern.permute.xlu0 0
  %1080 = vperm.xlu0 %1079, %v975
  %v1081 = vpop.permute.xlu0 %1080
  %1082 = vset.pattern.permute.xlu0 0
  %1083 = vperm.xlu0 %1082, %v976
  %v1084 = vpop.permute.xlu0 %1083
  %1085 = vset.pattern.permute.xlu0 0
  %1086 = vperm.xlu0 %1085, %v977
  %v1087 = vpop.permute.xlu0 %1086
  %1088 = vset.pattern.permute.xlu0 0
  %1089 = vperm.xlu0 %1088, %v978
  %v1090 = vpop.permute.xlu0 %1089
  %1091 = vset.pattern.permute.xlu0 0
  %1092 = vperm.xlu0 %1091, %v979
  %v1093 = vpop.permute.xlu0 %1092
  %1094 = vset.pattern.permute.xlu0 0
  %1095 = vperm.xlu0 %1094, %v980
  %v1096 = vpop.permute.xlu0 %1095
  %1097 = vset.pattern.permute.xlu0 0
  %1098 = vperm.xlu0 %1097, %v981
  %v1099 = vpop.permute.xlu0 %1098
  %1100 = vset.pattern.permute.xlu0 0
  %1101 = vperm.xlu0 %1100, %v982
  %v1102 = vpop.permute.xlu0 %1101
  %1103 = vset.pattern.permute.xlu0 0
  %1104 = vperm.xlu0 %1103, %v983
  %v1105 = vpop.permute.xlu0 %1104
  %1106 = vset.pattern.permute.xlu0 0
  %1107 = vperm.xlu0 %1106, %v984
  %v1108 = vpop.permute.xlu0 %1107
  %1109 = vset.pattern.permute.xlu0 0
  %1110 = vperm.xlu0 %1109, %v985
  %v1111 = vpop.permute.xlu0 %1110
  %1112 = vset.pattern.permute.xlu0 0
  %1113 = vperm.xlu0 %1112, %v986
  %v1114 = vpop.permute.xlu0 %1113
  %v1115 = vlaneseq
  %v1116 = vshrl.u32 %v1115, 7
  %v1117 = vsub.s32 %v347, %v1116
  %v1118 = vrot.slane %v1021, %v1117
  %v1119 = vlaneseq
  %v1120 = vshrl.u32 %v1119, 7
  %v1121 = vsub.s32 %v352, %v1120
  %v1122 = vrot.slane %v1024, %v1121
  %v1123 = vsel %vm357, %v1122, %v1118
  %v1124 = vlaneseq
  %v1125 = vshrl.u32 %v1124, 7
  %v1126 = vsub.s32 %v359, %v1125
  %v1127 = vrot.slane %v1027, %v1126
  %v1128 = vsel %vm364, %v1127, %v1123
  %v1129 = vlaneseq
  %v1130 = vshrl.u32 %v1129, 7
  %v1131 = vsub.s32 %v366, %v1130
  %v1132 = vrot.slane %v1030, %v1131
  %v1133 = vsel %vm371, %v1132, %v1128
  %v1134 = vlaneseq
  %v1135 = vshrl.u32 %v1134, 7
  %v1136 = vsub.s32 %v347, %v1135
  %v1137 = vrot.slane %v1033, %v1136
  %v1138 = vlaneseq
  %v1139 = vshrl.u32 %v1138, 7
  %v1140 = vsub.s32 %v352, %v1139
  %v1141 = vrot.slane %v1036, %v1140
  %v1142 = vsel %vm357, %v1141, %v1137
  %v1143 = vlaneseq
  %v1144 = vshrl.u32 %v1143, 7
  %v1145 = vsub.s32 %v359, %v1144
  %v1146 = vrot.slane %v1039, %v1145
  %v1147 = vsel %vm364, %v1146, %v1142
  %v1148 = vlaneseq
  %v1149 = vshrl.u32 %v1148, 7
  %v1150 = vsub.s32 %v366, %v1149
  %v1151 = vrot.slane %v1042, %v1150
  %v1152 = vsel %vm371, %v1151, %v1147
  %v1153 = vlaneseq
  %v1154 = vshrl.u32 %v1153, 7
  %v1155 = vsub.s32 %v347, %v1154
  %v1156 = vrot.slane %v1045, %v1155
  %v1157 = vlaneseq
  %v1158 = vshrl.u32 %v1157, 7
  %v1159 = vsub.s32 %v352, %v1158
  %v1160 = vrot.slane %v1048, %v1159
  %v1161 = vsel %vm357, %v1160, %v1156
  %v1162 = vlaneseq
  %v1163 = vshrl.u32 %v1162, 7
  %v1164 = vsub.s32 %v359, %v1163
  %v1165 = vrot.slane %v1051, %v1164
  %v1166 = vsel %vm364, %v1165, %v1161
  %v1167 = vlaneseq
  %v1168 = vshrl.u32 %v1167, 7
  %v1169 = vsub.s32 %v366, %v1168
  %v1170 = vrot.slane %v1054, %v1169
  %v1171 = vsel %vm371, %v1170, %v1166
  %v1172 = vlaneseq
  %v1173 = vshrl.u32 %v1172, 7
  %v1174 = vsub.s32 %v347, %v1173
  %v1175 = vrot.slane %v1057, %v1174
  %v1176 = vlaneseq
  %v1177 = vshrl.u32 %v1176, 7
  %v1178 = vsub.s32 %v352, %v1177
  %v1179 = vrot.slane %v1060, %v1178
  %v1180 = vsel %vm357, %v1179, %v1175
  %v1181 = vlaneseq
  %v1182 = vshrl.u32 %v1181, 7
  %v1183 = vsub.s32 %v359, %v1182
  %v1184 = vrot.slane %v1063, %v1183
  %v1185 = vsel %vm364, %v1184, %v1180
  %v1186 = vlaneseq
  %v1187 = vshrl.u32 %v1186, 7
  %v1188 = vsub.s32 %v366, %v1187
  %v1189 = vrot.slane %v1066, %v1188
  %v1190 = vsel %vm371, %v1189, %v1185
  %v1191 = vlaneseq
  %v1192 = vshrl.u32 %v1191, 7
  %v1193 = vsub.s32 %v347, %v1192
  %v1194 = vrot.slane %v1069, %v1193
  %v1195 = vlaneseq
  %v1196 = vshrl.u32 %v1195, 7
  %v1197 = vsub.s32 %v352, %v1196
  %v1198 = vrot.slane %v1072, %v1197
  %v1199 = vsel %vm357, %v1198, %v1194
  %v1200 = vlaneseq
  %v1201 = vshrl.u32 %v1200, 7
  %v1202 = vsub.s32 %v359, %v1201
  %v1203 = vrot.slane %v1075, %v1202
  %v1204 = vsel %vm364, %v1203, %v1199
  %v1205 = vlaneseq
  %v1206 = vshrl.u32 %v1205, 7
  %v1207 = vsub.s32 %v366, %v1206
  %v1208 = vrot.slane %v1078, %v1207
  %v1209 = vsel %vm371, %v1208, %v1204
  %v1210 = vlaneseq
  %v1211 = vshrl.u32 %v1210, 7
  %v1212 = vsub.s32 %v347, %v1211
  %v1213 = vrot.slane %v1081, %v1212
  %v1214 = vlaneseq
  %v1215 = vshrl.u32 %v1214, 7
  %v1216 = vsub.s32 %v352, %v1215
  %v1217 = vrot.slane %v1084, %v1216
  %v1218 = vsel %vm357, %v1217, %v1213
  %v1219 = vlaneseq
  %v1220 = vshrl.u32 %v1219, 7
  %v1221 = vsub.s32 %v359, %v1220
  %v1222 = vrot.slane %v1087, %v1221
  %v1223 = vsel %vm364, %v1222, %v1218
  %v1224 = vlaneseq
  %v1225 = vshrl.u32 %v1224, 7
  %v1226 = vsub.s32 %v366, %v1225
  %v1227 = vrot.slane %v1090, %v1226
  %v1228 = vsel %vm371, %v1227, %v1223
  %v1229 = vlaneseq
  %v1230 = vshrl.u32 %v1229, 7
  %v1231 = vsub.s32 %v347, %v1230
  %v1232 = vrot.slane %v1093, %v1231
  %v1233 = vlaneseq
  %v1234 = vshrl.u32 %v1233, 7
  %v1235 = vsub.s32 %v352, %v1234
  %v1236 = vrot.slane %v1096, %v1235
  %v1237 = vsel %vm357, %v1236, %v1232
  %v1238 = vlaneseq
  %v1239 = vshrl.u32 %v1238, 7
  %v1240 = vsub.s32 %v359, %v1239
  %v1241 = vrot.slane %v1099, %v1240
  %v1242 = vsel %vm364, %v1241, %v1237
  %v1243 = vlaneseq
  %v1244 = vshrl.u32 %v1243, 7
  %v1245 = vsub.s32 %v366, %v1244
  %v1246 = vrot.slane %v1102, %v1245
  %v1247 = vsel %vm371, %v1246, %v1242
  %v1248 = vlaneseq
  %v1249 = vshrl.u32 %v1248, 7
  %v1250 = vsub.s32 %v347, %v1249
  %v1251 = vrot.slane %v1105, %v1250
  %v1252 = vlaneseq
  %v1253 = vshrl.u32 %v1252, 7
  %v1254 = vsub.s32 %v352, %v1253
  %v1255 = vrot.slane %v1108, %v1254
  %v1256 = vsel %vm357, %v1255, %v1251
  %v1257 = vlaneseq
  %v1258 = vshrl.u32 %v1257, 7
  %v1259 = vsub.s32 %v359, %v1258
  %v1260 = vrot.slane %v1111, %v1259
  %v1261 = vsel %vm364, %v1260, %v1256
  %v1262 = vlaneseq
  %v1263 = vshrl.u32 %v1262, 7
  %v1264 = vsub.s32 %v366, %v1263
  %v1265 = vrot.slane %v1114, %v1264
  %v1266 = vsel %vm371, %v1265, %v1261
  %v1267 = vsel %vm506, %v1152, %v1133
  %v1268 = vsel %vm508, %v1171, %v1267
  %v1269 = vsel %vm510, %v1190, %v1268
  %v1270 = vsel %vm512, %v1209, %v1269
  %v1271 = vsel %vm514, %v1228, %v1270
  %v1272 = vsel %vm516, %v1247, %v1271
  %v1273 = vsel %vm518, %v1266, %v1272
  %v1275 = vadd.f32 %v898, %v1273
  %v1276 = vlaneseq
  %v1277 = vshrl.u32 %v1276, 7
  %v1278 = vsub.s32 3, %v1277
  %v1279 = vrot.slane %v116, %v1278
  %v1280 = vlaneseq
  %v1281 = vshrl.u32 %v1280, 7
  %v1282 = vsub.s32 3, %v1281
  %v1283 = vrot.slane %v117, %v1282
  %v1284 = vlaneseq
  %v1285 = vshrl.u32 %v1284, 7
  %v1286 = vsub.s32 3, %v1285
  %v1287 = vrot.slane %v118, %v1286
  %v1288 = vlaneseq
  %v1289 = vshrl.u32 %v1288, 7
  %v1290 = vsub.s32 3, %v1289
  %v1291 = vrot.slane %v119, %v1290
  %v1292 = vlaneseq
  %v1293 = vshrl.u32 %v1292, 7
  %v1294 = vsub.s32 3, %v1293
  %v1295 = vrot.slane %v120, %v1294
  %v1296 = vlaneseq
  %v1297 = vshrl.u32 %v1296, 7
  %v1298 = vsub.s32 3, %v1297
  %v1299 = vrot.slane %v121, %v1298
  %v1300 = vlaneseq
  %v1301 = vshrl.u32 %v1300, 7
  %v1302 = vsub.s32 3, %v1301
  %v1303 = vrot.slane %v122, %v1302
  %v1304 = vlaneseq
  %v1305 = vshrl.u32 %v1304, 7
  %v1306 = vsub.s32 3, %v1305
  %v1307 = vrot.slane %v123, %v1306
  %v1308 = vlaneseq
  %v1309 = vshrl.u32 %v1308, 7
  %v1310 = vsub.s32 3, %v1309
  %v1311 = vrot.slane %v124, %v1310
  %1314 = vbcast.lane.b32.xlu0 %v1311, 256
  %v1315 = vpop.permute.xlu0 %1314
  %s1317 = sor.u32 256, 8
  %1318 = vbcast.lane.b32.xlu0 %v1311, %s1317
  %v1319 = vpop.permute.xlu0 %1318
  %s1321 = sor.u32 256, 16
  %1322 = vbcast.lane.b32.xlu0 %v1311, %s1321
  %v1323 = vpop.permute.xlu0 %1322
  %s1325 = sor.u32 256, 24
  %1326 = vbcast.lane.b32.xlu0 %v1311, %s1325
  %v1327 = vpop.permute.xlu0 %1326
  %v1332 = vmul.f32 %v1279, %v1315
  %v1333 = vmul.f32 %v1279, %v1319
  %v1334 = vmul.f32 %v1279, %v1323
  %v1335 = vmul.f32 %v1279, %v1327
  %v1336 = vmul.f32 %v1283, %v1315
  %v1337 = vmul.f32 %v1283, %v1319
  %v1338 = vmul.f32 %v1283, %v1323
  %v1339 = vmul.f32 %v1283, %v1327
  %v1340 = vmul.f32 %v1287, %v1315
  %v1341 = vmul.f32 %v1287, %v1319
  %v1342 = vmul.f32 %v1287, %v1323
  %v1343 = vmul.f32 %v1287, %v1327
  %v1344 = vmul.f32 %v1291, %v1315
  %v1345 = vmul.f32 %v1291, %v1319
  %v1346 = vmul.f32 %v1291, %v1323
  %v1347 = vmul.f32 %v1291, %v1327
  %v1348 = vmul.f32 %v1295, %v1315
  %v1349 = vmul.f32 %v1295, %v1319
  %v1350 = vmul.f32 %v1295, %v1323
  %v1351 = vmul.f32 %v1295, %v1327
  %v1352 = vmul.f32 %v1299, %v1315
  %v1353 = vmul.f32 %v1299, %v1319
  %v1354 = vmul.f32 %v1299, %v1323
  %v1355 = vmul.f32 %v1299, %v1327
  %v1356 = vmul.f32 %v1303, %v1315
  %v1357 = vmul.f32 %v1303, %v1319
  %v1358 = vmul.f32 %v1303, %v1323
  %v1359 = vmul.f32 %v1303, %v1327
  %v1360 = vmul.f32 %v1307, %v1315
  %v1361 = vmul.f32 %v1307, %v1319
  %v1362 = vmul.f32 %v1307, %v1323
  %v1363 = vmul.f32 %v1307, %v1327
  %1396 = vset.pattern.permute.xlu0 0
  %1397 = vperm.xlu0 %1396, %v1332
  %v1398 = vpop.permute.xlu0 %1397
  %1399 = vset.pattern.permute.xlu0 0
  %1400 = vperm.xlu0 %1399, %v1333
  %v1401 = vpop.permute.xlu0 %1400
  %1402 = vset.pattern.permute.xlu0 0
  %1403 = vperm.xlu0 %1402, %v1334
  %v1404 = vpop.permute.xlu0 %1403
  %1405 = vset.pattern.permute.xlu0 0
  %1406 = vperm.xlu0 %1405, %v1335
  %v1407 = vpop.permute.xlu0 %1406
  %1408 = vset.pattern.permute.xlu0 0
  %1409 = vperm.xlu0 %1408, %v1336
  %v1410 = vpop.permute.xlu0 %1409
  %1411 = vset.pattern.permute.xlu0 0
  %1412 = vperm.xlu0 %1411, %v1337
  %v1413 = vpop.permute.xlu0 %1412
  %1414 = vset.pattern.permute.xlu0 0
  %1415 = vperm.xlu0 %1414, %v1338
  %v1416 = vpop.permute.xlu0 %1415
  %1417 = vset.pattern.permute.xlu0 0
  %1418 = vperm.xlu0 %1417, %v1339
  %v1419 = vpop.permute.xlu0 %1418
  %1420 = vset.pattern.permute.xlu0 0
  %1421 = vperm.xlu0 %1420, %v1340
  %v1422 = vpop.permute.xlu0 %1421
  %1423 = vset.pattern.permute.xlu0 0
  %1424 = vperm.xlu0 %1423, %v1341
  %v1425 = vpop.permute.xlu0 %1424
  %1426 = vset.pattern.permute.xlu0 0
  %1427 = vperm.xlu0 %1426, %v1342
  %v1428 = vpop.permute.xlu0 %1427
  %1429 = vset.pattern.permute.xlu0 0
  %1430 = vperm.xlu0 %1429, %v1343
  %v1431 = vpop.permute.xlu0 %1430
  %1432 = vset.pattern.permute.xlu0 0
  %1433 = vperm.xlu0 %1432, %v1344
  %v1434 = vpop.permute.xlu0 %1433
  %1435 = vset.pattern.permute.xlu0 0
  %1436 = vperm.xlu0 %1435, %v1345
  %v1437 = vpop.permute.xlu0 %1436
  %1438 = vset.pattern.permute.xlu0 0
  %1439 = vperm.xlu0 %1438, %v1346
  %v1440 = vpop.permute.xlu0 %1439
  %1441 = vset.pattern.permute.xlu0 0
  %1442 = vperm.xlu0 %1441, %v1347
  %v1443 = vpop.permute.xlu0 %1442
  %1444 = vset.pattern.permute.xlu0 0
  %1445 = vperm.xlu0 %1444, %v1348
  %v1446 = vpop.permute.xlu0 %1445
  %1447 = vset.pattern.permute.xlu0 0
  %1448 = vperm.xlu0 %1447, %v1349
  %v1449 = vpop.permute.xlu0 %1448
  %1450 = vset.pattern.permute.xlu0 0
  %1451 = vperm.xlu0 %1450, %v1350
  %v1452 = vpop.permute.xlu0 %1451
  %1453 = vset.pattern.permute.xlu0 0
  %1454 = vperm.xlu0 %1453, %v1351
  %v1455 = vpop.permute.xlu0 %1454
  %1456 = vset.pattern.permute.xlu0 0
  %1457 = vperm.xlu0 %1456, %v1352
  %v1458 = vpop.permute.xlu0 %1457
  %1459 = vset.pattern.permute.xlu0 0
  %1460 = vperm.xlu0 %1459, %v1353
  %v1461 = vpop.permute.xlu0 %1460
  %1462 = vset.pattern.permute.xlu0 0
  %1463 = vperm.xlu0 %1462, %v1354
  %v1464 = vpop.permute.xlu0 %1463
  %1465 = vset.pattern.permute.xlu0 0
  %1466 = vperm.xlu0 %1465, %v1355
  %v1467 = vpop.permute.xlu0 %1466
  %1468 = vset.pattern.permute.xlu0 0
  %1469 = vperm.xlu0 %1468, %v1356
  %v1470 = vpop.permute.xlu0 %1469
  %1471 = vset.pattern.permute.xlu0 0
  %1472 = vperm.xlu0 %1471, %v1357
  %v1473 = vpop.permute.xlu0 %1472
  %1474 = vset.pattern.permute.xlu0 0
  %1475 = vperm.xlu0 %1474, %v1358
  %v1476 = vpop.permute.xlu0 %1475
  %1477 = vset.pattern.permute.xlu0 0
  %1478 = vperm.xlu0 %1477, %v1359
  %v1479 = vpop.permute.xlu0 %1478
  %1480 = vset.pattern.permute.xlu0 0
  %1481 = vperm.xlu0 %1480, %v1360
  %v1482 = vpop.permute.xlu0 %1481
  %1483 = vset.pattern.permute.xlu0 0
  %1484 = vperm.xlu0 %1483, %v1361
  %v1485 = vpop.permute.xlu0 %1484
  %1486 = vset.pattern.permute.xlu0 0
  %1487 = vperm.xlu0 %1486, %v1362
  %v1488 = vpop.permute.xlu0 %1487
  %1489 = vset.pattern.permute.xlu0 0
  %1490 = vperm.xlu0 %1489, %v1363
  %v1491 = vpop.permute.xlu0 %1490
  %v1492 = vlaneseq
  %v1493 = vshrl.u32 %v1492, 7
  %v1494 = vsub.s32 %v347, %v1493
  %v1495 = vrot.slane %v1398, %v1494
  %v1496 = vlaneseq
  %v1497 = vshrl.u32 %v1496, 7
  %v1498 = vsub.s32 %v352, %v1497
  %v1499 = vrot.slane %v1401, %v1498
  %v1500 = vsel %vm357, %v1499, %v1495
  %v1501 = vlaneseq
  %v1502 = vshrl.u32 %v1501, 7
  %v1503 = vsub.s32 %v359, %v1502
  %v1504 = vrot.slane %v1404, %v1503
  %v1505 = vsel %vm364, %v1504, %v1500
  %v1506 = vlaneseq
  %v1507 = vshrl.u32 %v1506, 7
  %v1508 = vsub.s32 %v366, %v1507
  %v1509 = vrot.slane %v1407, %v1508
  %v1510 = vsel %vm371, %v1509, %v1505
  %v1511 = vlaneseq
  %v1512 = vshrl.u32 %v1511, 7
  %v1513 = vsub.s32 %v347, %v1512
  %v1514 = vrot.slane %v1410, %v1513
  %v1515 = vlaneseq
  %v1516 = vshrl.u32 %v1515, 7
  %v1517 = vsub.s32 %v352, %v1516
  %v1518 = vrot.slane %v1413, %v1517
  %v1519 = vsel %vm357, %v1518, %v1514
  %v1520 = vlaneseq
  %v1521 = vshrl.u32 %v1520, 7
  %v1522 = vsub.s32 %v359, %v1521
  %v1523 = vrot.slane %v1416, %v1522
  %v1524 = vsel %vm364, %v1523, %v1519
  %v1525 = vlaneseq
  %v1526 = vshrl.u32 %v1525, 7
  %v1527 = vsub.s32 %v366, %v1526
  %v1528 = vrot.slane %v1419, %v1527
  %v1529 = vsel %vm371, %v1528, %v1524
  %v1530 = vlaneseq
  %v1531 = vshrl.u32 %v1530, 7
  %v1532 = vsub.s32 %v347, %v1531
  %v1533 = vrot.slane %v1422, %v1532
  %v1534 = vlaneseq
  %v1535 = vshrl.u32 %v1534, 7
  %v1536 = vsub.s32 %v352, %v1535
  %v1537 = vrot.slane %v1425, %v1536
  %v1538 = vsel %vm357, %v1537, %v1533
  %v1539 = vlaneseq
  %v1540 = vshrl.u32 %v1539, 7
  %v1541 = vsub.s32 %v359, %v1540
  %v1542 = vrot.slane %v1428, %v1541
  %v1543 = vsel %vm364, %v1542, %v1538
  %v1544 = vlaneseq
  %v1545 = vshrl.u32 %v1544, 7
  %v1546 = vsub.s32 %v366, %v1545
  %v1547 = vrot.slane %v1431, %v1546
  %v1548 = vsel %vm371, %v1547, %v1543
  %v1549 = vlaneseq
  %v1550 = vshrl.u32 %v1549, 7
  %v1551 = vsub.s32 %v347, %v1550
  %v1552 = vrot.slane %v1434, %v1551
  %v1553 = vlaneseq
  %v1554 = vshrl.u32 %v1553, 7
  %v1555 = vsub.s32 %v352, %v1554
  %v1556 = vrot.slane %v1437, %v1555
  %v1557 = vsel %vm357, %v1556, %v1552
  %v1558 = vlaneseq
  %v1559 = vshrl.u32 %v1558, 7
  %v1560 = vsub.s32 %v359, %v1559
  %v1561 = vrot.slane %v1440, %v1560
  %v1562 = vsel %vm364, %v1561, %v1557
  %v1563 = vlaneseq
  %v1564 = vshrl.u32 %v1563, 7
  %v1565 = vsub.s32 %v366, %v1564
  %v1566 = vrot.slane %v1443, %v1565
  %v1567 = vsel %vm371, %v1566, %v1562
  %v1568 = vlaneseq
  %v1569 = vshrl.u32 %v1568, 7
  %v1570 = vsub.s32 %v347, %v1569
  %v1571 = vrot.slane %v1446, %v1570
  %v1572 = vlaneseq
  %v1573 = vshrl.u32 %v1572, 7
  %v1574 = vsub.s32 %v352, %v1573
  %v1575 = vrot.slane %v1449, %v1574
  %v1576 = vsel %vm357, %v1575, %v1571
  %v1577 = vlaneseq
  %v1578 = vshrl.u32 %v1577, 7
  %v1579 = vsub.s32 %v359, %v1578
  %v1580 = vrot.slane %v1452, %v1579
  %v1581 = vsel %vm364, %v1580, %v1576
  %v1582 = vlaneseq
  %v1583 = vshrl.u32 %v1582, 7
  %v1584 = vsub.s32 %v366, %v1583
  %v1585 = vrot.slane %v1455, %v1584
  %v1586 = vsel %vm371, %v1585, %v1581
  %v1587 = vlaneseq
  %v1588 = vshrl.u32 %v1587, 7
  %v1589 = vsub.s32 %v347, %v1588
  %v1590 = vrot.slane %v1458, %v1589
  %v1591 = vlaneseq
  %v1592 = vshrl.u32 %v1591, 7
  %v1593 = vsub.s32 %v352, %v1592
  %v1594 = vrot.slane %v1461, %v1593
  %v1595 = vsel %vm357, %v1594, %v1590
  %v1596 = vlaneseq
  %v1597 = vshrl.u32 %v1596, 7
  %v1598 = vsub.s32 %v359, %v1597
  %v1599 = vrot.slane %v1464, %v1598
  %v1600 = vsel %vm364, %v1599, %v1595
  %v1601 = vlaneseq
  %v1602 = vshrl.u32 %v1601, 7
  %v1603 = vsub.s32 %v366, %v1602
  %v1604 = vrot.slane %v1467, %v1603
  %v1605 = vsel %vm371, %v1604, %v1600
  %v1606 = vlaneseq
  %v1607 = vshrl.u32 %v1606, 7
  %v1608 = vsub.s32 %v347, %v1607
  %v1609 = vrot.slane %v1470, %v1608
  %v1610 = vlaneseq
  %v1611 = vshrl.u32 %v1610, 7
  %v1612 = vsub.s32 %v352, %v1611
  %v1613 = vrot.slane %v1473, %v1612
  %v1614 = vsel %vm357, %v1613, %v1609
  %v1615 = vlaneseq
  %v1616 = vshrl.u32 %v1615, 7
  %v1617 = vsub.s32 %v359, %v1616
  %v1618 = vrot.slane %v1476, %v1617
  %v1619 = vsel %vm364, %v1618, %v1614
  %v1620 = vlaneseq
  %v1621 = vshrl.u32 %v1620, 7
  %v1622 = vsub.s32 %v366, %v1621
  %v1623 = vrot.slane %v1479, %v1622
  %v1624 = vsel %vm371, %v1623, %v1619
  %v1625 = vlaneseq
  %v1626 = vshrl.u32 %v1625, 7
  %v1627 = vsub.s32 %v347, %v1626
  %v1628 = vrot.slane %v1482, %v1627
  %v1629 = vlaneseq
  %v1630 = vshrl.u32 %v1629, 7
  %v1631 = vsub.s32 %v352, %v1630
  %v1632 = vrot.slane %v1485, %v1631
  %v1633 = vsel %vm357, %v1632, %v1628
  %v1634 = vlaneseq
  %v1635 = vshrl.u32 %v1634, 7
  %v1636 = vsub.s32 %v359, %v1635
  %v1637 = vrot.slane %v1488, %v1636
  %v1638 = vsel %vm364, %v1637, %v1633
  %v1639 = vlaneseq
  %v1640 = vshrl.u32 %v1639, 7
  %v1641 = vsub.s32 %v366, %v1640
  %v1642 = vrot.slane %v1491, %v1641
  %v1643 = vsel %vm371, %v1642, %v1638
  %v1644 = vsel %vm506, %v1529, %v1510
  %v1645 = vsel %vm508, %v1548, %v1644
  %v1646 = vsel %vm510, %v1567, %v1645
  %v1647 = vsel %vm512, %v1586, %v1646
  %v1648 = vsel %vm514, %v1605, %v1647
  %v1649 = vsel %vm516, %v1624, %v1648
  %v1650 = vsel %vm518, %v1643, %v1649
  %v1652 = vadd.f32 %v1275, %v1650
  %v1653 = vld [vmem:[%s1] sm:$0xff]
  %v1654 = vld [vmem:[%s1 + $0x8] sm:$0xff]
  %v1655 = vld [vmem:[%s1 + $0x10] sm:$0xff]
  %v1656 = vld [vmem:[%s1 + $0x18] sm:$0xff]
  %v1657 = vld [vmem:[%s1 + $0x20] sm:$0xff]
  %v1658 = vld [vmem:[%s1 + $0x28] sm:$0xff]
  %v1659 = vld [vmem:[%s1 + $0x30] sm:$0xff]
  %v1660 = vld [vmem:[%s1 + $0x38] sm:$0xff]
  %1661 = vset.pattern.permute.xlu0 0
  %1662 = vperm.xlu0 %1661, %v1653
  %v1663 = vpop.permute.xlu0 %1662
  %1664 = vset.pattern.permute.xlu0 0
  %1665 = vperm.xlu0 %1664, %v1654
  %v1666 = vpop.permute.xlu0 %1665
  %1667 = vset.pattern.permute.xlu0 0
  %1668 = vperm.xlu0 %1667, %v1655
  %v1669 = vpop.permute.xlu0 %1668
  %1670 = vset.pattern.permute.xlu0 0
  %1671 = vperm.xlu0 %1670, %v1656
  %v1672 = vpop.permute.xlu0 %1671
  %1673 = vset.pattern.permute.xlu0 0
  %1674 = vperm.xlu0 %1673, %v1657
  %v1675 = vpop.permute.xlu0 %1674
  %1676 = vset.pattern.permute.xlu0 0
  %1677 = vperm.xlu0 %1676, %v1658
  %v1678 = vpop.permute.xlu0 %1677
  %1679 = vset.pattern.permute.xlu0 0
  %1680 = vperm.xlu0 %1679, %v1659
  %v1681 = vpop.permute.xlu0 %1680
  %1682 = vset.pattern.permute.xlu0 0
  %1683 = vperm.xlu0 %1682, %v1660
  %v1684 = vpop.permute.xlu0 %1683
  %vm1685 = vcmp.eq.s32.totalorder %v1663, %v347
  %vm1686 = vcmp.eq.s32.totalorder %v1666, %v347
  %vm1687 = vcmp.eq.s32.totalorder %v1669, %v347
  %vm1688 = vcmp.eq.s32.totalorder %v1672, %v347
  %vm1689 = vcmp.eq.s32.totalorder %v1675, %v347
  %vm1690 = vcmp.eq.s32.totalorder %v1678, %v347
  %vm1691 = vcmp.eq.s32.totalorder %v1681, %v347
  %vm1692 = vcmp.eq.s32.totalorder %v1684, %v347
  %v1693 = vsel %vm1685, 1, 0
  %v1694 = vsel %vm1686, 1, 0
  %v1695 = vsel %vm1687, 1, 0
  %v1696 = vsel %vm1688, 1, 0
  %v1697 = vsel %vm1689, 1, 0
  %v1698 = vsel %vm1690, 1, 0
  %v1699 = vsel %vm1691, 1, 0
  %v1700 = vsel %vm1692, 1, 0
  %v1701 = vcvt.s32.f32 %v1693
  %v1702 = vcvt.s32.f32 %v1694
  %v1703 = vcvt.s32.f32 %v1695
  %v1704 = vcvt.s32.f32 %v1696
  %v1705 = vcvt.s32.f32 %v1697
  %v1706 = vcvt.s32.f32 %v1698
  %v1707 = vcvt.s32.f32 %v1699
  %v1708 = vcvt.s32.f32 %v1700
  %v1709 = vld [vmem:[%s2] sm:$0xff]
  %v1710 = vld [vmem:[%s2 + $0x8] sm:$0xff]
  %v1711 = vld [vmem:[%s2 + $0x10] sm:$0xff]
  %v1712 = vld [vmem:[%s2 + $0x18] sm:$0xff]
  %v1713 = vld [vmem:[%s2 + $0x20] sm:$0xff]
  %v1714 = vld [vmem:[%s2 + $0x28] sm:$0xff]
  %v1715 = vld [vmem:[%s2 + $0x30] sm:$0xff]
  %v1716 = vld [vmem:[%s2 + $0x38] sm:$0xff]
  %v1717 = vld [vmem:[%s2 + $0x40] sm:$0xff]
  %v1718 = vld [vmem:[%s2 + $0x48] sm:$0xff]
  %v1719 = vld [vmem:[%s2 + $0x50] sm:$0xff]
  %v1720 = vld [vmem:[%s2 + $0x58] sm:$0xff]
  %v1721 = vld [vmem:[%s2 + $0x60] sm:$0xff]
  %v1722 = vld [vmem:[%s2 + $0x68] sm:$0xff]
  %v1723 = vld [vmem:[%s2 + $0x70] sm:$0xff]
  %v1724 = vld [vmem:[%s2 + $0x78] sm:$0xff]
  %1725 = vmatprep.subr.mxu0 0.0
  %1726 = vmatpush1.msra.mxu0 %v1709
  %1727 = vmatprep.subr.mxu0 0.0
  %1728 = vmatpush1.msra.mxu0 %v1710
  %1729 = vmatprep.subr.mxu0 0.0
  %1730 = vmatpush1.msra.mxu0 %v1711
  %1731 = vmatprep.subr.mxu0 0.0
  %1732 = vmatpush1.msra.mxu0 %v1712
  %1733 = vmatprep.subr.mxu0 0.0
  %1734 = vmatpush1.msra.mxu0 %v1713
  %1735 = vmatprep.subr.mxu0 0.0
  %1736 = vmatpush1.msra.mxu0 %v1714
  %1737 = vmatprep.subr.mxu0 0.0
  %1738 = vmatpush1.msra.mxu0 %v1715
  %1739 = vmatprep.subr.mxu0 0.0
  %1740 = vmatpush1.msra.mxu0 %v1716
  %1741 = vmatprep.subr.mxu0 0.0
  %1742 = vmatpush1.msra.mxu0 %v1717
  %1743 = vmatprep.subr.mxu0 0.0
  %1744 = vmatpush1.msra.mxu0 %v1718
  %1745 = vmatprep.subr.mxu0 0.0
  %1746 = vmatpush1.msra.mxu0 %v1719
  %1747 = vmatprep.subr.mxu0 0.0
  %1748 = vmatpush1.msra.mxu0 %v1720
  %1749 = vmatprep.subr.mxu0 0.0
  %1750 = vmatpush1.msra.mxu0 %v1721
  %1751 = vmatprep.subr.mxu0 0.0
  %1752 = vmatpush1.msra.mxu0 %v1722
  %1753 = vmatprep.subr.mxu0 0.0
  %1754 = vmatpush1.msra.mxu0 %v1723
  %1755 = vmatprep.subr.mxu0 0.0
  %1756 = vmatpush1.msra.mxu0 %v1724
  %1757 = vmatprep.subr.mxu0 0.0
  %1758 = vmatpush1.msra.mxu0 0.0
  %1759 = vmatprep.subr.mxu0 0.0
  %1760 = vmatpush1.msra.mxu0 0.0
  %1761 = vmatprep.subr.mxu0 0.0
  %1762 = vmatpush1.msra.mxu0 0.0
  %1763 = vmatprep.subr.mxu0 0.0
  %1764 = vmatpush1.msra.mxu0 0.0
  %1765 = vmatprep.subr.mxu0 0.0
  %1766 = vmatpush1.msra.mxu0 0.0
  %1767 = vmatprep.subr.mxu0 0.0
  %1768 = vmatpush1.msra.mxu0 0.0
  %1769 = vmatprep.subr.mxu0 0.0
  %1770 = vmatpush1.msra.mxu0 0.0
  %1771 = vmatprep.subr.mxu0 0.0
  %1772 = vmatpush1.msra.mxu0 0.0
  %1773 = vmatprep.subr.mxu0 0.0
  %1774 = vmatpush1.msra.mxu0 0.0
  %1775 = vmatprep.subr.mxu0 0.0
  %1776 = vmatpush1.msra.mxu0 0.0
  %1777 = vmatprep.subr.mxu0 0.0
  %1778 = vmatpush1.msra.mxu0 0.0
  %1779 = vmatprep.subr.mxu0 0.0
  %1780 = vmatpush1.msra.mxu0 0.0
  %1781 = vmatprep.subr.mxu0 0.0
  %1782 = vmatpush1.msra.mxu0 0.0
  %1783 = vmatprep.subr.mxu0 0.0
  %1784 = vmatpush1.msra.mxu0 0.0
  %1785 = vmatprep.subr.mxu0 0.0
  %1786 = vmatpush1.msra.mxu0 0.0
  %1787 = vmatprep.subr.mxu0 0.0
  %1788 = vmatpush1.msra.mxu0 0.0
  %1789 = vmatprep.mubr.f32.mxu0 0.0
  %1790 = vmatmul.mubr.f32.gmra.mrb[0].mxu0 %v1701
  %v1791 = vpop.f32.mrb[0].mxu0
  %v1792 = vadd.f32 0.0, %v1791
  %v1793 = vpop.f32.mrb[0].mxu0
  %1794 = vmatprep.mubr.f32.mxu0 0.0
  %1795 = vmatmul.mubr.f32.gmra.mrb[0].mxu0 %v1702
  %v1796 = vpop.f32.mrb[0].mxu0
  %v1797 = vadd.f32 0.0, %v1796
  %v1798 = vpop.f32.mrb[0].mxu0
  %1799 = vmatprep.mubr.f32.mxu0 0.0
  %1800 = vmatmul.mubr.f32.gmra.mrb[0].mxu0 %v1703
  %v1801 = vpop.f32.mrb[0].mxu0
  %v1802 = vadd.f32 0.0, %v1801
  %v1803 = vpop.f32.mrb[0].mxu0
  %1804 = vmatprep.mubr.f32.mxu0 0.0
  %1805 = vmatmul.mubr.f32.gmra.mrb[0].mxu0 %v1704
  %v1806 = vpop.f32.mrb[0].mxu0
  %v1807 = vadd.f32 0.0, %v1806
  %v1808 = vpop.f32.mrb[0].mxu0
  %1809 = vmatprep.mubr.f32.mxu0 0.0
  %1810 = vmatmul.mubr.f32.gmra.mrb[0].mxu0 %v1705
  %v1811 = vpop.f32.mrb[0].mxu0
  %v1812 = vadd.f32 0.0, %v1811
  %v1813 = vpop.f32.mrb[0].mxu0
  %1814 = vmatprep.mubr.f32.mxu0 0.0
  %1815 = vmatmul.mubr.f32.gmra.mrb[0].mxu0 %v1706
  %v1816 = vpop.f32.mrb[0].mxu0
  %v1817 = vadd.f32 0.0, %v1816
  %v1818 = vpop.f32.mrb[0].mxu0
  %1819 = vmatprep.mubr.f32.mxu0 0.0
  %1820 = vmatmul.mubr.f32.gmra.mrb[0].mxu0 %v1707
  %v1821 = vpop.f32.mrb[0].mxu0
  %v1822 = vadd.f32 0.0, %v1821
  %v1823 = vpop.f32.mrb[0].mxu0
  %1824 = vmatprep.mubr.f32.mxu0 0.0
  %1825 = vmatmul.mubr.f32.gmra.mrb[0].mxu0 %v1708
  %v1826 = vpop.f32.mrb[0].mxu0
  %v1827 = vadd.f32 0.0, %v1826
  %v1828 = vpop.f32.mrb[0].mxu0
  %1829 = vdwg.mxu0
  %v1830 = vlaneseq
  %v1831 = vshrl.u32 %v1830, 7
  %v1832 = vsub.s32 0, %v1831
  %v1833 = vrot.slane %v32, %v1832
  %vm1834 = vcmask 261120
  %v1836 = vsel %vm1834, %v1652, 0
  %v1839 = vsel %vm1834, %v1792, 0
  %v1842 = vsel %vm1834, %v1797, 0
  %v1845 = vsel %vm1834, %v1802, 0
  %v1848 = vsel %vm1834, %v1807, 0
  %v1851 = vsel %vm1834, %v1812, 0
  %v1854 = vsel %vm1834, %v1817, 0
  %v1857 = vsel %vm1834, %v1822, 0
  %v1860 = vsel %vm1834, %v1827, 0
  %1862 = vmatprep.subr.mxu0 0.0
  %1863 = vmatpush1.msra.mxu0 %v20
  %1864 = vmatprep.subr.mxu0 0.0
  %1865 = vmatpush1.msra.mxu0 %v21
  %1866 = vmatprep.subr.mxu0 0.0
  %1867 = vmatpush1.msra.mxu0 %v22
  %1868 = vmatprep.subr.mxu0 0.0
  %1869 = vmatpush1.msra.mxu0 %v23
  %1870 = vmatprep.subr.mxu0 0.0
  %1871 = vmatpush1.msra.mxu0 0.0
  %1872 = vmatprep.subr.mxu0 0.0
  %1873 = vmatpush1.msra.mxu0 0.0
  %1874 = vmatprep.subr.mxu0 0.0
  %1875 = vmatpush1.msra.mxu0 0.0
  %1876 = vmatprep.subr.mxu0 0.0
  %1877 = vmatpush1.msra.mxu0 0.0
  %1878 = vmatprep.subr.mxu0 0.0
  %1879 = vmatpush1.msra.mxu0 0.0
  %1880 = vmatprep.subr.mxu0 0.0
  %1881 = vmatpush1.msra.mxu0 0.0
  %1882 = vmatprep.subr.mxu0 0.0
  %1883 = vmatpush1.msra.mxu0 0.0
  %1884 = vmatprep.subr.mxu0 0.0
  %1885 = vmatpush1.msra.mxu0 0.0
  %1886 = vmatprep.subr.mxu0 0.0
  %1887 = vmatpush1.msra.mxu0 0.0
  %1888 = vmatprep.subr.mxu0 0.0
  %1889 = vmatpush1.msra.mxu0 0.0
  %1890 = vmatprep.subr.mxu0 0.0
  %1891 = vmatpush1.msra.mxu0 0.0
  %1892 = vmatprep.subr.mxu0 0.0
  %1893 = vmatpush1.msra.mxu0 0.0
  %1894 = vmatprep.subr.mxu0 0.0
  %1895 = vmatpush1.msra.mxu0 0.0
  %1896 = vmatprep.subr.mxu0 0.0
  %1897 = vmatpush1.msra.mxu0 0.0
  %1898 = vmatprep.subr.mxu0 0.0
  %1899 = vmatpush1.msra.mxu0 0.0
  %1900 = vmatprep.subr.mxu0 0.0
  %1901 = vmatpush1.msra.mxu0 0.0
  %1902 = vmatprep.subr.mxu0 0.0
  %1903 = vmatpush1.msra.mxu0 0.0
  %1904 = vmatprep.subr.mxu0 0.0
  %1905 = vmatpush1.msra.mxu0 0.0
  %1906 = vmatprep.subr.mxu0 0.0
  %1907 = vmatpush1.msra.mxu0 0.0
  %1908 = vmatprep.subr.mxu0 0.0
  %1909 = vmatpush1.msra.mxu0 0.0
  %1910 = vmatprep.subr.mxu0 0.0
  %1911 = vmatpush1.msra.mxu0 0.0
  %1912 = vmatprep.subr.mxu0 0.0
  %1913 = vmatpush1.msra.mxu0 0.0
  %1914 = vmatprep.subr.mxu0 0.0
  %1915 = vmatpush1.msra.mxu0 0.0
  %1916 = vmatprep.subr.mxu0 0.0
  %1917 = vmatpush1.msra.mxu0 0.0
  %1918 = vmatprep.subr.mxu0 0.0
  %1919 = vmatpush1.msra.mxu0 0.0
  %1920 = vmatprep.subr.mxu0 0.0
  %1921 = vmatpush1.msra.mxu0 0.0
  %1922 = vmatprep.subr.mxu0 0.0
  %1923 = vmatpush1.msra.mxu0 0.0
  %1924 = vmatprep.subr.mxu0 0.0
  %1925 = vmatpush1.msra.mxu0 0.0
  %1926 = vmatprep.mubr.f32.mxu0 0.0
  %1927 = vmatmul.mubr.f32.gmra.mrb[0].mxu0 %v1836
  %v1928 = vpop.f32.mrb[0].mxu0
  %v1929 = vadd.f32 %v1833, %v1928
  %v1930 = vpop.f32.mrb[0].mxu0
  %1931 = vmatprep.mubr.f32.mxu0 0.0
  %1932 = vmatmul.mubr.f32.gmra.mrb[0].mxu0 %v1839
  %v1933 = vpop.f32.mrb[0].mxu0
  %v1934 = vadd.f32 %v1833, %v1933
  %v1935 = vpop.f32.mrb[0].mxu0
  %1936 = vmatprep.mubr.f32.mxu0 0.0
  %1937 = vmatmul.mubr.f32.gmra.mrb[0].mxu0 %v1842
  %v1938 = vpop.f32.mrb[0].mxu0
  %v1939 = vadd.f32 %v1833, %v1938
  %v1940 = vpop.f32.mrb[0].mxu0
  %1941 = vmatprep.mubr.f32.mxu0 0.0
  %1942 = vmatmul.mubr.f32.gmra.mrb[0].mxu0 %v1845
  %v1943 = vpop.f32.mrb[0].mxu0
  %v1944 = vadd.f32 %v1833, %v1943
  %v1945 = vpop.f32.mrb[0].mxu0
  %1946 = vmatprep.mubr.f32.mxu0 0.0
  %1947 = vmatmul.mubr.f32.gmra.mrb[0].mxu0 %v1848
  %v1948 = vpop.f32.mrb[0].mxu0
  %v1949 = vadd.f32 %v1833, %v1948
  %v1950 = vpop.f32.mrb[0].mxu0
  %1951 = vmatprep.mubr.f32.mxu0 0.0
  %1952 = vmatmul.mubr.f32.gmra.mrb[0].mxu0 %v1851
  %v1953 = vpop.f32.mrb[0].mxu0
  %v1954 = vadd.f32 %v1833, %v1953
  %v1955 = vpop.f32.mrb[0].mxu0
  %1956 = vmatprep.mubr.f32.mxu0 0.0
  %1957 = vmatmul.mubr.f32.gmra.mrb[0].mxu0 %v1854
  %v1958 = vpop.f32.mrb[0].mxu0
  %v1959 = vadd.f32 %v1833, %v1958
  %v1960 = vpop.f32.mrb[0].mxu0
  %1961 = vmatprep.mubr.f32.mxu0 0.0
  %1962 = vmatmul.mubr.f32.gmra.mrb[0].mxu0 %v1857
  %v1963 = vpop.f32.mrb[0].mxu0
  %v1964 = vadd.f32 %v1833, %v1963
  %v1965 = vpop.f32.mrb[0].mxu0
  %1966 = vmatprep.mubr.f32.mxu0 0.0
  %1967 = vmatmul.mubr.f32.gmra.mrb[0].mxu0 %v1860
  %v1968 = vpop.f32.mrb[0].mxu0
  %v1969 = vadd.f32 %v1833, %v1968
  %v1970 = vpop.f32.mrb[0].mxu0
  %1971 = vdwg.mxu0
  %1972 = vst [vmem:[#allocation2] sm:$0xff] %v1929
  %1973 = vst [vmem:[#allocation2 + $0x8] sm:$0xff] %v1934
  %1974 = vst [vmem:[#allocation2 + $0x10] sm:$0xff] %v1939
  %1975 = vst [vmem:[#allocation2 + $0x18] sm:$0xff] %v1944
  %1976 = vst [vmem:[#allocation2 + $0x20] sm:$0xff] %v1949
  %1977 = vst [vmem:[#allocation2 + $0x28] sm:$0xff] %v1954
  %1978 = vst [vmem:[#allocation2 + $0x30] sm:$0xff] %v1959
  %1979 = vst [vmem:[#allocation2 + $0x38] sm:$0xff] %v1964
  %1980 = vst [vmem:[#allocation2 + $0x40] sm:$0xff] %v1969
  %v1981 = vld [vmem:[#allocation2] sm:$0xff]
  %v1982 = vxor.u32 %v1981, 2147483648
  %v1983 = vmul.f32 %v1982, 1.442695
  %v1984 = vpow.pop %v1983
  %v1985 = vadd.f32 %v1984, 1.0
  %v1986 = vrcp.pop %v1985
  %v1987 = vmul.f32 1.0, %v1986
  %v1988 = vmul.f32 %v1987, 2.0
  %v1989 = vsub.f32 %v1988, 1.0
  %v1990 = vmul.f32 %v1987, 0.0
  %1992 = vrot.lane.b32.xlu0 %v1989, 64
  %v1993 = vpop.permute.xlu0 %1992
  %v1995 = vmul.f32 %v1987, %v1993
  %1997 = vrot.lane.b32.xlu0 %v1995, 32
  %v1998 = vpop.permute.xlu0 %1997
  %v2000 = vadd.f32 %v1990, %v1998
  %v2001 = vtanh.pop %v2000
  %2003 = vrot.lane.b32.xlu0 %v2001, 64
  %v2004 = vpop.permute.xlu0 %2003
  %v2006 = vmul.f32 %v1987, %v2004
  %2008 = vrot.lane.b32.xlu0 %v2006, 32
  %v2009 = vpop.permute.xlu0 %2008
  %v2010 = vsel %vm1834, %v2009, 0
  %2012 = vmatprep.subr.mxu0 %v36
  %2013 = vmatpush1.msra.mxu0 %v35
  %2014 = vmatprep.subr.mxu0 %v38
  %2015 = vmatpush1.msra.mxu0 %v37
  %2016 = vmatprep.subr.mxu0 %v40
  %2017 = vmatpush1.msra.mxu0 %v39
  %2018 = vmatprep.subr.mxu0 %v42
  %2019 = vmatpush1.msra.mxu0 %v41
  %2020 = vmatprep.subr.mxu0 0.0
  %2021 = vmatpush1.msra.mxu0 0.0
  %2022 = vmatprep.subr.mxu0 0.0
  %2023 = vmatpush1.msra.mxu0 0.0
  %2024 = vmatprep.subr.mxu0 0.0
  %2025 = vmatpush1.msra.mxu0 0.0
  %2026 = vmatprep.subr.mxu0 0.0
  %2027 = vmatpush1.msra.mxu0 0.0
  %2028 = vmatprep.subr.mxu0 0.0
  %2029 = vmatpush1.msra.mxu0 0.0
  %2030 = vmatprep.subr.mxu0 0.0
  %2031 = vmatpush1.msra.mxu0 0.0
  %2032 = vmatprep.subr.mxu0 0.0
  %2033 = vmatpush1.msra.mxu0 0.0
  %2034 = vmatprep.subr.mxu0 0.0
  %2035 = vmatpush1.msra.mxu0 0.0
  %2036 = vmatprep.subr.mxu0 0.0
  %2037 = vmatpush1.msra.mxu0 0.0
  %2038 = vmatprep.subr.mxu0 0.0
  %2039 = vmatpush1.msra.mxu0 0.0
  %2040 = vmatprep.subr.mxu0 0.0
  %2041 = vmatpush1.msra.mxu0 0.0
  %2042 = vmatprep.subr.mxu0 0.0
  %2043 = vmatpush1.msra.mxu0 0.0
  %2044 = vmatprep.subr.mxu0 0.0
  %2045 = vmatpush1.msra.mxu0 0.0
  %2046 = vmatprep.subr.mxu0 0.0
  %2047 = vmatpush1.msra.mxu0 0.0
  %2048 = vmatprep.subr.mxu0 0.0
  %2049 = vmatpush1.msra.mxu0 0.0
  %2050 = vmatprep.subr.mxu0 0.0
  %2051 = vmatpush1.msra.mxu0 0.0
  %2052 = vmatprep.subr.mxu0 0.0
  %2053 = vmatpush1.msra.mxu0 0.0
  %2054 = vmatprep.subr.mxu0 0.0
  %2055 = vmatpush1.msra.mxu0 0.0
  %2056 = vmatprep.subr.mxu0 0.0
  %2057 = vmatpush1.msra.mxu0 0.0
  %2058 = vmatprep.subr.mxu0 0.0
  %2059 = vmatpush1.msra.mxu0 0.0
  %2060 = vmatprep.subr.mxu0 0.0
  %2061 = vmatpush1.msra.mxu0 0.0
  %2062 = vmatprep.subr.mxu0 0.0
  %2063 = vmatpush1.msra.mxu0 0.0
  %2064 = vmatprep.subr.mxu0 0.0
  %2065 = vmatpush1.msra.mxu0 0.0
  %2066 = vmatprep.subr.mxu0 0.0
  %2067 = vmatpush1.msra.mxu0 0.0
  %2068 = vmatprep.subr.mxu0 0.0
  %2069 = vmatpush1.msra.mxu0 0.0
  %2070 = vmatprep.subr.mxu0 0.0
  %2071 = vmatpush1.msra.mxu0 0.0
  %2072 = vmatprep.subr.mxu0 0.0
  %2073 = vmatpush1.msra.mxu0 0.0
  %2074 = vmatprep.subr.mxu0 0.0
  %2075 = vmatpush1.msra.mxu0 0.0
  %2076 = vmatprep.mubr.f32.mxu0 0.0
  %2077 = vmatmul.mubr.f32.gmra.mrb[0].mxu0 %v2010
  %v2078 = vpop.f32.mrb[0].mxu0
  %v2079 = vadd.f32 0.0, %v2078
  %v2080 = vpop.f32.mrb[0].mxu0
  %v2081 = vadd.f32 0.0, %v2080
  %2082 = vdwg.mxu0
  %v2083 = vlaneseq
  %v2084 = vshrl.u32 %v2083, 7
  %v2085 = vsub.s32 0, %v2084
  %v2086 = vrot.slane %v33, %v2085
  %v2087 = vadd.f32 %v2081, %v2086
  %v2088 = vxor.u32 %v2087, 2147483648
  %v2089 = vmul.f32 %v2088, 1.442695
  %v2090 = vpow.pop %v2089
  %v2091 = vadd.f32 %v2090, 1.0
  %v2092 = vrcp.pop %v2091
  %v2093 = vmul.f32 1.0, %v2092
  %v2094 = vmul.f32 %v2093, 2.0
  %v2095 = vsub.f32 %v2094, 1.0
  %v2096 = vmul.f32 %v2093, 0.0
  %2098 = vrot.lane.b32.xlu0 %v2095, 64
  %v2099 = vpop.permute.xlu0 %2098
  %v2101 = vmul.f32 %v2093, %v2099
  %2103 = vrot.lane.b32.xlu0 %v2101, 32
  %v2104 = vpop.permute.xlu0 %2103
  %v2106 = vadd.f32 %v2096, %v2104
  %v2107 = vtanh.pop %v2106
  %2109 = vrot.lane.b32.xlu0 %v2107, 64
  %v2110 = vpop.permute.xlu0 %2109
  %v2112 = vmul.f32 %v2093, %v2110
  %2114 = vrot.lane.b32.xlu0 %v2112, 32
  %v2115 = vpop.permute.xlu0 %2114
  %v2116 = vsel %vm1834, %v2115, 0
  %2118 = vmatprep.subr.mxu0 0.0
  %2119 = vmatpush1.msra.mxu0 %v24
  %2120 = vmatprep.subr.mxu0 0.0
  %2121 = vmatpush1.msra.mxu0 %v25
  %2122 = vmatprep.subr.mxu0 0.0
  %2123 = vmatpush1.msra.mxu0 %v26
  %2124 = vmatprep.subr.mxu0 0.0
  %2125 = vmatpush1.msra.mxu0 %v27
  %2126 = vmatprep.subr.mxu0 0.0
  %2127 = vmatpush1.msra.mxu0 0.0
  %2128 = vmatprep.subr.mxu0 0.0
  %2129 = vmatpush1.msra.mxu0 0.0
  %2130 = vmatprep.subr.mxu0 0.0
  %2131 = vmatpush1.msra.mxu0 0.0
  %2132 = vmatprep.subr.mxu0 0.0
  %2133 = vmatpush1.msra.mxu0 0.0
  %2134 = vmatprep.subr.mxu0 0.0
  %2135 = vmatpush1.msra.mxu0 0.0
  %2136 = vmatprep.subr.mxu0 0.0
  %2137 = vmatpush1.msra.mxu0 0.0
  %2138 = vmatprep.subr.mxu0 0.0
  %2139 = vmatpush1.msra.mxu0 0.0
  %2140 = vmatprep.subr.mxu0 0.0
  %2141 = vmatpush1.msra.mxu0 0.0
  %2142 = vmatprep.subr.mxu0 0.0
  %2143 = vmatpush1.msra.mxu0 0.0
  %2144 = vmatprep.subr.mxu0 0.0
  %2145 = vmatpush1.msra.mxu0 0.0
  %2146 = vmatprep.subr.mxu0 0.0
  %2147 = vmatpush1.msra.mxu0 0.0
  %2148 = vmatprep.subr.mxu0 0.0
  %2149 = vmatpush1.msra.mxu0 0.0
  %2150 = vmatprep.subr.mxu0 0.0
  %2151 = vmatpush1.msra.mxu0 0.0
  %2152 = vmatprep.subr.mxu0 0.0
  %2153 = vmatpush1.msra.mxu0 0.0
  %2154 = vmatprep.subr.mxu0 0.0
  %2155 = vmatpush1.msra.mxu0 0.0
  %2156 = vmatprep.subr.mxu0 0.0
  %2157 = vmatpush1.msra.mxu0 0.0
  %2158 = vmatprep.subr.mxu0 0.0
  %2159 = vmatpush1.msra.mxu0 0.0
  %2160 = vmatprep.subr.mxu0 0.0
  %2161 = vmatpush1.msra.mxu0 0.0
  %2162 = vmatprep.subr.mxu0 0.0
  %2163 = vmatpush1.msra.mxu0 0.0
  %2164 = vmatprep.subr.mxu0 0.0
  %2165 = vmatpush1.msra.mxu0 0.0
  %2166 = vmatprep.subr.mxu0 0.0
  %2167 = vmatpush1.msra.mxu0 0.0
  %2168 = vmatprep.subr.mxu0 0.0
  %2169 = vmatpush1.msra.mxu0 0.0
  %2170 = vmatprep.subr.mxu0 0.0
  %2171 = vmatpush1.msra.mxu0 0.0
  %2172 = vmatprep.subr.mxu0 0.0
  %2173 = vmatpush1.msra.mxu0 0.0
  %2174 = vmatprep.subr.mxu0 0.0
  %2175 = vmatpush1.msra.mxu0 0.0
  %2176 = vmatprep.subr.mxu0 0.0
  %2177 = vmatpush1.msra.mxu0 0.0
  %2178 = vmatprep.subr.mxu0 0.0
  %2179 = vmatpush1.msra.mxu0 0.0
  %2180 = vmatprep.subr.mxu0 0.0
  %2181 = vmatpush1.msra.mxu0 0.0
  %2182 = vmatprep.mubr.f32.mxu0 0.0
  %2183 = vmatmul.mubr.f32.gmra.mrb[0].mxu0 %v2116
  %v2184 = vpop.f32.mrb[0].mxu0
  %v2185 = vadd.f32 0.0, %v2184
  %v2186 = vpop.f32.mrb[0].mxu0
  %2187 = vdwg.mxu0
  %2189 = vst.msk [vmem:[#allocation3] sm:$0xff] %vm1834, %v2115
  %v2190 = vld [vmem:[#allocation2 + $0x8] sm:$0xff]
  %v2191 = vadd.f32 %v2190, %v2079
  %v2192 = vxor.u32 %v2191, 2147483648
  %v2193 = vmul.f32 %v2192, 1.442695
  %v2194 = vpow.pop %v2193
  %v2195 = vadd.f32 %v2194, 1.0
  %v2196 = vrcp.pop %v2195
  %v2197 = vmul.f32 1.0, %v2196
  %v2198 = vmul.f32 %v2197, 2.0
  %v2199 = vsub.f32 %v2198, 1.0
  %v2200 = vmul.f32 %v2197, %v2000
  %2202 = vrot.lane.b32.xlu0 %v2199, 64
  %v2203 = vpop.permute.xlu0 %2202
  %v2205 = vmul.f32 %v2197, %v2203
  %2207 = vrot.lane.b32.xlu0 %v2205, 32
  %v2208 = vpop.permute.xlu0 %2207
  %v2210 = vadd.f32 %v2200, %v2208
  %v2211 = vtanh.pop %v2210
  %2213 = vrot.lane.b32.xlu0 %v2211, 64
  %v2214 = vpop.permute.xlu0 %2213
  %v2216 = vmul.f32 %v2197, %v2214
  %2218 = vrot.lane.b32.xlu0 %v2216, 32
  %v2219 = vpop.permute.xlu0 %2218
  %v2220 = vsel %vm1834, %v2219, 0
  %2222 = vmatprep.subr.mxu0 %v36
  %2223 = vmatpush1.msra.mxu0 %v35
  %2224 = vmatprep.subr.mxu0 %v38
  %2225 = vmatpush1.msra.mxu0 %v37
  %2226 = vmatprep.subr.mxu0 %v40
  %2227 = vmatpush1.msra.mxu0 %v39
  %2228 = vmatprep.subr.mxu0 %v42
  %2229 = vmatpush1.msra.mxu0 %v41
  %2230 = vmatprep.subr.mxu0 0.0
  %2231 = vmatpush1.msra.mxu0 0.0
  %2232 = vmatprep.subr.mxu0 0.0
  %2233 = vmatpush1.msra.mxu0 0.0
  %2234 = vmatprep.subr.mxu0 0.0
  %2235 = vmatpush1.msra.mxu0 0.0
  %2236 = vmatprep.subr.mxu0 0.0
  %2237 = vmatpush1.msra.mxu0 0.0
  %2238 = vmatprep.subr.mxu0 0.0
  %2239 = vmatpush1.msra.mxu0 0.0
  %2240 = vmatprep.subr.mxu0 0.0
  %2241 = vmatpush1.msra.mxu0 0.0
  %2242 = vmatprep.subr.mxu0 0.0
  %2243 = vmatpush1.msra.mxu0 0.0
  %2244 = vmatprep.subr.mxu0 0.0
  %2245 = vmatpush1.msra.mxu0 0.0
  %2246 = vmatprep.subr.mxu0 0.0
  %2247 = vmatpush1.msra.mxu0 0.0
  %2248 = vmatprep.subr.mxu0 0.0
  %2249 = vmatpush1.msra.mxu0 0.0
  %2250 = vmatprep.subr.mxu0 0.0
  %2251 = vmatpush1.msra.mxu0 0.0
  %2252 = vmatprep.subr.mxu0 0.0
  %2253 = vmatpush1.msra.mxu0 0.0
  %2254 = vmatprep.subr.mxu0 0.0
  %2255 = vmatpush1.msra.mxu0 0.0
  %2256 = vmatprep.subr.mxu0 0.0
  %2257 = vmatpush1.msra.mxu0 0.0
  %2258 = vmatprep.subr.mxu0 0.0
  %2259 = vmatpush1.msra.mxu0 0.0
  %2260 = vmatprep.subr.mxu0 0.0
  %2261 = vmatpush1.msra.mxu0 0.0
  %2262 = vmatprep.subr.mxu0 0.0
  %2263 = vmatpush1.msra.mxu0 0.0
  %2264 = vmatprep.subr.mxu0 0.0
  %2265 = vmatpush1.msra.mxu0 0.0
  %2266 = vmatprep.subr.mxu0 0.0
  %2267 = vmatpush1.msra.mxu0 0.0
  %2268 = vmatprep.subr.mxu0 0.0
  %2269 = vmatpush1.msra.mxu0 0.0
  %2270 = vmatprep.subr.mxu0 0.0
  %2271 = vmatpush1.msra.mxu0 0.0
  %2272 = vmatprep.subr.mxu0 0.0
  %2273 = vmatpush1.msra.mxu0 0.0
  %2274 = vmatprep.subr.mxu0 0.0
  %2275 = vmatpush1.msra.mxu0 0.0
  %2276 = vmatprep.subr.mxu0 0.0
  %2277 = vmatpush1.msra.mxu0 0.0
  %2278 = vmatprep.subr.mxu0 0.0
  %2279 = vmatpush1.msra.mxu0 0.0
  %2280 = vmatprep.subr.mxu0 0.0
  %2281 = vmatpush1.msra.mxu0 0.0
  %2282 = vmatprep.subr.mxu0 0.0
  %2283 = vmatpush1.msra.mxu0 0.0
  %2284 = vmatprep.subr.mxu0 0.0
  %2285 = vmatpush1.msra.mxu0 0.0
  %2286 = vmatprep.mubr.f32.mxu0 0.0
  %2287 = vmatmul.mubr.f32.gmra.mrb[0].mxu0 %v2220
  %v2288 = vpop.f32.mrb[0].mxu0
  %v2289 = vadd.f32 0.0, %v2288
  %v2290 = vpop.f32.mrb[0].mxu0
  %v2291 = vadd.f32 0.0, %v2290
  %2292 = vdwg.mxu0
  %v2293 = vadd.f32 %v2291, %v2185
  %v2294 = vadd.f32 %v2293, %v2086
  %v2295 = vxor.u32 %v2294, 2147483648
  %v2296 = vmul.f32 %v2295, 1.442695
  %v2297 = vpow.pop %v2296
  %v2298 = vadd.f32 %v2297, 1.0
  %v2299 = vrcp.pop %v2298
  %v2300 = vmul.f32 1.0, %v2299
  %v2301 = vmul.f32 %v2300, 2.0
  %v2302 = vsub.f32 %v2301, 1.0
  %v2303 = vmul.f32 %v2300, %v2106
  %2305 = vrot.lane.b32.xlu0 %v2302, 64
  %v2306 = vpop.permute.xlu0 %2305
  %v2308 = vmul.f32 %v2300, %v2306
  %2310 = vrot.lane.b32.xlu0 %v2308, 32
  %v2311 = vpop.permute.xlu0 %2310
  %v2313 = vadd.f32 %v2303, %v2311
  %v2314 = vtanh.pop %v2313
  %2316 = vrot.lane.b32.xlu0 %v2314, 64
  %v2317 = vpop.permute.xlu0 %2316
  %v2319 = vmul.f32 %v2300, %v2317
  %2321 = vrot.lane.b32.xlu0 %v2319, 32
  %v2322 = vpop.permute.xlu0 %2321
  %v2323 = vsel %vm1834, %v2322, 0
  %2325 = vmatprep.subr.mxu0 0.0
  %2326 = vmatpush1.msra.mxu0 %v24
  %2327 = vmatprep.subr.mxu0 0.0
  %2328 = vmatpush1.msra.mxu0 %v25
  %2329 = vmatprep.subr.mxu0 0.0
  %2330 = vmatpush1.msra.mxu0 %v26
  %2331 = vmatprep.subr.mxu0 0.0
  %2332 = vmatpush1.msra.mxu0 %v27
  %2333 = vmatprep.subr.mxu0 0.0
  %2334 = vmatpush1.msra.mxu0 0.0
  %2335 = vmatprep.subr.mxu0 0.0
  %2336 = vmatpush1.msra.mxu0 0.0
  %2337 = vmatprep.subr.mxu0 0.0
  %2338 = vmatpush1.msra.mxu0 0.0
  %2339 = vmatprep.subr.mxu0 0.0
  %2340 = vmatpush1.msra.mxu0 0.0
  %2341 = vmatprep.subr.mxu0 0.0
  %2342 = vmatpush1.msra.mxu0 0.0
  %2343 = vmatprep.subr.mxu0 0.0
  %2344 = vmatpush1.msra.mxu0 0.0
  %2345 = vmatprep.subr.mxu0 0.0
  %2346 = vmatpush1.msra.mxu0 0.0
  %2347 = vmatprep.subr.mxu0 0.0
  %2348 = vmatpush1.msra.mxu0 0.0
  %2349 = vmatprep.subr.mxu0 0.0
  %2350 = vmatpush1.msra.mxu0 0.0
  %2351 = vmatprep.subr.mxu0 0.0
  %2352 = vmatpush1.msra.mxu0 0.0
  %2353 = vmatprep.subr.mxu0 0.0
  %2354 = vmatpush1.msra.mxu0 0.0
  %2355 = vmatprep.subr.mxu0 0.0
  %2356 = vmatpush1.msra.mxu0 0.0
  %2357 = vmatprep.subr.mxu0 0.0
  %2358 = vmatpush1.msra.mxu0 0.0
  %2359 = vmatprep.subr.mxu0 0.0
  %2360 = vmatpush1.msra.mxu0 0.0
  %2361 = vmatprep.subr.mxu0 0.0
  %2362 = vmatpush1.msra.mxu0 0.0
  %2363 = vmatprep.subr.mxu0 0.0
  %2364 = vmatpush1.msra.mxu0 0.0
  %2365 = vmatprep.subr.mxu0 0.0
  %2366 = vmatpush1.msra.mxu0 0.0
  %2367 = vmatprep.subr.mxu0 0.0
  %2368 = vmatpush1.msra.mxu0 0.0
  %2369 = vmatprep.subr.mxu0 0.0
  %2370 = vmatpush1.msra.mxu0 0.0
  %2371 = vmatprep.subr.mxu0 0.0
  %2372 = vmatpush1.msra.mxu0 0.0
  %2373 = vmatprep.subr.mxu0 0.0
  %2374 = vmatpush1.msra.mxu0 0.0
  %2375 = vmatprep.subr.mxu0 0.0
  %2376 = vmatpush1.msra.mxu0 0.0
  %2377 = vmatprep.subr.mxu0 0.0
  %2378 = vmatpush1.msra.mxu0 0.0
  %2379 = vmatprep.subr.mxu0 0.0
  %2380 = vmatpush1.msra.mxu0 0.0
  %2381 = vmatprep.subr.mxu0 0.0
  %2382 = vmatpush1.msra.mxu0 0.0
  %2383 = vmatprep.subr.mxu0 0.0
  %2384 = vmatpush1.msra.mxu0 0.0
  %2385 = vmatprep.subr.mxu0 0.0
  %2386 = vmatpush1.msra.mxu0 0.0
  %2387 = vmatprep.subr.mxu0 0.0
  %2388 = vmatpush1.msra.mxu0 0.0
  %2389 = vmatprep.mubr.f32.mxu0 0.0
  %2390 = vmatmul.mubr.f32.gmra.mrb[0].mxu0 %v2323
  %v2391 = vpop.f32.mrb[0].mxu0
  %v2392 = vadd.f32 0.0, %v2391
  %v2393 = vpop.f32.mrb[0].mxu0
  %2394 = vdwg.mxu0
  %2396 = vst.msk [vmem:[#allocation3 + $0x8] sm:$0xff] %vm1834, %v2322
  %v2397 = vld [vmem:[#allocation2 + $0x10] sm:$0xff]
  %v2398 = vadd.f32 %v2397, %v2289
  %v2399 = vxor.u32 %v2398, 2147483648
  %v2400 = vmul.f32 %v2399, 1.442695
  %v2401 = vpow.pop %v2400
  %v2402 = vadd.f32 %v2401, 1.0
  %v2403 = vrcp.pop %v2402
  %v2404 = vmul.f32 1.0, %v2403
  %v2405 = vmul.f32 %v2404, 2.0
  %v2406 = vsub.f32 %v2405, 1.0
  %v2407 = vmul.f32 %v2404, %v2210
  %2409 = vrot.lane.b32.xlu0 %v2406, 64
  %v2410 = vpop.permute.xlu0 %2409
  %v2412 = vmul.f32 %v2404, %v2410
  %2414 = vrot.lane.b32.xlu0 %v2412, 32
  %v2415 = vpop.permute.xlu0 %2414
  %v2417 = vadd.f32 %v2407, %v2415
  %v2418 = vtanh.pop %v2417
  %2420 = vrot.lane.b32.xlu0 %v2418, 64
  %v2421 = vpop.permute.xlu0 %2420
  %v2423 = vmul.f32 %v2404, %v2421
  %2425 = vrot.lane.b32.xlu0 %v2423, 32
  %v2426 = vpop.permute.xlu0 %2425
  %v2427 = vsel %vm1834, %v2426, 0
  %2429 = vmatprep.subr.mxu0 %v36
  %2430 = vmatpush1.msra.mxu0 %v35
  %2431 = vmatprep.subr.mxu0 %v38
  %2432 = vmatpush1.msra.mxu0 %v37
  %2433 = vmatprep.subr.mxu0 %v40
  %2434 = vmatpush1.msra.mxu0 %v39
  %2435 = vmatprep.subr.mxu0 %v42
  %2436 = vmatpush1.msra.mxu0 %v41
  %2437 = vmatprep.subr.mxu0 0.0
  %2438 = vmatpush1.msra.mxu0 0.0
  %2439 = vmatprep.subr.mxu0 0.0
  %2440 = vmatpush1.msra.mxu0 0.0
  %2441 = vmatprep.subr.mxu0 0.0
  %2442 = vmatpush1.msra.mxu0 0.0
  %2443 = vmatprep.subr.mxu0 0.0
  %2444 = vmatpush1.msra.mxu0 0.0
  %2445 = vmatprep.subr.mxu0 0.0
  %2446 = vmatpush1.msra.mxu0 0.0
  %2447 = vmatprep.subr.mxu0 0.0
  %2448 = vmatpush1.msra.mxu0 0.0
  %2449 = vmatprep.subr.mxu0 0.0
  %2450 = vmatpush1.msra.mxu0 0.0
  %2451 = vmatprep.subr.mxu0 0.0
  %2452 = vmatpush1.msra.mxu0 0.0
  %2453 = vmatprep.subr.mxu0 0.0
  %2454 = vmatpush1.msra.mxu0 0.0
  %2455 = vmatprep.subr.mxu0 0.0
  %2456 = vmatpush1.msra.mxu0 0.0
  %2457 = vmatprep.subr.mxu0 0.0
  %2458 = vmatpush1.msra.mxu0 0.0
  %2459 = vmatprep.subr.mxu0 0.0
  %2460 = vmatpush1.msra.mxu0 0.0
  %2461 = vmatprep.subr.mxu0 0.0
  %2462 = vmatpush1.msra.mxu0 0.0
  %2463 = vmatprep.subr.mxu0 0.0
  %2464 = vmatpush1.msra.mxu0 0.0
  %2465 = vmatprep.subr.mxu0 0.0
  %2466 = vmatpush1.msra.mxu0 0.0
  %2467 = vmatprep.subr.mxu0 0.0
  %2468 = vmatpush1.msra.mxu0 0.0
  %2469 = vmatprep.subr.mxu0 0.0
  %2470 = vmatpush1.msra.mxu0 0.0
  %2471 = vmatprep.subr.mxu0 0.0
  %2472 = vmatpush1.msra.mxu0 0.0
  %2473 = vmatprep.subr.mxu0 0.0
  %2474 = vmatpush1.msra.mxu0 0.0
  %2475 = vmatprep.subr.mxu0 0.0
  %2476 = vmatpush1.msra.mxu0 0.0
  %2477 = vmatprep.subr.mxu0 0.0
  %2478 = vmatpush1.msra.mxu0 0.0
  %2479 = vmatprep.subr.mxu0 0.0
  %2480 = vmatpush1.msra.mxu0 0.0
  %2481 = vmatprep.subr.mxu0 0.0
  %2482 = vmatpush1.msra.mxu0 0.0
  %2483 = vmatprep.subr.mxu0 0.0
  %2484 = vmatpush1.msra.mxu0 0.0
  %2485 = vmatprep.subr.mxu0 0.0
  %2486 = vmatpush1.msra.mxu0 0.0
  %2487 = vmatprep.subr.mxu0 0.0
  %2488 = vmatpush1.msra.mxu0 0.0
  %2489 = vmatprep.subr.mxu0 0.0
  %2490 = vmatpush1.msra.mxu0 0.0
  %2491 = vmatprep.subr.mxu0 0.0
  %2492 = vmatpush1.msra.mxu0 0.0
  %2493 = vmatprep.mubr.f32.mxu0 0.0
  %2494 = vmatmul.mubr.f32.gmra.mrb[0].mxu0 %v2427
  %v2495 = vpop.f32.mrb[0].mxu0
  %v2496 = vadd.f32 0.0, %v2495
  %v2497 = vpop.f32.mrb[0].mxu0
  %v2498 = vadd.f32 0.0, %v2497
  %2499 = vdwg.mxu0
  %v2500 = vadd.f32 %v2498, %v2392
  %v2501 = vadd.f32 %v2500, %v2086
  %v2502 = vxor.u32 %v2501, 2147483648
  %v2503 = vmul.f32 %v2502, 1.442695
  %v2504 = vpow.pop %v2503
  %v2505 = vadd.f32 %v2504, 1.0
  %v2506 = vrcp.pop %v2505
  %v2507 = vmul.f32 1.0, %v2506
  %v2508 = vmul.f32 %v2507, 2.0
  %v2509 = vsub.f32 %v2508, 1.0
  %v2510 = vmul.f32 %v2507, %v2313
  %2512 = vrot.lane.b32.xlu0 %v2509, 64
  %v2513 = vpop.permute.xlu0 %2512
  %v2515 = vmul.f32 %v2507, %v2513
  %2517 = vrot.lane.b32.xlu0 %v2515, 32
  %v2518 = vpop.permute.xlu0 %2517
  %v2520 = vadd.f32 %v2510, %v2518
  %v2521 = vtanh.pop %v2520
  %2523 = vrot.lane.b32.xlu0 %v2521, 64
  %v2524 = vpop.permute.xlu0 %2523
  %v2526 = vmul.f32 %v2507, %v2524
  %2528 = vrot.lane.b32.xlu0 %v2526, 32
  %v2529 = vpop.permute.xlu0 %2528
  %v2530 = vsel %vm1834, %v2529, 0
  %2532 = vmatprep.subr.mxu0 0.0
  %2533 = vmatpush1.msra.mxu0 %v24
  %2534 = vmatprep.subr.mxu0 0.0
  %2535 = vmatpush1.msra.mxu0 %v25
  %2536 = vmatprep.subr.mxu0 0.0
  %2537 = vmatpush1.msra.mxu0 %v26
  %2538 = vmatprep.subr.mxu0 0.0
  %2539 = vmatpush1.msra.mxu0 %v27
  %2540 = vmatprep.subr.mxu0 0.0
  %2541 = vmatpush1.msra.mxu0 0.0
  %2542 = vmatprep.subr.mxu0 0.0
  %2543 = vmatpush1.msra.mxu0 0.0
  %2544 = vmatprep.subr.mxu0 0.0
  %2545 = vmatpush1.msra.mxu0 0.0
  %2546 = vmatprep.subr.mxu0 0.0
  %2547 = vmatpush1.msra.mxu0 0.0
  %2548 = vmatprep.subr.mxu0 0.0
  %2549 = vmatpush1.msra.mxu0 0.0
  %2550 = vmatprep.subr.mxu0 0.0
  %2551 = vmatpush1.msra.mxu0 0.0
  %2552 = vmatprep.subr.mxu0 0.0
  %2553 = vmatpush1.msra.mxu0 0.0
  %2554 = vmatprep.subr.mxu0 0.0
  %2555 = vmatpush1.msra.mxu0 0.0
  %2556 = vmatprep.subr.mxu0 0.0
  %2557 = vmatpush1.msra.mxu0 0.0
  %2558 = vmatprep.subr.mxu0 0.0
  %2559 = vmatpush1.msra.mxu0 0.0
  %2560 = vmatprep.subr.mxu0 0.0
  %2561 = vmatpush1.msra.mxu0 0.0
  %2562 = vmatprep.subr.mxu0 0.0
  %2563 = vmatpush1.msra.mxu0 0.0
  %2564 = vmatprep.subr.mxu0 0.0
  %2565 = vmatpush1.msra.mxu0 0.0
  %2566 = vmatprep.subr.mxu0 0.0
  %2567 = vmatpush1.msra.mxu0 0.0
  %2568 = vmatprep.subr.mxu0 0.0
  %2569 = vmatpush1.msra.mxu0 0.0
  %2570 = vmatprep.subr.mxu0 0.0
  %2571 = vmatpush1.msra.mxu0 0.0
  %2572 = vmatprep.subr.mxu0 0.0
  %2573 = vmatpush1.msra.mxu0 0.0
  %2574 = vmatprep.subr.mxu0 0.0
  %2575 = vmatpush1.msra.mxu0 0.0
  %2576 = vmatprep.subr.mxu0 0.0
  %2577 = vmatpush1.msra.mxu0 0.0
  %2578 = vmatprep.subr.mxu0 0.0
  %2579 = vmatpush1.msra.mxu0 0.0
  %2580 = vmatprep.subr.mxu0 0.0
  %2581 = vmatpush1.msra.mxu0 0.0
  %2582 = vmatprep.subr.mxu0 0.0
  %2583 = vmatpush1.msra.mxu0 0.0
  %2584 = vmatprep.subr.mxu0 0.0
  %2585 = vmatpush1.msra.mxu0 0.0
  %2586 = vmatprep.subr.mxu0 0.0
  %2587 = vmatpush1.msra.mxu0 0.0
  %2588 = vmatprep.subr.mxu0 0.0
  %2589 = vmatpush1.msra.mxu0 0.0
  %2590 = vmatprep.subr.mxu0 0.0
  %2591 = vmatpush1.msra.mxu0 0.0
  %2592 = vmatprep.subr.mxu0 0.0
  %2593 = vmatpush1.msra.mxu0 0.0
  %2594 = vmatprep.subr.mxu0 0.0
  %2595 = vmatpush1.msra.mxu0 0.0
  %2596 = vmatprep.mubr.f32.mxu0 0.0
  %2597 = vmatmul.mubr.f32.gmra.mrb[0].mxu0 %v2530
  %v2598 = vpop.f32.mrb[0].mxu0
  %v2599 = vadd.f32 0.0, %v2598
  %v2600 = vpop.f32.mrb[0].mxu0
  %2601 = vdwg.mxu0
  %2603 = vst.msk [vmem:[#allocation3 + $0x10] sm:$0xff] %vm1834, %v2529
  %v2604 = vld [vmem:[#allocation2 + $0x18] sm:$0xff]
  %v2605 = vadd.f32 %v2604, %v2496
  %v2606 = vxor.u32 %v2605, 2147483648
  %v2607 = vmul.f32 %v2606, 1.442695
  %v2608 = vpow.pop %v2607
  %v2609 = vadd.f32 %v2608, 1.0
  %v2610 = vrcp.pop %v2609
  %v2611 = vmul.f32 1.0, %v2610
  %v2612 = vmul.f32 %v2611, 2.0
  %v2613 = vsub.f32 %v2612, 1.0
  %v2614 = vmul.f32 %v2611, %v2417
  %2616 = vrot.lane.b32.xlu0 %v2613, 64
  %v2617 = vpop.permute.xlu0 %2616
  %v2619 = vmul.f32 %v2611, %v2617
  %2621 = vrot.lane.b32.xlu0 %v2619, 32
  %v2622 = vpop.permute.xlu0 %2621
  %v2624 = vadd.f32 %v2614, %v2622
  %v2625 = vtanh.pop %v2624
  %2627 = vrot.lane.b32.xlu0 %v2625, 64
  %v2628 = vpop.permute.xlu0 %2627
  %v2630 = vmul.f32 %v2611, %v2628
  %2632 = vrot.lane.b32.xlu0 %v2630, 32
  %v2633 = vpop.permute.xlu0 %2632
  %v2634 = vsel %vm1834, %v2633, 0
  %2636 = vmatprep.subr.mxu0 %v36
  %2637 = vmatpush1.msra.mxu0 %v35
  %2638 = vmatprep.subr.mxu0 %v38
  %2639 = vmatpush1.msra.mxu0 %v37
  %2640 = vmatprep.subr.mxu0 %v40
  %2641 = vmatpush1.msra.mxu0 %v39
  %2642 = vmatprep.subr.mxu0 %v42
  %2643 = vmatpush1.msra.mxu0 %v41
  %2644 = vmatprep.subr.mxu0 0.0
  %2645 = vmatpush1.msra.mxu0 0.0
  %2646 = vmatprep.subr.mxu0 0.0
  %2647 = vmatpush1.msra.mxu0 0.0
  %2648 = vmatprep.subr.mxu0 0.0
  %2649 = vmatpush1.msra.mxu0 0.0
  %2650 = vmatprep.subr.mxu0 0.0
  %2651 = vmatpush1.msra.mxu0 0.0
  %2652 = vmatprep.subr.mxu0 0.0
  %2653 = vmatpush1.msra.mxu0 0.0
  %2654 = vmatprep.subr.mxu0 0.0
  %2655 = vmatpush1.msra.mxu0 0.0
  %2656 = vmatprep.subr.mxu0 0.0
  %2657 = vmatpush1.msra.mxu0 0.0
  %2658 = vmatprep.subr.mxu0 0.0
  %2659 = vmatpush1.msra.mxu0 0.0
  %2660 = vmatprep.subr.mxu0 0.0
  %2661 = vmatpush1.msra.mxu0 0.0
  %2662 = vmatprep.subr.mxu0 0.0
  %2663 = vmatpush1.msra.mxu0 0.0
  %2664 = vmatprep.subr.mxu0 0.0
  %2665 = vmatpush1.msra.mxu0 0.0
  %2666 = vmatprep.subr.mxu0 0.0
  %2667 = vmatpush1.msra.mxu0 0.0
  %2668 = vmatprep.subr.mxu0 0.0
  %2669 = vmatpush1.msra.mxu0 0.0
  %2670 = vmatprep.subr.mxu0 0.0
  %2671 = vmatpush1.msra.mxu0 0.0
  %2672 = vmatprep.subr.mxu0 0.0
  %2673 = vmatpush1.msra.mxu0 0.0
  %2674 = vmatprep.subr.mxu0 0.0
  %2675 = vmatpush1.msra.mxu0 0.0
  %2676 = vmatprep.subr.mxu0 0.0
  %2677 = vmatpush1.msra.mxu0 0.0
  %2678 = vmatprep.subr.mxu0 0.0
  %2679 = vmatpush1.msra.mxu0 0.0
  %2680 = vmatprep.subr.mxu0 0.0
  %2681 = vmatpush1.msra.mxu0 0.0
  %2682 = vmatprep.subr.mxu0 0.0
  %2683 = vmatpush1.msra.mxu0 0.0
  %2684 = vmatprep.subr.mxu0 0.0
  %2685 = vmatpush1.msra.mxu0 0.0
  %2686 = vmatprep.subr.mxu0 0.0
  %2687 = vmatpush1.msra.mxu0 0.0
  %2688 = vmatprep.subr.mxu0 0.0
  %2689 = vmatpush1.msra.mxu0 0.0
  %2690 = vmatprep.subr.mxu0 0.0
  %2691 = vmatpush1.msra.mxu0 0.0
  %2692 = vmatprep.subr.mxu0 0.0
  %2693 = vmatpush1.msra.mxu0 0.0
  %2694 = vmatprep.subr.mxu0 0.0
  %2695 = vmatpush1.msra.mxu0 0.0
  %2696 = vmatprep.subr.mxu0 0.0
  %2697 = vmatpush1.msra.mxu0 0.0
  %2698 = vmatprep.subr.mxu0 0.0
  %2699 = vmatpush1.msra.mxu0 0.0
  %2700 = vmatprep.mubr.f32.mxu0 0.0
  %2701 = vmatmul.mubr.f32.gmra.mrb[0].mxu0 %v2634
  %v2702 = vpop.f32.mrb[0].mxu0
  %v2703 = vadd.f32 0.0, %v2702
  %v2704 = vpop.f32.mrb[0].mxu0
  %v2705 = vadd.f32 0.0, %v2704
  %2706 = vdwg.mxu0
  %v2707 = vadd.f32 %v2705, %v2599
  %v2708 = vadd.f32 %v2707, %v2086
  %v2709 = vxor.u32 %v2708, 2147483648
  %v2710 = vmul.f32 %v2709, 1.442695
  %v2711 = vpow.pop %v2710
  %v2712 = vadd.f32 %v2711, 1.0
  %v2713 = vrcp.pop %v2712
  %v2714 = vmul.f32 1.0, %v2713
  %v2715 = vmul.f32 %v2714, 2.0
  %v2716 = vsub.f32 %v2715, 1.0
  %v2717 = vmul.f32 %v2714, %v2520
  %2719 = vrot.lane.b32.xlu0 %v2716, 64
  %v2720 = vpop.permute.xlu0 %2719
  %v2722 = vmul.f32 %v2714, %v2720
  %2724 = vrot.lane.b32.xlu0 %v2722, 32
  %v2725 = vpop.permute.xlu0 %2724
  %v2727 = vadd.f32 %v2717, %v2725
  %v2728 = vtanh.pop %v2727
  %2730 = vrot.lane.b32.xlu0 %v2728, 64
  %v2731 = vpop.permute.xlu0 %2730
  %v2733 = vmul.f32 %v2714, %v2731
  %2735 = vrot.lane.b32.xlu0 %v2733, 32
  %v2736 = vpop.permute.xlu0 %2735
  %v2737 = vsel %vm1834, %v2736, 0
  %2739 = vmatprep.subr.mxu0 0.0
  %2740 = vmatpush1.msra.mxu0 %v24
  %2741 = vmatprep.subr.mxu0 0.0
  %2742 = vmatpush1.msra.mxu0 %v25
  %2743 = vmatprep.subr.mxu0 0.0
  %2744 = vmatpush1.msra.mxu0 %v26
  %2745 = vmatprep.subr.mxu0 0.0
  %2746 = vmatpush1.msra.mxu0 %v27
  %2747 = vmatprep.subr.mxu0 0.0
  %2748 = vmatpush1.msra.mxu0 0.0
  %2749 = vmatprep.subr.mxu0 0.0
  %2750 = vmatpush1.msra.mxu0 0.0
  %2751 = vmatprep.subr.mxu0 0.0
  %2752 = vmatpush1.msra.mxu0 0.0
  %2753 = vmatprep.subr.mxu0 0.0
  %2754 = vmatpush1.msra.mxu0 0.0
  %2755 = vmatprep.subr.mxu0 0.0
  %2756 = vmatpush1.msra.mxu0 0.0
  %2757 = vmatprep.subr.mxu0 0.0
  %2758 = vmatpush1.msra.mxu0 0.0
  %2759 = vmatprep.subr.mxu0 0.0
  %2760 = vmatpush1.msra.mxu0 0.0
  %2761 = vmatprep.subr.mxu0 0.0
  %2762 = vmatpush1.msra.mxu0 0.0
  %2763 = vmatprep.subr.mxu0 0.0
  %2764 = vmatpush1.msra.mxu0 0.0
  %2765 = vmatprep.subr.mxu0 0.0
  %2766 = vmatpush1.msra.mxu0 0.0
  %2767 = vmatprep.subr.mxu0 0.0
  %2768 = vmatpush1.msra.mxu0 0.0
  %2769 = vmatprep.subr.mxu0 0.0
  %2770 = vmatpush1.msra.mxu0 0.0
  %2771 = vmatprep.subr.mxu0 0.0
  %2772 = vmatpush1.msra.mxu0 0.0
  %2773 = vmatprep.subr.mxu0 0.0
  %2774 = vmatpush1.msra.mxu0 0.0
  %2775 = vmatprep.subr.mxu0 0.0
  %2776 = vmatpush1.msra.mxu0 0.0
  %2777 = vmatprep.subr.mxu0 0.0
  %2778 = vmatpush1.msra.mxu0 0.0
  %2779 = vmatprep.subr.mxu0 0.0
  %2780 = vmatpush1.msra.mxu0 0.0
  %2781 = vmatprep.subr.mxu0 0.0
  %2782 = vmatpush1.msra.mxu0 0.0
  %2783 = vmatprep.subr.mxu0 0.0
  %2784 = vmatpush1.msra.mxu0 0.0
  %2785 = vmatprep.subr.mxu0 0.0
  %2786 = vmatpush1.msra.mxu0 0.0
  %2787 = vmatprep.subr.mxu0 0.0
  %2788 = vmatpush1.msra.mxu0 0.0
  %2789 = vmatprep.subr.mxu0 0.0
  %2790 = vmatpush1.msra.mxu0 0.0
  %2791 = vmatprep.subr.mxu0 0.0
  %2792 = vmatpush1.msra.mxu0 0.0
  %2793 = vmatprep.subr.mxu0 0.0
  %2794 = vmatpush1.msra.mxu0 0.0
  %2795 = vmatprep.subr.mxu0 0.0
  %2796 = vmatpush1.msra.mxu0 0.0
  %2797 = vmatprep.subr.mxu0 0.0
  %2798 = vmatpush1.msra.mxu0 0.0
  %2799 = vmatprep.subr.mxu0 0.0
  %2800 = vmatpush1.msra.mxu0 0.0
  %2801 = vmatprep.subr.mxu0 0.0
  %2802 = vmatpush1.msra.mxu0 0.0
  %2803 = vmatprep.mubr.f32.mxu0 0.0
  %2804 = vmatmul.mubr.f32.gmra.mrb[0].mxu0 %v2737
  %v2805 = vpop.f32.mrb[0].mxu0
  %v2806 = vadd.f32 0.0, %v2805
  %v2807 = vpop.f32.mrb[0].mxu0
  %2808 = vdwg.mxu0
  %2810 = vst.msk [vmem:[#allocation3 + $0x18] sm:$0xff] %vm1834, %v2736
  %v2811 = vld [vmem:[#allocation2 + $0x20] sm:$0xff]
  %v2812 = vadd.f32 %v2811, %v2703
  %v2813 = vxor.u32 %v2812, 2147483648
  %v2814 = vmul.f32 %v2813, 1.442695
  %v2815 = vpow.pop %v2814
  %v2816 = vadd.f32 %v2815, 1.0
  %v2817 = vrcp.pop %v2816
  %v2818 = vmul.f32 1.0, %v2817
  %v2819 = vmul.f32 %v2818, 2.0
  %v2820 = vsub.f32 %v2819, 1.0
  %v2821 = vmul.f32 %v2818, %v2624
  %2823 = vrot.lane.b32.xlu0 %v2820, 64
  %v2824 = vpop.permute.xlu0 %2823
  %v2826 = vmul.f32 %v2818, %v2824
  %2828 = vrot.lane.b32.xlu0 %v2826, 32
  %v2829 = vpop.permute.xlu0 %2828
  %v2831 = vadd.f32 %v2821, %v2829
  %v2832 = vtanh.pop %v2831
  %2834 = vrot.lane.b32.xlu0 %v2832, 64
  %v2835 = vpop.permute.xlu0 %2834
  %v2837 = vmul.f32 %v2818, %v2835
  %2839 = vrot.lane.b32.xlu0 %v2837, 32
  %v2840 = vpop.permute.xlu0 %2839
  %v2841 = vsel %vm1834, %v2840, 0
  %2843 = vmatprep.subr.mxu0 %v36
  %2844 = vmatpush1.msra.mxu0 %v35
  %2845 = vmatprep.subr.mxu0 %v38
  %2846 = vmatpush1.msra.mxu0 %v37
  %2847 = vmatprep.subr.mxu0 %v40
  %2848 = vmatpush1.msra.mxu0 %v39
  %2849 = vmatprep.subr.mxu0 %v42
  %2850 = vmatpush1.msra.mxu0 %v41
  %2851 = vmatprep.subr.mxu0 0.0
  %2852 = vmatpush1.msra.mxu0 0.0
  %2853 = vmatprep.subr.mxu0 0.0
  %2854 = vmatpush1.msra.mxu0 0.0
  %2855 = vmatprep.subr.mxu0 0.0
  %2856 = vmatpush1.msra.mxu0 0.0
  %2857 = vmatprep.subr.mxu0 0.0
  %2858 = vmatpush1.msra.mxu0 0.0
  %2859 = vmatprep.subr.mxu0 0.0
  %2860 = vmatpush1.msra.mxu0 0.0
  %2861 = vmatprep.subr.mxu0 0.0
  %2862 = vmatpush1.msra.mxu0 0.0
  %2863 = vmatprep.subr.mxu0 0.0
  %2864 = vmatpush1.msra.mxu0 0.0
  %2865 = vmatprep.subr.mxu0 0.0
  %2866 = vmatpush1.msra.mxu0 0.0
  %2867 = vmatprep.subr.mxu0 0.0
  %2868 = vmatpush1.msra.mxu0 0.0
  %2869 = vmatprep.subr.mxu0 0.0
  %2870 = vmatpush1.msra.mxu0 0.0
  %2871 = vmatprep.subr.mxu0 0.0
  %2872 = vmatpush1.msra.mxu0 0.0
  %2873 = vmatprep.subr.mxu0 0.0
  %2874 = vmatpush1.msra.mxu0 0.0
  %2875 = vmatprep.subr.mxu0 0.0
  %2876 = vmatpush1.msra.mxu0 0.0
  %2877 = vmatprep.subr.mxu0 0.0
  %2878 = vmatpush1.msra.mxu0 0.0
  %2879 = vmatprep.subr.mxu0 0.0
  %2880 = vmatpush1.msra.mxu0 0.0
  %2881 = vmatprep.subr.mxu0 0.0
  %2882 = vmatpush1.msra.mxu0 0.0
  %2883 = vmatprep.subr.mxu0 0.0
  %2884 = vmatpush1.msra.mxu0 0.0
  %2885 = vmatprep.subr.mxu0 0.0
  %2886 = vmatpush1.msra.mxu0 0.0
  %2887 = vmatprep.subr.mxu0 0.0
  %2888 = vmatpush1.msra.mxu0 0.0
  %2889 = vmatprep.subr.mxu0 0.0
  %2890 = vmatpush1.msra.mxu0 0.0
  %2891 = vmatprep.subr.mxu0 0.0
  %2892 = vmatpush1.msra.mxu0 0.0
  %2893 = vmatprep.subr.mxu0 0.0
  %2894 = vmatpush1.msra.mxu0 0.0
  %2895 = vmatprep.subr.mxu0 0.0
  %2896 = vmatpush1.msra.mxu0 0.0
  %2897 = vmatprep.subr.mxu0 0.0
  %2898 = vmatpush1.msra.mxu0 0.0
  %2899 = vmatprep.subr.mxu0 0.0
  %2900 = vmatpush1.msra.mxu0 0.0
  %2901 = vmatprep.subr.mxu0 0.0
  %2902 = vmatpush1.msra.mxu0 0.0
  %2903 = vmatprep.subr.mxu0 0.0
  %2904 = vmatpush1.msra.mxu0 0.0
  %2905 = vmatprep.subr.mxu0 0.0
  %2906 = vmatpush1.msra.mxu0 0.0
  %2907 = vmatprep.mubr.f32.mxu0 0.0
  %2908 = vmatmul.mubr.f32.gmra.mrb[0].mxu0 %v2841
  %v2909 = vpop.f32.mrb[0].mxu0
  %v2910 = vadd.f32 0.0, %v2909
  %v2911 = vpop.f32.mrb[0].mxu0
  %v2912 = vadd.f32 0.0, %v2911
  %2913 = vdwg.mxu0
  %v2914 = vadd.f32 %v2912, %v2806
  %v2915 = vadd.f32 %v2914, %v2086
  %v2916 = vxor.u32 %v2915, 2147483648
  %v2917 = vmul.f32 %v2916, 1.442695
  %v2918 = vpow.pop %v2917
  %v2919 = vadd.f32 %v2918, 1.0
  %v2920 = vrcp.pop %v2919
  %v2921 = vmul.f32 1.0, %v2920
  %v2922 = vmul.f32 %v2921, 2.0
  %v2923 = vsub.f32 %v2922, 1.0
  %v2924 = vmul.f32 %v2921, %v2727
  %2926 = vrot.lane.b32.xlu0 %v2923, 64
  %v2927 = vpop.permute.xlu0 %2926
  %v2929 = vmul.f32 %v2921, %v2927
  %2931 = vrot.lane.b32.xlu0 %v2929, 32
  %v2932 = vpop.permute.xlu0 %2931
  %v2934 = vadd.f32 %v2924, %v2932
  %v2935 = vtanh.pop %v2934
  %2937 = vrot.lane.b32.xlu0 %v2935, 64
  %v2938 = vpop.permute.xlu0 %2937
  %v2940 = vmul.f32 %v2921, %v2938
  %2942 = vrot.lane.b32.xlu0 %v2940, 32
  %v2943 = vpop.permute.xlu0 %2942
  %v2944 = vsel %vm1834, %v2943, 0
  %2946 = vmatprep.subr.mxu0 0.0
  %2947 = vmatpush1.msra.mxu0 %v24
  %2948 = vmatprep.subr.mxu0 0.0
  %2949 = vmatpush1.msra.mxu0 %v25
  %2950 = vmatprep.subr.mxu0 0.0
  %2951 = vmatpush1.msra.mxu0 %v26
  %2952 = vmatprep.subr.mxu0 0.0
  %2953 = vmatpush1.msra.mxu0 %v27
  %2954 = vmatprep.subr.mxu0 0.0
  %2955 = vmatpush1.msra.mxu0 0.0
  %2956 = vmatprep.subr.mxu0 0.0
  %2957 = vmatpush1.msra.mxu0 0.0
  %2958 = vmatprep.subr.mxu0 0.0
  %2959 = vmatpush1.msra.mxu0 0.0
  %2960 = vmatprep.subr.mxu0 0.0
  %2961 = vmatpush1.msra.mxu0 0.0
  %2962 = vmatprep.subr.mxu0 0.0
  %2963 = vmatpush1.msra.mxu0 0.0
  %2964 = vmatprep.subr.mxu0 0.0
  %2965 = vmatpush1.msra.mxu0 0.0
  %2966 = vmatprep.subr.mxu0 0.0
  %2967 = vmatpush1.msra.mxu0 0.0
  %2968 = vmatprep.subr.mxu0 0.0
  %2969 = vmatpush1.msra.mxu0 0.0
  %2970 = vmatprep.subr.mxu0 0.0
  %2971 = vmatpush1.msra.mxu0 0.0
  %2972 = vmatprep.subr.mxu0 0.0
  %2973 = vmatpush1.msra.mxu0 0.0
  %2974 = vmatprep.subr.mxu0 0.0
  %2975 = vmatpush1.msra.mxu0 0.0
  %2976 = vmatprep.subr.mxu0 0.0
  %2977 = vmatpush1.msra.mxu0 0.0
  %2978 = vmatprep.subr.mxu0 0.0
  %2979 = vmatpush1.msra.mxu0 0.0
  %2980 = vmatprep.subr.mxu0 0.0
  %2981 = vmatpush1.msra.mxu0 0.0
  %2982 = vmatprep.subr.mxu0 0.0
  %2983 = vmatpush1.msra.mxu0 0.0
  %2984 = vmatprep.subr.mxu0 0.0
  %2985 = vmatpush1.msra.mxu0 0.0
  %2986 = vmatprep.subr.mxu0 0.0
  %2987 = vmatpush1.msra.mxu0 0.0
  %2988 = vmatprep.subr.mxu0 0.0
  %2989 = vmatpush1.msra.mxu0 0.0
  %2990 = vmatprep.subr.mxu0 0.0
  %2991 = vmatpush1.msra.mxu0 0.0
  %2992 = vmatprep.subr.mxu0 0.0
  %2993 = vmatpush1.msra.mxu0 0.0
  %2994 = vmatprep.subr.mxu0 0.0
  %2995 = vmatpush1.msra.mxu0 0.0
  %2996 = vmatprep.subr.mxu0 0.0
  %2997 = vmatpush1.msra.mxu0 0.0
  %2998 = vmatprep.subr.mxu0 0.0
  %2999 = vmatpush1.msra.mxu0 0.0
  %3000 = vmatprep.subr.mxu0 0.0
  %3001 = vmatpush1.msra.mxu0 0.0
  %3002 = vmatprep.subr.mxu0 0.0
  %3003 = vmatpush1.msra.mxu0 0.0
  %3004 = vmatprep.subr.mxu0 0.0
  %3005 = vmatpush1.msra.mxu0 0.0
  %3006 = vmatprep.subr.mxu0 0.0
  %3007 = vmatpush1.msra.mxu0 0.0
  %3008 = vmatprep.subr.mxu0 0.0
  %3009 = vmatpush1.msra.mxu0 0.0
  %3010 = vmatprep.mubr.f32.mxu0 0.0
  %3011 = vmatmul.mubr.f32.gmra.mrb[0].mxu0 %v2944
  %v3012 = vpop.f32.mrb[0].mxu0
  %v3013 = vadd.f32 0.0, %v3012
  %v3014 = vpop.f32.mrb[0].mxu0
  %3015 = vdwg.mxu0
  %3017 = vst.msk [vmem:[#allocation3 + $0x20] sm:$0xff] %vm1834, %v2943
  %v3018 = vld [vmem:[#allocation2 + $0x28] sm:$0xff]
  %v3019 = vadd.f32 %v3018, %v2910
  %v3020 = vxor.u32 %v3019, 2147483648
  %v3021 = vmul.f32 %v3020, 1.442695
  %v3022 = vpow.pop %v3021
  %v3023 = vadd.f32 %v3022, 1.0
  %v3024 = vrcp.pop %v3023
  %v3025 = vmul.f32 1.0, %v3024
  %v3026 = vmul.f32 %v3025, 2.0
  %v3027 = vsub.f32 %v3026, 1.0
  %v3028 = vmul.f32 %v3025, %v2831
  %3030 = vrot.lane.b32.xlu0 %v3027, 64
  %v3031 = vpop.permute.xlu0 %3030
  %v3033 = vmul.f32 %v3025, %v3031
  %3035 = vrot.lane.b32.xlu0 %v3033, 32
  %v3036 = vpop.permute.xlu0 %3035
  %v3038 = vadd.f32 %v3028, %v3036
  %v3039 = vtanh.pop %v3038
  %3041 = vrot.lane.b32.xlu0 %v3039, 64
  %v3042 = vpop.permute.xlu0 %3041
  %v3044 = vmul.f32 %v3025, %v3042
  %3046 = vrot.lane.b32.xlu0 %v3044, 32
  %v3047 = vpop.permute.xlu0 %3046
  %v3048 = vsel %vm1834, %v3047, 0
  %3050 = vmatprep.subr.mxu0 %v36
  %3051 = vmatpush1.msra.mxu0 %v35
  %3052 = vmatprep.subr.mxu0 %v38
  %3053 = vmatpush1.msra.mxu0 %v37
  %3054 = vmatprep.subr.mxu0 %v40
  %3055 = vmatpush1.msra.mxu0 %v39
  %3056 = vmatprep.subr.mxu0 %v42
  %3057 = vmatpush1.msra.mxu0 %v41
  %3058 = vmatprep.subr.mxu0 0.0
  %3059 = vmatpush1.msra.mxu0 0.0
  %3060 = vmatprep.subr.mxu0 0.0
  %3061 = vmatpush1.msra.mxu0 0.0
  %3062 = vmatprep.subr.mxu0 0.0
  %3063 = vmatpush1.msra.mxu0 0.0
  %3064 = vmatprep.subr.mxu0 0.0
  %3065 = vmatpush1.msra.mxu0 0.0
  %3066 = vmatprep.subr.mxu0 0.0
  %3067 = vmatpush1.msra.mxu0 0.0
  %3068 = vmatprep.subr.mxu0 0.0
  %3069 = vmatpush1.msra.mxu0 0.0
  %3070 = vmatprep.subr.mxu0 0.0
  %3071 = vmatpush1.msra.mxu0 0.0
  %3072 = vmatprep.subr.mxu0 0.0
  %3073 = vmatpush1.msra.mxu0 0.0
  %3074 = vmatprep.subr.mxu0 0.0
  %3075 = vmatpush1.msra.mxu0 0.0
  %3076 = vmatprep.subr.mxu0 0.0
  %3077 = vmatpush1.msra.mxu0 0.0
  %3078 = vmatprep.subr.mxu0 0.0
  %3079 = vmatpush1.msra.mxu0 0.0
  %3080 = vmatprep.subr.mxu0 0.0
  %3081 = vmatpush1.msra.mxu0 0.0
  %3082 = vmatprep.subr.mxu0 0.0
  %3083 = vmatpush1.msra.mxu0 0.0
  %3084 = vmatprep.subr.mxu0 0.0
  %3085 = vmatpush1.msra.mxu0 0.0
  %3086 = vmatprep.subr.mxu0 0.0
  %3087 = vmatpush1.msra.mxu0 0.0
  %3088 = vmatprep.subr.mxu0 0.0
  %3089 = vmatpush1.msra.mxu0 0.0
  %3090 = vmatprep.subr.mxu0 0.0
  %3091 = vmatpush1.msra.mxu0 0.0
  %3092 = vmatprep.subr.mxu0 0.0
  %3093 = vmatpush1.msra.mxu0 0.0
  %3094 = vmatprep.subr.mxu0 0.0
  %3095 = vmatpush1.msra.mxu0 0.0
  %3096 = vmatprep.subr.mxu0 0.0
  %3097 = vmatpush1.msra.mxu0 0.0
  %3098 = vmatprep.subr.mxu0 0.0
  %3099 = vmatpush1.msra.mxu0 0.0
  %3100 = vmatprep.subr.mxu0 0.0
  %3101 = vmatpush1.msra.mxu0 0.0
  %3102 = vmatprep.subr.mxu0 0.0
  %3103 = vmatpush1.msra.mxu0 0.0
  %3104 = vmatprep.subr.mxu0 0.0
  %3105 = vmatpush1.msra.mxu0 0.0
  %3106 = vmatprep.subr.mxu0 0.0
  %3107 = vmatpush1.msra.mxu0 0.0
  %3108 = vmatprep.subr.mxu0 0.0
  %3109 = vmatpush1.msra.mxu0 0.0
  %3110 = vmatprep.subr.mxu0 0.0
  %3111 = vmatpush1.msra.mxu0 0.0
  %3112 = vmatprep.subr.mxu0 0.0
  %3113 = vmatpush1.msra.mxu0 0.0
  %3114 = vmatprep.mubr.f32.mxu0 0.0
  %3115 = vmatmul.mubr.f32.gmra.mrb[0].mxu0 %v3048
  %v3116 = vpop.f32.mrb[0].mxu0
  %v3117 = vadd.f32 0.0, %v3116
  %v3118 = vpop.f32.mrb[0].mxu0
  %v3119 = vadd.f32 0.0, %v3118
  %3120 = vdwg.mxu0
  %v3121 = vadd.f32 %v3119, %v3013
  %v3122 = vadd.f32 %v3121, %v2086
  %v3123 = vxor.u32 %v3122, 2147483648
  %v3124 = vmul.f32 %v3123, 1.442695
  %v3125 = vpow.pop %v3124
  %v3126 = vadd.f32 %v3125, 1.0
  %v3127 = vrcp.pop %v3126
  %v3128 = vmul.f32 1.0, %v3127
  %v3129 = vmul.f32 %v3128, 2.0
  %v3130 = vsub.f32 %v3129, 1.0
  %v3131 = vmul.f32 %v3128, %v2934
  %3133 = vrot.lane.b32.xlu0 %v3130, 64
  %v3134 = vpop.permute.xlu0 %3133
  %v3136 = vmul.f32 %v3128, %v3134
  %3138 = vrot.lane.b32.xlu0 %v3136, 32
  %v3139 = vpop.permute.xlu0 %3138
  %v3141 = vadd.f32 %v3131, %v3139
  %v3142 = vtanh.pop %v3141
  %3144 = vrot.lane.b32.xlu0 %v3142, 64
  %v3145 = vpop.permute.xlu0 %3144
  %v3147 = vmul.f32 %v3128, %v3145
  %3149 = vrot.lane.b32.xlu0 %v3147, 32
  %v3150 = vpop.permute.xlu0 %3149
  %v3151 = vsel %vm1834, %v3150, 0
  %3153 = vmatprep.subr.mxu0 0.0
  %3154 = vmatpush1.msra.mxu0 %v24
  %3155 = vmatprep.subr.mxu0 0.0
  %3156 = vmatpush1.msra.mxu0 %v25
  %3157 = vmatprep.subr.mxu0 0.0
  %3158 = vmatpush1.msra.mxu0 %v26
  %3159 = vmatprep.subr.mxu0 0.0
  %3160 = vmatpush1.msra.mxu0 %v27
  %3161 = vmatprep.subr.mxu0 0.0
  %3162 = vmatpush1.msra.mxu0 0.0
  %3163 = vmatprep.subr.mxu0 0.0
  %3164 = vmatpush1.msra.mxu0 0.0
  %3165 = vmatprep.subr.mxu0 0.0
  %3166 = vmatpush1.msra.mxu0 0.0
  %3167 = vmatprep.subr.mxu0 0.0
  %3168 = vmatpush1.msra.mxu0 0.0
  %3169 = vmatprep.subr.mxu0 0.0
  %3170 = vmatpush1.msra.mxu0 0.0
  %3171 = vmatprep.subr.mxu0 0.0
  %3172 = vmatpush1.msra.mxu0 0.0
  %3173 = vmatprep.subr.mxu0 0.0
  %3174 = vmatpush1.msra.mxu0 0.0
  %3175 = vmatprep.subr.mxu0 0.0
  %3176 = vmatpush1.msra.mxu0 0.0
  %3177 = vmatprep.subr.mxu0 0.0
  %3178 = vmatpush1.msra.mxu0 0.0
  %3179 = vmatprep.subr.mxu0 0.0
  %3180 = vmatpush1.msra.mxu0 0.0
  %3181 = vmatprep.subr.mxu0 0.0
  %3182 = vmatpush1.msra.mxu0 0.0
  %3183 = vmatprep.subr.mxu0 0.0
  %3184 = vmatpush1.msra.mxu0 0.0
  %3185 = vmatprep.subr.mxu0 0.0
  %3186 = vmatpush1.msra.mxu0 0.0
  %3187 = vmatprep.subr.mxu0 0.0
  %3188 = vmatpush1.msra.mxu0 0.0
  %3189 = vmatprep.subr.mxu0 0.0
  %3190 = vmatpush1.msra.mxu0 0.0
  %3191 = vmatprep.subr.mxu0 0.0
  %3192 = vmatpush1.msra.mxu0 0.0
  %3193 = vmatprep.subr.mxu0 0.0
  %3194 = vmatpush1.msra.mxu0 0.0
  %3195 = vmatprep.subr.mxu0 0.0
  %3196 = vmatpush1.msra.mxu0 0.0
  %3197 = vmatprep.subr.mxu0 0.0
  %3198 = vmatpush1.msra.mxu0 0.0
  %3199 = vmatprep.subr.mxu0 0.0
  %3200 = vmatpush1.msra.mxu0 0.0
  %3201 = vmatprep.subr.mxu0 0.0
  %3202 = vmatpush1.msra.mxu0 0.0
  %3203 = vmatprep.subr.mxu0 0.0
  %3204 = vmatpush1.msra.mxu0 0.0
  %3205 = vmatprep.subr.mxu0 0.0
  %3206 = vmatpush1.msra.mxu0 0.0
  %3207 = vmatprep.subr.mxu0 0.0
  %3208 = vmatpush1.msra.mxu0 0.0
  %3209 = vmatprep.subr.mxu0 0.0
  %3210 = vmatpush1.msra.mxu0 0.0
  %3211 = vmatprep.subr.mxu0 0.0
  %3212 = vmatpush1.msra.mxu0 0.0
  %3213 = vmatprep.subr.mxu0 0.0
  %3214 = vmatpush1.msra.mxu0 0.0
  %3215 = vmatprep.subr.mxu0 0.0
  %3216 = vmatpush1.msra.mxu0 0.0
  %3217 = vmatprep.mubr.f32.mxu0 0.0
  %3218 = vmatmul.mubr.f32.gmra.mrb[0].mxu0 %v3151
  %v3219 = vpop.f32.mrb[0].mxu0
  %v3220 = vadd.f32 0.0, %v3219
  %v3221 = vpop.f32.mrb[0].mxu0
  %3222 = vdwg.mxu0
  %3224 = vst.msk [vmem:[#allocation3 + $0x28] sm:$0xff] %vm1834, %v3150
  %v3225 = vld [vmem:[#allocation2 + $0x30] sm:$0xff]
  %v3226 = vadd.f32 %v3225, %v3117
  %v3227 = vxor.u32 %v3226, 2147483648
  %v3228 = vmul.f32 %v3227, 1.442695
  %v3229 = vpow.pop %v3228
  %v3230 = vadd.f32 %v3229, 1.0
  %v3231 = vrcp.pop %v3230
  %v3232 = vmul.f32 1.0, %v3231
  %v3233 = vmul.f32 %v3232, 2.0
  %v3234 = vsub.f32 %v3233, 1.0
  %v3235 = vmul.f32 %v3232, %v3038
  %3237 = vrot.lane.b32.xlu0 %v3234, 64
  %v3238 = vpop.permute.xlu0 %3237
  %v3240 = vmul.f32 %v3232, %v3238
  %3242 = vrot.lane.b32.xlu0 %v3240, 32
  %v3243 = vpop.permute.xlu0 %3242
  %v3245 = vadd.f32 %v3235, %v3243
  %v3246 = vtanh.pop %v3245
  %3248 = vrot.lane.b32.xlu0 %v3246, 64
  %v3249 = vpop.permute.xlu0 %3248
  %v3251 = vmul.f32 %v3232, %v3249
  %3253 = vrot.lane.b32.xlu0 %v3251, 32
  %v3254 = vpop.permute.xlu0 %3253
  %v3255 = vsel %vm1834, %v3254, 0
  %3257 = vmatprep.subr.mxu0 %v36
  %3258 = vmatpush1.msra.mxu0 %v35
  %3259 = vmatprep.subr.mxu0 %v38
  %3260 = vmatpush1.msra.mxu0 %v37
  %3261 = vmatprep.subr.mxu0 %v40
  %3262 = vmatpush1.msra.mxu0 %v39
  %3263 = vmatprep.subr.mxu0 %v42
  %3264 = vmatpush1.msra.mxu0 %v41
  %3265 = vmatprep.subr.mxu0 0.0
  %3266 = vmatpush1.msra.mxu0 0.0
  %3267 = vmatprep.subr.mxu0 0.0
  %3268 = vmatpush1.msra.mxu0 0.0
  %3269 = vmatprep.subr.mxu0 0.0
  %3270 = vmatpush1.msra.mxu0 0.0
  %3271 = vmatprep.subr.mxu0 0.0
  %3272 = vmatpush1.msra.mxu0 0.0
  %3273 = vmatprep.subr.mxu0 0.0
  %3274 = vmatpush1.msra.mxu0 0.0
  %3275 = vmatprep.subr.mxu0 0.0
  %3276 = vmatpush1.msra.mxu0 0.0
  %3277 = vmatprep.subr.mxu0 0.0
  %3278 = vmatpush1.msra.mxu0 0.0
  %3279 = vmatprep.subr.mxu0 0.0
  %3280 = vmatpush1.msra.mxu0 0.0
  %3281 = vmatprep.subr.mxu0 0.0
  %3282 = vmatpush1.msra.mxu0 0.0
  %3283 = vmatprep.subr.mxu0 0.0
  %3284 = vmatpush1.msra.mxu0 0.0
  %3285 = vmatprep.subr.mxu0 0.0
  %3286 = vmatpush1.msra.mxu0 0.0
  %3287 = vmatprep.subr.mxu0 0.0
  %3288 = vmatpush1.msra.mxu0 0.0
  %3289 = vmatprep.subr.mxu0 0.0
  %3290 = vmatpush1.msra.mxu0 0.0
  %3291 = vmatprep.subr.mxu0 0.0
  %3292 = vmatpush1.msra.mxu0 0.0
  %3293 = vmatprep.subr.mxu0 0.0
  %3294 = vmatpush1.msra.mxu0 0.0
  %3295 = vmatprep.subr.mxu0 0.0
  %3296 = vmatpush1.msra.mxu0 0.0
  %3297 = vmatprep.subr.mxu0 0.0
  %3298 = vmatpush1.msra.mxu0 0.0
  %3299 = vmatprep.subr.mxu0 0.0
  %3300 = vmatpush1.msra.mxu0 0.0
  %3301 = vmatprep.subr.mxu0 0.0
  %3302 = vmatpush1.msra.mxu0 0.0
  %3303 = vmatprep.subr.mxu0 0.0
  %3304 = vmatpush1.msra.mxu0 0.0
  %3305 = vmatprep.subr.mxu0 0.0
  %3306 = vmatpush1.msra.mxu0 0.0
  %3307 = vmatprep.subr.mxu0 0.0
  %3308 = vmatpush1.msra.mxu0 0.0
  %3309 = vmatprep.subr.mxu0 0.0
  %3310 = vmatpush1.msra.mxu0 0.0
  %3311 = vmatprep.subr.mxu0 0.0
  %3312 = vmatpush1.msra.mxu0 0.0
  %3313 = vmatprep.subr.mxu0 0.0
  %3314 = vmatpush1.msra.mxu0 0.0
  %3315 = vmatprep.subr.mxu0 0.0
  %3316 = vmatpush1.msra.mxu0 0.0
  %3317 = vmatprep.subr.mxu0 0.0
  %3318 = vmatpush1.msra.mxu0 0.0
  %3319 = vmatprep.subr.mxu0 0.0
  %3320 = vmatpush1.msra.mxu0 0.0
  %3321 = vmatprep.mubr.f32.mxu0 0.0
  %3322 = vmatmul.mubr.f32.gmra.mrb[0].mxu0 %v3255
  %v3323 = vpop.f32.mrb[0].mxu0
  %v3324 = vadd.f32 0.0, %v3323
  %v3325 = vpop.f32.mrb[0].mxu0
  %v3326 = vadd.f32 0.0, %v3325
  %3327 = vdwg.mxu0
  %v3328 = vadd.f32 %v3326, %v3220
  %v3329 = vadd.f32 %v3328, %v2086
  %v3330 = vxor.u32 %v3329, 2147483648
  %v3331 = vmul.f32 %v3330, 1.442695
  %v3332 = vpow.pop %v3331
  %v3333 = vadd.f32 %v3332, 1.0
  %v3334 = vrcp.pop %v3333
  %v3335 = vmul.f32 1.0, %v3334
  %v3336 = vmul.f32 %v3335, 2.0
  %v3337 = vsub.f32 %v3336, 1.0
  %v3338 = vmul.f32 %v3335, %v3141
  %3340 = vrot.lane.b32.xlu0 %v3337, 64
  %v3341 = vpop.permute.xlu0 %3340
  %v3343 = vmul.f32 %v3335, %v3341
  %3345 = vrot.lane.b32.xlu0 %v3343, 32
  %v3346 = vpop.permute.xlu0 %3345
  %v3348 = vadd.f32 %v3338, %v3346
  %v3349 = vtanh.pop %v3348
  %3351 = vrot.lane.b32.xlu0 %v3349, 64
  %v3352 = vpop.permute.xlu0 %3351
  %v3354 = vmul.f32 %v3335, %v3352
  %3356 = vrot.lane.b32.xlu0 %v3354, 32
  %v3357 = vpop.permute.xlu0 %3356
  %v3358 = vsel %vm1834, %v3357, 0
  %3360 = vmatprep.subr.mxu0 0.0
  %3361 = vmatpush1.msra.mxu0 %v24
  %3362 = vmatprep.subr.mxu0 0.0
  %3363 = vmatpush1.msra.mxu0 %v25
  %3364 = vmatprep.subr.mxu0 0.0
  %3365 = vmatpush1.msra.mxu0 %v26
  %3366 = vmatprep.subr.mxu0 0.0
  %3367 = vmatpush1.msra.mxu0 %v27
  %3368 = vmatprep.subr.mxu0 0.0
  %3369 = vmatpush1.msra.mxu0 0.0
  %3370 = vmatprep.subr.mxu0 0.0
  %3371 = vmatpush1.msra.mxu0 0.0
  %3372 = vmatprep.subr.mxu0 0.0
  %3373 = vmatpush1.msra.mxu0 0.0
  %3374 = vmatprep.subr.mxu0 0.0
  %3375 = vmatpush1.msra.mxu0 0.0
  %3376 = vmatprep.subr.mxu0 0.0
  %3377 = vmatpush1.msra.mxu0 0.0
  %3378 = vmatprep.subr.mxu0 0.0
  %3379 = vmatpush1.msra.mxu0 0.0
  %3380 = vmatprep.subr.mxu0 0.0
  %3381 = vmatpush1.msra.mxu0 0.0
  %3382 = vmatprep.subr.mxu0 0.0
  %3383 = vmatpush1.msra.mxu0 0.0
  %3384 = vmatprep.subr.mxu0 0.0
  %3385 = vmatpush1.msra.mxu0 0.0
  %3386 = vmatprep.subr.mxu0 0.0
  %3387 = vmatpush1.msra.mxu0 0.0
  %3388 = vmatprep.subr.mxu0 0.0
  %3389 = vmatpush1.msra.mxu0 0.0
  %3390 = vmatprep.subr.mxu0 0.0
  %3391 = vmatpush1.msra.mxu0 0.0
  %3392 = vmatprep.subr.mxu0 0.0
  %3393 = vmatpush1.msra.mxu0 0.0
  %3394 = vmatprep.subr.mxu0 0.0
  %3395 = vmatpush1.msra.mxu0 0.0
  %3396 = vmatprep.subr.mxu0 0.0
  %3397 = vmatpush1.msra.mxu0 0.0
  %3398 = vmatprep.subr.mxu0 0.0
  %3399 = vmatpush1.msra.mxu0 0.0
  %3400 = vmatprep.subr.mxu0 0.0
  %3401 = vmatpush1.msra.mxu0 0.0
  %3402 = vmatprep.subr.mxu0 0.0
  %3403 = vmatpush1.msra.mxu0 0.0
  %3404 = vmatprep.subr.mxu0 0.0
  %3405 = vmatpush1.msra.mxu0 0.0
  %3406 = vmatprep.subr.mxu0 0.0
  %3407 = vmatpush1.msra.mxu0 0.0
  %3408 = vmatprep.subr.mxu0 0.0
  %3409 = vmatpush1.msra.mxu0 0.0
  %3410 = vmatprep.subr.mxu0 0.0
  %3411 = vmatpush1.msra.mxu0 0.0
  %3412 = vmatprep.subr.mxu0 0.0
  %3413 = vmatpush1.msra.mxu0 0.0
  %3414 = vmatprep.subr.mxu0 0.0
  %3415 = vmatpush1.msra.mxu0 0.0
  %3416 = vmatprep.subr.mxu0 0.0
  %3417 = vmatpush1.msra.mxu0 0.0
  %3418 = vmatprep.subr.mxu0 0.0
  %3419 = vmatpush1.msra.mxu0 0.0
  %3420 = vmatprep.subr.mxu0 0.0
  %3421 = vmatpush1.msra.mxu0 0.0
  %3422 = vmatprep.subr.mxu0 0.0
  %3423 = vmatpush1.msra.mxu0 0.0
  %3424 = vmatprep.mubr.f32.mxu0 0.0
  %3425 = vmatmul.mubr.f32.gmra.mrb[0].mxu0 %v3358
  %v3426 = vpop.f32.mrb[0].mxu0
  %v3427 = vadd.f32 0.0, %v3426
  %v3428 = vpop.f32.mrb[0].mxu0
  %3429 = vdwg.mxu0
  %3431 = vst.msk [vmem:[#allocation3 + $0x30] sm:$0xff] %vm1834, %v3357
  %v3432 = vld [vmem:[#allocation2 + $0x38] sm:$0xff]
  %v3433 = vadd.f32 %v3432, %v3324
  %v3434 = vxor.u32 %v3433, 2147483648
  %v3435 = vmul.f32 %v3434, 1.442695
  %v3436 = vpow.pop %v3435
  %v3437 = vadd.f32 %v3436, 1.0
  %v3438 = vrcp.pop %v3437
  %v3439 = vmul.f32 1.0, %v3438
  %v3440 = vmul.f32 %v3439, 2.0
  %v3441 = vsub.f32 %v3440, 1.0
  %v3442 = vmul.f32 %v3439, %v3245
  %3444 = vrot.lane.b32.xlu0 %v3441, 64
  %v3445 = vpop.permute.xlu0 %3444
  %v3447 = vmul.f32 %v3439, %v3445
  %3449 = vrot.lane.b32.xlu0 %v3447, 32
  %v3450 = vpop.permute.xlu0 %3449
  %v3452 = vadd.f32 %v3442, %v3450
  %v3453 = vtanh.pop %v3452
  %3455 = vrot.lane.b32.xlu0 %v3453, 64
  %v3456 = vpop.permute.xlu0 %3455
  %v3458 = vmul.f32 %v3439, %v3456
  %3460 = vrot.lane.b32.xlu0 %v3458, 32
  %v3461 = vpop.permute.xlu0 %3460
  %v3462 = vsel %vm1834, %v3461, 0
  %3464 = vmatprep.subr.mxu0 %v36
  %3465 = vmatpush1.msra.mxu0 %v35
  %3466 = vmatprep.subr.mxu0 %v38
  %3467 = vmatpush1.msra.mxu0 %v37
  %3468 = vmatprep.subr.mxu0 %v40
  %3469 = vmatpush1.msra.mxu0 %v39
  %3470 = vmatprep.subr.mxu0 %v42
  %3471 = vmatpush1.msra.mxu0 %v41
  %3472 = vmatprep.subr.mxu0 0.0
  %3473 = vmatpush1.msra.mxu0 0.0
  %3474 = vmatprep.subr.mxu0 0.0
  %3475 = vmatpush1.msra.mxu0 0.0
  %3476 = vmatprep.subr.mxu0 0.0
  %3477 = vmatpush1.msra.mxu0 0.0
  %3478 = vmatprep.subr.mxu0 0.0
  %3479 = vmatpush1.msra.mxu0 0.0
  %3480 = vmatprep.subr.mxu0 0.0
  %3481 = vmatpush1.msra.mxu0 0.0
  %3482 = vmatprep.subr.mxu0 0.0
  %3483 = vmatpush1.msra.mxu0 0.0
  %3484 = vmatprep.subr.mxu0 0.0
  %3485 = vmatpush1.msra.mxu0 0.0
  %3486 = vmatprep.subr.mxu0 0.0
  %3487 = vmatpush1.msra.mxu0 0.0
  %3488 = vmatprep.subr.mxu0 0.0
  %3489 = vmatpush1.msra.mxu0 0.0
  %3490 = vmatprep.subr.mxu0 0.0
  %3491 = vmatpush1.msra.mxu0 0.0
  %3492 = vmatprep.subr.mxu0 0.0
  %3493 = vmatpush1.msra.mxu0 0.0
  %3494 = vmatprep.subr.mxu0 0.0
  %3495 = vmatpush1.msra.mxu0 0.0
  %3496 = vmatprep.subr.mxu0 0.0
  %3497 = vmatpush1.msra.mxu0 0.0
  %3498 = vmatprep.subr.mxu0 0.0
  %3499 = vmatpush1.msra.mxu0 0.0
  %3500 = vmatprep.subr.mxu0 0.0
  %3501 = vmatpush1.msra.mxu0 0.0
  %3502 = vmatprep.subr.mxu0 0.0
  %3503 = vmatpush1.msra.mxu0 0.0
  %3504 = vmatprep.subr.mxu0 0.0
  %3505 = vmatpush1.msra.mxu0 0.0
  %3506 = vmatprep.subr.mxu0 0.0
  %3507 = vmatpush1.msra.mxu0 0.0
  %3508 = vmatprep.subr.mxu0 0.0
  %3509 = vmatpush1.msra.mxu0 0.0
  %3510 = vmatprep.subr.mxu0 0.0
  %3511 = vmatpush1.msra.mxu0 0.0
  %3512 = vmatprep.subr.mxu0 0.0
  %3513 = vmatpush1.msra.mxu0 0.0
  %3514 = vmatprep.subr.mxu0 0.0
  %3515 = vmatpush1.msra.mxu0 0.0
  %3516 = vmatprep.subr.mxu0 0.0
  %3517 = vmatpush1.msra.mxu0 0.0
  %3518 = vmatprep.subr.mxu0 0.0
  %3519 = vmatpush1.msra.mxu0 0.0
  %3520 = vmatprep.subr.mxu0 0.0
  %3521 = vmatpush1.msra.mxu0 0.0
  %3522 = vmatprep.subr.mxu0 0.0
  %3523 = vmatpush1.msra.mxu0 0.0
  %3524 = vmatprep.subr.mxu0 0.0
  %3525 = vmatpush1.msra.mxu0 0.0
  %3526 = vmatprep.subr.mxu0 0.0
  %3527 = vmatpush1.msra.mxu0 0.0
  %3528 = vmatprep.mubr.f32.mxu0 0.0
  %3529 = vmatmul.mubr.f32.gmra.mrb[0].mxu0 %v3462
  %v3530 = vpop.f32.mrb[0].mxu0
  %v3531 = vadd.f32 0.0, %v3530
  %v3532 = vpop.f32.mrb[0].mxu0
  %v3533 = vadd.f32 0.0, %v3532
  %3534 = vdwg.mxu0
  %v3535 = vadd.f32 %v3533, %v3427
  %v3536 = vadd.f32 %v3535, %v2086
  %v3537 = vxor.u32 %v3536, 2147483648
  %v3538 = vmul.f32 %v3537, 1.442695
  %v3539 = vpow.pop %v3538
  %v3540 = vadd.f32 %v3539, 1.0
  %v3541 = vrcp.pop %v3540
  %v3542 = vmul.f32 1.0, %v3541
  %v3543 = vmul.f32 %v3542, 2.0
  %v3544 = vsub.f32 %v3543, 1.0
  %v3545 = vmul.f32 %v3542, %v3348
  %3547 = vrot.lane.b32.xlu0 %v3544, 64
  %v3548 = vpop.permute.xlu0 %3547
  %v3550 = vmul.f32 %v3542, %v3548
  %3552 = vrot.lane.b32.xlu0 %v3550, 32
  %v3553 = vpop.permute.xlu0 %3552
  %v3555 = vadd.f32 %v3545, %v3553
  %v3556 = vtanh.pop %v3555
  %3558 = vrot.lane.b32.xlu0 %v3556, 64
  %v3559 = vpop.permute.xlu0 %3558
  %v3561 = vmul.f32 %v3542, %v3559
  %3563 = vrot.lane.b32.xlu0 %v3561, 32
  %v3564 = vpop.permute.xlu0 %3563
  %v3565 = vsel %vm1834, %v3564, 0
  %3567 = vmatprep.subr.mxu0 0.0
  %3568 = vmatpush1.msra.mxu0 %v24
  %3569 = vmatprep.subr.mxu0 0.0
  %3570 = vmatpush1.msra.mxu0 %v25
  %3571 = vmatprep.subr.mxu0 0.0
  %3572 = vmatpush1.msra.mxu0 %v26
  %3573 = vmatprep.subr.mxu0 0.0
  %3574 = vmatpush1.msra.mxu0 %v27
  %3575 = vmatprep.subr.mxu0 0.0
  %3576 = vmatpush1.msra.mxu0 0.0
  %3577 = vmatprep.subr.mxu0 0.0
  %3578 = vmatpush1.msra.mxu0 0.0
  %3579 = vmatprep.subr.mxu0 0.0
  %3580 = vmatpush1.msra.mxu0 0.0
  %3581 = vmatprep.subr.mxu0 0.0
  %3582 = vmatpush1.msra.mxu0 0.0
  %3583 = vmatprep.subr.mxu0 0.0
  %3584 = vmatpush1.msra.mxu0 0.0
  %3585 = vmatprep.subr.mxu0 0.0
  %3586 = vmatpush1.msra.mxu0 0.0
  %3587 = vmatprep.subr.mxu0 0.0
  %3588 = vmatpush1.msra.mxu0 0.0
  %3589 = vmatprep.subr.mxu0 0.0
  %3590 = vmatpush1.msra.mxu0 0.0
  %3591 = vmatprep.subr.mxu0 0.0
  %3592 = vmatpush1.msra.mxu0 0.0
  %3593 = vmatprep.subr.mxu0 0.0
  %3594 = vmatpush1.msra.mxu0 0.0
  %3595 = vmatprep.subr.mxu0 0.0
  %3596 = vmatpush1.msra.mxu0 0.0
  %3597 = vmatprep.subr.mxu0 0.0
  %3598 = vmatpush1.msra.mxu0 0.0
  %3599 = vmatprep.subr.mxu0 0.0
  %3600 = vmatpush1.msra.mxu0 0.0
  %3601 = vmatprep.subr.mxu0 0.0
  %3602 = vmatpush1.msra.mxu0 0.0
  %3603 = vmatprep.subr.mxu0 0.0
  %3604 = vmatpush1.msra.mxu0 0.0
  %3605 = vmatprep.subr.mxu0 0.0
  %3606 = vmatpush1.msra.mxu0 0.0
  %3607 = vmatprep.subr.mxu0 0.0
  %3608 = vmatpush1.msra.mxu0 0.0
  %3609 = vmatprep.subr.mxu0 0.0
  %3610 = vmatpush1.msra.mxu0 0.0
  %3611 = vmatprep.subr.mxu0 0.0
  %3612 = vmatpush1.msra.mxu0 0.0
  %3613 = vmatprep.subr.mxu0 0.0
  %3614 = vmatpush1.msra.mxu0 0.0
  %3615 = vmatprep.subr.mxu0 0.0
  %3616 = vmatpush1.msra.mxu0 0.0
  %3617 = vmatprep.subr.mxu0 0.0
  %3618 = vmatpush1.msra.mxu0 0.0
  %3619 = vmatprep.subr.mxu0 0.0
  %3620 = vmatpush1.msra.mxu0 0.0
  %3621 = vmatprep.subr.mxu0 0.0
  %3622 = vmatpush1.msra.mxu0 0.0
  %3623 = vmatprep.subr.mxu0 0.0
  %3624 = vmatpush1.msra.mxu0 0.0
  %3625 = vmatprep.subr.mxu0 0.0
  %3626 = vmatpush1.msra.mxu0 0.0
  %3627 = vmatprep.subr.mxu0 0.0
  %3628 = vmatpush1.msra.mxu0 0.0
  %3629 = vmatprep.subr.mxu0 0.0
  %3630 = vmatpush1.msra.mxu0 0.0
  %3631 = vmatprep.mubr.f32.mxu0 0.0
  %3632 = vmatmul.mubr.f32.gmra.mrb[0].mxu0 %v3565
  %v3633 = vpop.f32.mrb[0].mxu0
  %v3634 = vadd.f32 0.0, %v3633
  %v3635 = vpop.f32.mrb[0].mxu0
  %3636 = vdwg.mxu0
  %3638 = vst.msk [vmem:[#allocation3 + $0x38] sm:$0xff] %vm1834, %v3564
  %v3639 = vld [vmem:[#allocation2 + $0x40] sm:$0xff]
  %v3640 = vadd.f32 %v3639, %v3531
  %v3641 = vxor.u32 %v3640, 2147483648
  %v3642 = vmul.f32 %v3641, 1.442695
  %v3643 = vpow.pop %v3642
  %v3644 = vadd.f32 %v3643, 1.0
  %v3645 = vrcp.pop %v3644
  %v3646 = vmul.f32 1.0, %v3645
  %v3647 = vmul.f32 %v3646, 2.0
  %v3648 = vsub.f32 %v3647, 1.0
  %v3649 = vmul.f32 %v3646, %v3452
  %3651 = vrot.lane.b32.xlu0 %v3648, 64
  %v3652 = vpop.permute.xlu0 %3651
  %v3654 = vmul.f32 %v3646, %v3652
  %3656 = vrot.lane.b32.xlu0 %v3654, 32
  %v3657 = vpop.permute.xlu0 %3656
  %v3659 = vadd.f32 %v3649, %v3657
  %v3660 = vtanh.pop %v3659
  %3662 = vrot.lane.b32.xlu0 %v3660, 64
  %v3663 = vpop.permute.xlu0 %3662
  %v3665 = vmul.f32 %v3646, %v3663
  %3667 = vrot.lane.b32.xlu0 %v3665, 32
  %v3668 = vpop.permute.xlu0 %3667
  %v3669 = vsel %vm1834, %v3668, 0
  %3671 = vmatprep.subr.mxu0 %v36
  %3672 = vmatpush1.msra.mxu0 %v35
  %3673 = vmatprep.subr.mxu0 %v38
  %3674 = vmatpush1.msra.mxu0 %v37
  %3675 = vmatprep.subr.mxu0 %v40
  %3676 = vmatpush1.msra.mxu0 %v39
  %3677 = vmatprep.subr.mxu0 %v42
  %3678 = vmatpush1.msra.mxu0 %v41
  %3679 = vmatprep.subr.mxu0 0.0
  %3680 = vmatpush1.msra.mxu0 0.0
  %3681 = vmatprep.subr.mxu0 0.0
  %3682 = vmatpush1.msra.mxu0 0.0
  %3683 = vmatprep.subr.mxu0 0.0
  %3684 = vmatpush1.msra.mxu0 0.0
  %3685 = vmatprep.subr.mxu0 0.0
  %3686 = vmatpush1.msra.mxu0 0.0
  %3687 = vmatprep.subr.mxu0 0.0
  %3688 = vmatpush1.msra.mxu0 0.0
  %3689 = vmatprep.subr.mxu0 0.0
  %3690 = vmatpush1.msra.mxu0 0.0
  %3691 = vmatprep.subr.mxu0 0.0
  %3692 = vmatpush1.msra.mxu0 0.0
  %3693 = vmatprep.subr.mxu0 0.0
  %3694 = vmatpush1.msra.mxu0 0.0
  %3695 = vmatprep.subr.mxu0 0.0
  %3696 = vmatpush1.msra.mxu0 0.0
  %3697 = vmatprep.subr.mxu0 0.0
  %3698 = vmatpush1.msra.mxu0 0.0
  %3699 = vmatprep.subr.mxu0 0.0
  %3700 = vmatpush1.msra.mxu0 0.0
  %3701 = vmatprep.subr.mxu0 0.0
  %3702 = vmatpush1.msra.mxu0 0.0
  %3703 = vmatprep.subr.mxu0 0.0
  %3704 = vmatpush1.msra.mxu0 0.0
  %3705 = vmatprep.subr.mxu0 0.0
  %3706 = vmatpush1.msra.mxu0 0.0
  %3707 = vmatprep.subr.mxu0 0.0
  %3708 = vmatpush1.msra.mxu0 0.0
  %3709 = vmatprep.subr.mxu0 0.0
  %3710 = vmatpush1.msra.mxu0 0.0
  %3711 = vmatprep.subr.mxu0 0.0
  %3712 = vmatpush1.msra.mxu0 0.0
  %3713 = vmatprep.subr.mxu0 0.0
  %3714 = vmatpush1.msra.mxu0 0.0
  %3715 = vmatprep.subr.mxu0 0.0
  %3716 = vmatpush1.msra.mxu0 0.0
  %3717 = vmatprep.subr.mxu0 0.0
  %3718 = vmatpush1.msra.mxu0 0.0
  %3719 = vmatprep.subr.mxu0 0.0
  %3720 = vmatpush1.msra.mxu0 0.0
  %3721 = vmatprep.subr.mxu0 0.0
  %3722 = vmatpush1.msra.mxu0 0.0
  %3723 = vmatprep.subr.mxu0 0.0
  %3724 = vmatpush1.msra.mxu0 0.0
  %3725 = vmatprep.subr.mxu0 0.0
  %3726 = vmatpush1.msra.mxu0 0.0
  %3727 = vmatprep.subr.mxu0 0.0
  %3728 = vmatpush1.msra.mxu0 0.0
  %3729 = vmatprep.subr.mxu0 0.0
  %3730 = vmatpush1.msra.mxu0 0.0
  %3731 = vmatprep.subr.mxu0 0.0
  %3732 = vmatpush1.msra.mxu0 0.0
  %3733 = vmatprep.subr.mxu0 0.0
  %3734 = vmatpush1.msra.mxu0 0.0
  %3735 = vmatprep.mubr.f32.mxu0 0.0
  %3736 = vmatmul.mubr.f32.gmra.mrb[0].mxu0 %v3669
  %v3737 = vpop.f32.mrb[0].mxu0
  %v3738 = vpop.f32.mrb[0].mxu0
  %v3739 = vadd.f32 0.0, %v3738
  %3740 = vdwg.mxu0
  %v3741 = vadd.f32 %v3739, %v3634
  %v3742 = vadd.f32 %v3741, %v2086
  %v3743 = vxor.u32 %v3742, 2147483648
  %v3744 = vmul.f32 %v3743, 1.442695
  %v3745 = vpow.pop %v3744
  %v3746 = vadd.f32 %v3745, 1.0
  %v3747 = vrcp.pop %v3746
  %v3748 = vmul.f32 1.0, %v3747
  %v3749 = vmul.f32 %v3748, 2.0
  %v3750 = vsub.f32 %v3749, 1.0
  %v3751 = vmul.f32 %v3748, %v3555
  %3753 = vrot.lane.b32.xlu0 %v3750, 64
  %v3754 = vpop.permute.xlu0 %3753
  %v3756 = vmul.f32 %v3748, %v3754
  %3758 = vrot.lane.b32.xlu0 %v3756, 32
  %v3759 = vpop.permute.xlu0 %3758
  %v3761 = vadd.f32 %v3751, %v3759
  %v3762 = vtanh.pop %v3761
  %3764 = vrot.lane.b32.xlu0 %v3762, 64
  %v3765 = vpop.permute.xlu0 %3764
  %v3767 = vmul.f32 %v3748, %v3765
  %3769 = vrot.lane.b32.xlu0 %v3767, 32
  %v3770 = vpop.permute.xlu0 %3769
  %3772 = vst.msk [vmem:[#allocation3 + $0x40] sm:$0xff] %vm1834, %v3770
  %v3773 = vld [vmem:[#allocation3] sm:$0xff]
  %v3774 = vld [vmem:[#allocation3 + $0x8] sm:$0xff]
  %v3775 = vld [vmem:[#allocation3 + $0x10] sm:$0xff]
  %v3776 = vld [vmem:[#allocation3 + $0x18] sm:$0xff]
  %v3777 = vld [vmem:[#allocation3 + $0x20] sm:$0xff]
  %v3778 = vld [vmem:[#allocation3 + $0x28] sm:$0xff]
  %v3779 = vld [vmem:[#allocation3 + $0x30] sm:$0xff]
  %v3780 = vld [vmem:[#allocation3 + $0x38] sm:$0xff]
  %v3781 = vld [vmem:[#allocation3 + $0x40] sm:$0xff]
  %v3782 = vlaneseq
  %v3783 = vshrl.u32 %v3782, 7
  %v3784 = vsub.s32 0, %v3783
  %v3785 = vrot.slane %v34, %v3784
  %v3787 = vsel %vm1834, %v3773, 0
  %v3790 = vsel %vm1834, %v3774, 0
  %v3793 = vsel %vm1834, %v3775, 0
  %v3796 = vsel %vm1834, %v3776, 0
  %v3799 = vsel %vm1834, %v3777, 0
  %v3802 = vsel %vm1834, %v3778, 0
  %v3805 = vsel %vm1834, %v3779, 0
  %v3808 = vsel %vm1834, %v3780, 0
  %v3811 = vsel %vm1834, %v3781, 0
  %3813 = vmatprep.subr.mxu0 0.0
  %3814 = vmatpush1.msra.mxu0 %v28
  %3815 = vmatprep.subr.mxu0 0.0
  %3816 = vmatpush1.msra.mxu0 %v29
  %3817 = vmatprep.subr.mxu0 0.0
  %3818 = vmatpush1.msra.mxu0 %v30
  %3819 = vmatprep.subr.mxu0 0.0
  %3820 = vmatpush1.msra.mxu0 %v31
  %3821 = vmatprep.subr.mxu0 0.0
  %3822 = vmatpush1.msra.mxu0 0.0
  %3823 = vmatprep.subr.mxu0 0.0
  %3824 = vmatpush1.msra.mxu0 0.0
  %3825 = vmatprep.subr.mxu0 0.0
  %3826 = vmatpush1.msra.mxu0 0.0
  %3827 = vmatprep.subr.mxu0 0.0
  %3828 = vmatpush1.msra.mxu0 0.0
  %3829 = vmatprep.subr.mxu0 0.0
  %3830 = vmatpush1.msra.mxu0 0.0
  %3831 = vmatprep.subr.mxu0 0.0
  %3832 = vmatpush1.msra.mxu0 0.0
  %3833 = vmatprep.subr.mxu0 0.0
  %3834 = vmatpush1.msra.mxu0 0.0
  %3835 = vmatprep.subr.mxu0 0.0
  %3836 = vmatpush1.msra.mxu0 0.0
  %3837 = vmatprep.subr.mxu0 0.0
  %3838 = vmatpush1.msra.mxu0 0.0
  %3839 = vmatprep.subr.mxu0 0.0
  %3840 = vmatpush1.msra.mxu0 0.0
  %3841 = vmatprep.subr.mxu0 0.0
  %3842 = vmatpush1.msra.mxu0 0.0
  %3843 = vmatprep.subr.mxu0 0.0
  %3844 = vmatpush1.msra.mxu0 0.0
  %3845 = vmatprep.subr.mxu0 0.0
  %3846 = vmatpush1.msra.mxu0 0.0
  %3847 = vmatprep.subr.mxu0 0.0
  %3848 = vmatpush1.msra.mxu0 0.0
  %3849 = vmatprep.subr.mxu0 0.0
  %3850 = vmatpush1.msra.mxu0 0.0
  %3851 = vmatprep.subr.mxu0 0.0
  %3852 = vmatpush1.msra.mxu0 0.0
  %3853 = vmatprep.subr.mxu0 0.0
  %3854 = vmatpush1.msra.mxu0 0.0
  %3855 = vmatprep.subr.mxu0 0.0
  %3856 = vmatpush1.msra.mxu0 0.0
  %3857 = vmatprep.subr.mxu0 0.0
  %3858 = vmatpush1.msra.mxu0 0.0
  %3859 = vmatprep.subr.mxu0 0.0
  %3860 = vmatpush1.msra.mxu0 0.0
  %3861 = vmatprep.subr.mxu0 0.0
  %3862 = vmatpush1.msra.mxu0 0.0
  %3863 = vmatprep.subr.mxu0 0.0
  %3864 = vmatpush1.msra.mxu0 0.0
  %3865 = vmatprep.subr.mxu0 0.0
  %3866 = vmatpush1.msra.mxu0 0.0
  %3867 = vmatprep.subr.mxu0 0.0
  %3868 = vmatpush1.msra.mxu0 0.0
  %3869 = vmatprep.subr.mxu0 0.0
  %3870 = vmatpush1.msra.mxu0 0.0
  %3871 = vmatprep.subr.mxu0 0.0
  %3872 = vmatpush1.msra.mxu0 0.0
  %3873 = vmatprep.subr.mxu0 0.0
  %3874 = vmatpush1.msra.mxu0 0.0
  %3875 = vmatprep.subr.mxu0 0.0
  %3876 = vmatpush1.msra.mxu0 0.0
  %3877 = vmatprep.mubr.f32.mxu0 0.0
  %3878 = vmatmul.mubr.f32.gmra.mrb[0].mxu0 %v3787
  %v3879 = vpop.f32.mrb[0].mxu0
  %v3880 = vadd.f32 %v3785, %v3879
  %v3881 = vpop.f32.mrb[0].mxu0
  %3882 = vmatprep.mubr.f32.mxu0 0.0
  %3883 = vmatmul.mubr.f32.gmra.mrb[0].mxu0 %v3790
  %v3884 = vpop.f32.mrb[0].mxu0
  %v3885 = vadd.f32 %v3785, %v3884
  %v3886 = vpop.f32.mrb[0].mxu0
  %3887 = vmatprep.mubr.f32.mxu0 0.0
  %3888 = vmatmul.mubr.f32.gmra.mrb[0].mxu0 %v3793
  %v3889 = vpop.f32.mrb[0].mxu0
  %v3890 = vadd.f32 %v3785, %v3889
  %v3891 = vpop.f32.mrb[0].mxu0
  %3892 = vmatprep.mubr.f32.mxu0 0.0
  %3893 = vmatmul.mubr.f32.gmra.mrb[0].mxu0 %v3796
  %v3894 = vpop.f32.mrb[0].mxu0
  %v3895 = vadd.f32 %v3785, %v3894
  %v3896 = vpop.f32.mrb[0].mxu0
  %3897 = vmatprep.mubr.f32.mxu0 0.0
  %3898 = vmatmul.mubr.f32.gmra.mrb[0].mxu0 %v3799
  %v3899 = vpop.f32.mrb[0].mxu0
  %v3900 = vadd.f32 %v3785, %v3899
  %v3901 = vpop.f32.mrb[0].mxu0
  %3902 = vmatprep.mubr.f32.mxu0 0.0
  %3903 = vmatmul.mubr.f32.gmra.mrb[0].mxu0 %v3802
  %v3904 = vpop.f32.mrb[0].mxu0
  %v3905 = vadd.f32 %v3785, %v3904
  %v3906 = vpop.f32.mrb[0].mxu0
  %3907 = vmatprep.mubr.f32.mxu0 0.0
  %3908 = vmatmul.mubr.f32.gmra.mrb[0].mxu0 %v3805
  %v3909 = vpop.f32.mrb[0].mxu0
  %v3910 = vadd.f32 %v3785, %v3909
  %v3911 = vpop.f32.mrb[0].mxu0
  %3912 = vmatprep.mubr.f32.mxu0 0.0
  %3913 = vmatmul.mubr.f32.gmra.mrb[0].mxu0 %v3808
  %v3914 = vpop.f32.mrb[0].mxu0
  %v3915 = vadd.f32 %v3785, %v3914
  %v3916 = vpop.f32.mrb[0].mxu0
  %3917 = vmatprep.mubr.f32.mxu0 0.0
  %3918 = vmatmul.mubr.f32.gmra.mrb[0].mxu0 %v3811
  %v3919 = vpop.f32.mrb[0].mxu0
  %v3920 = vadd.f32 %v3785, %v3919
  %v3921 = vpop.f32.mrb[0].mxu0
  %3922 = vdwg.mxu0
  %3923 = vst [vmem:[%s5] sm:$0xff] %v3880
  %3924 = vst [vmem:[%s5 + $0x8] sm:$0xff] %v3885
  %3925 = vst [vmem:[%s5 + $0x10] sm:$0xff] %v3890
  %3926 = vst [vmem:[%s5 + $0x18] sm:$0xff] %v3895
  %3927 = vst [vmem:[%s5 + $0x20] sm:$0xff] %v3900
  %3928 = vst [vmem:[%s5 + $0x28] sm:$0xff] %v3905
  %3929 = vst [vmem:[%s5 + $0x30] sm:$0xff] %v3910
  %3930 = vst [vmem:[%s5 + $0x38] sm:$0xff] %v3915
  %3931 = vst [vmem:[%s5 + $0x40] sm:$0xff] %v3920
  // Predicated region
  $region22: #{image_captioning_forward.1} parent=0 // pred_check
    _
  $region23: #{image_captioning_forward.1} parent=0 // pred_check_branch
    %3933 = sbr.rel (0) target = $region25
  $region24: #{image_captioning_forward.1} parent=0 // pred_region
    _
  $region25: #{image_captioning_forward.1} parent=0 // pred_fallthru
    _
  // Predicated region
  $region26: #{image_captioning_forward.1} parent=0 // pred_check
    _
  $region27: #{image_captioning_forward.1} parent=0 // pred_check_branch
    %3935 = sbr.rel (0) target = $region29
  $region28: #{image_captioning_forward.1} parent=0 // pred_region
    _
  $region29: #{image_captioning_forward.1} parent=0 // pred_fallthru
    _

</llo_original>
